<compile_context>
chip_gen: v5e
topology: v5e:2x2
jax: 0.10.0
libtpu: 0.0.40
codegen_flags: <defaults>
</compile_context>

<pallas_src>
import jax
import jax.numpy as jnp
from jax.experimental import pallas as pl
from jax.experimental.pallas import tpu as pltpu

H = 16            # attention heads (GATConv(..., heads=16))
NEG_SLOPE = 0.2   # GATConv default negative_slope


def _gat_fused_kernel(x_ref, ea_ref, gsrc_ref, gdst_ref, sdst_ref,
                      wnode1_ref, waedge1_ref, bias1_ref,
                      wnode2_ref, waedge2_ref, bias2_ref,
                      expand_ref, repmean_ref,
                      out_ref):
    """Both GATConv layers (+ fused ReLUs) in one kernel. All hot-path math
    (linear transforms, attention logits, softmax, aggregation, head-mean, bias,
    relu) is in-kernel; the inter-layer activation stays in VMEM."""
    f32 = jnp.float32
    bf16 = jnp.bfloat16
    HC = expand_ref.shape[1]              # heads * out_channels

    gsrc = gsrc_ref[...]                  # (E, N) bf16: gsrc[e, src(e)] = 1
    gdst = gdst_ref[...]                  # (E, N) bf16: gdst[e, dst(e)] = 1
    sdst = sdst_ref[...]                  # (N, E) bf16 = gdst.T
    ea = ea_ref[...]                      # (E, D) bf16
    expand = expand_ref[...]              # (H, HC) bf16 head-broadcast
    repmean = repmean_ref[...]            # (HC, C) bf16 head-mean (1/H folded)

    def layer(x_bf, wnode, waedge, bias_row):
        # 1) All node-side linear work in a single bf16 MXU matmul.
        #    wnode = [W_src | W_src.att_src | W_src.att_dst] (folded on host, once).
        x_all = jnp.dot(x_bf, wnode, preferred_element_type=f32)            # (N, HC+2H)
        att_dst_n = x_all[:, HC + H:]                                        # (N, H)

        # 2) Edge-side attention scalars (att_edge folded into lin_edge on host).
        att_edge_e = jnp.dot(ea, waedge, preferred_element_type=f32)         # (E, H)

        # 3) One merged gsrc gather for [x_lin | att_src] (lane-aligned split at HC),
        #    one gdst gather for att_dst. One-hot gathers run on the MXU.
        src_gather = jnp.dot(gsrc, x_all[:, :HC + H].astype(bf16),
                             preferred_element_type=f32)                     # (E, HC+H)
        x_edge = src_gather[:, :HC]                                          # (E, HC)
        att_src_e = src_gather[:, HC:]                                       # (E, H)
        att_dst_e = jnp.dot(gdst, att_dst_n.astype(bf16),
                            preferred_element_type=f32)                      # (E, H)

        logits = att_src_e + att_dst_e + att_edge_e                          # (E, H)
        logits = jnp.where(logits >= 0, logits, NEG_SLOPE * logits)          # leaky_relu(0.2)

        # 4) Softmax over each destination's incoming edges, all heads at once.
        #    Shift by the per-head global max (shift-invariant == per-segment max).
        m = jnp.max(logits, axis=0, keepdims=True)                           # (1, H)
        p_e = jnp.exp(logits - m)                                            # (E, H) EUP
        denom = jnp.dot(sdst, p_e.astype(bf16), preferred_element_type=f32)  # (N, H)
        denom_e = jnp.dot(gdst, denom.astype(bf16),
                          preferred_element_type=f32) + 1e-16                # (E, H)
        alpha = p_e * pl.reciprocal(denom_e, approx=True)                    # (E, H)

        # 5) Aggregation: broadcast alpha across channels (matmul), weight the
        #    gathered source features, head-mean via long-K matmul (1/H folded),
        #    scatter-add to destinations with one matmul, add bias, fuse ReLU.
        alpha_b = jnp.dot(alpha.astype(bf16), expand,
                          preferred_element_type=f32)                        # (E, HC)
        weighted = (x_edge * alpha_b).astype(bf16)                           # (E, HC)
        per_edge = jnp.dot(weighted, repmean, preferred_element_type=f32)    # (E, C)
        out = jnp.dot(sdst, per_edge.astype(bf16),
                      preferred_element_type=f32) + bias_row                 # (N, C)
        return jnp.maximum(out, 0.0)                                         # fused F.relu

    h1 = layer(x_ref[...], wnode1_ref[...], waedge1_ref[...], bias1_ref[...])
    # F.dropout(p=0.0) and GATConv-internal dropout(0.0) are identities.
    h2 = layer(h1.astype(bf16), wnode2_ref[...], waedge2_ref[...], bias2_ref[...])
    out_ref[...] = h2


def init_gatconv(key, in_ch, out_ch, edge_dim, heads):
    """PyG-style glorot init for GATConv (lin_src shared for dst, lin_edge bias-free)."""
    def glorot(k, shape, fan_sum):
        s = jnp.sqrt(6.0 / fan_sum)
        return jax.random.uniform(k, shape, jnp.float32, -s, s)
    ks = jax.random.split(key, 5)
    hc = heads * out_ch
    wsrc  = glorot(ks[0], (in_ch, hc), in_ch + hc)          # lin_src (shared with dst)
    wedge = glorot(ks[1], (edge_dim, hc), edge_dim + hc)    # lin_edge
    asrc  = glorot(ks[2], (heads, out_ch), heads + out_ch)  # att_src
    adst  = glorot(ks[3], (heads, out_ch), heads + out_ch)  # att_dst
    aedge = glorot(ks[4], (heads, out_ch), heads + out_ch)  # att_edge
    bias  = jnp.zeros((out_ch,), jnp.float32)               # PyG zeros init
    return (wsrc, wedge, asrc, adst, aedge, bias)


def fold_gatconv_params(params):
    """Host-side, once: fold the per-head attention vectors into the linear weights
    and cast the MXU-bound weights to bf16 (bias stays f32, added post-accumulation)."""
    wsrc, wedge, asrc, adst, aedge, bias = params
    f_in, hc = wsrc.shape
    c = hc // H
    w3 = wsrc.reshape(f_in, H, c)
    wa_src = jnp.einsum('fhc,hc->fh', w3, asrc)                              # (F, H)
    wa_dst = jnp.einsum('fhc,hc->fh', w3, adst)                              # (F, H)
    wnode = jnp.concatenate([wsrc, wa_src, wa_dst], axis=1)                  # (F, HC+2H)
    waedge = jnp.einsum('dhc,hc->dh', wedge.reshape(wedge.shape[0], H, c), aedge)  # (D, H)
    return wnode.astype(jnp.bfloat16), waedge.astype(jnp.bfloat16), bias.reshape(1, c)


def make_head_consts(out_ch):
    """Head-broadcast / head-mean constants (exact in bf16), shared by both layers."""
    expand = jnp.repeat(jnp.eye(H, dtype=jnp.float32), out_ch, axis=1)        # (H, H*C)
    rep_mean = jnp.tile(jnp.eye(out_ch, dtype=jnp.float32), (H, 1)) / H       # (H*C, C)
    return expand.astype(jnp.bfloat16), rep_mean.astype(jnp.bfloat16)


def gat_forward(x, src, dst, edge_attr, params1, params2):
    """Full GAT.forward: gat1 -> relu -> dropout(0.0) -> gat2 -> relu -> dropout(0.0),
    as a single fused pallas_call (gridless, everything VMEM-resident at this size)."""
    bf16 = jnp.bfloat16
    n = x.shape[0]
    gsrc = jax.nn.one_hot(src, n, dtype=bf16)   # (E, N)
    gdst = jax.nn.one_hot(dst, n, dtype=bf16)   # (E, N)
    sdst = gdst.T                               # (N, E)

    c1 = params1[0].shape[1] // H
    c2 = params2[0].shape[1] // H
    assert c1 == c2, "spec uses hidden_size == out_channels == 64; consts shared across layers"
    expand, rep_mean = make_head_consts(c1)
    wnode1, waedge1, bias1 = fold_gatconv_params(params1)
    wnode2, waedge2, bias2 = fold_gatconv_params(params2)

    vmem = pl.BlockSpec(memory_space=pltpu.MemorySpace.VMEM)
    inputs = (x.astype(bf16), edge_attr.astype(bf16), gsrc, gdst, sdst,
              wnode1, waedge1, bias1, wnode2, waedge2, bias2, expand, rep_mean)
    return pl.pallas_call(
        _gat_fused_kernel,
        out_shape=jax.ShapeDtypeStruct((n, c2), jnp.float32),
        in_specs=[vmem] * len(inputs),
        out_specs=vmem,
    )(*inputs)


def gat_reference(x, src, dst, edge_attr, params1, params2):
    """Pure-JAX f32 reference (PyG GATConv semantics incl. per-destination softmax)."""
    def conv(xf, params):
        wsrc, wedge, asrc, adst, aedge, bias = params
        n = xf.shape[0]
        c = wsrc.shape[1] // H
        xs = (xf @ wsrc).reshape(n, H, c)
        a_src = jnp.einsum('nhc,hc->nh', xs, asrc)
        a_dst = jnp.einsum('nhc,hc->nh', xs, adst)
        ee = (edge_attr @ wedge).reshape(-1, H, c)
        a_edge = jnp.einsum('ehc,hc->eh', ee, aedge)
        logits = jax.nn.leaky_relu(a_src[src] + a_dst[dst] + a_edge, NEG_SLOPE)
        seg_max = jax.ops.segment_max(logits, dst, num_segments=n)
        p = jnp.exp(logits - seg_max[dst])
        seg_sum = jax.ops.segment_sum(p, dst, num_segments=n)
        alpha = p / (seg_sum[dst] + 1e-16)
        msg = xs[src] * alpha[:, :, None]
        out = jax.ops.segment_sum(msg, dst, num_segments=n)
        return out.mean(axis=1) + bias
    h = jax.nn.relu(conv(x, params1))
    return jax.nn.relu(conv(h, params2))


def build_graph(key, n_nodes, n_edges0, feat_dim, edge_dim):
    """Random graph + GATConv's add_self_loops(fill_value='mean') preprocessing."""
    k1, k2, k3, k4 = jax.random.split(key, 4)
    x = jax.random.normal(k1, (n_nodes, feat_dim), jnp.float32)
    src0 = jax.random.randint(k2, (n_edges0,), 0, n_nodes)
    dst0 = jax.random.randint(k3, (n_edges0,), 0, n_nodes)
    dst0 = jnp.where(dst0 == src0, (dst0 + 1) % n_nodes, dst0)     # remove_self_loops
    edge_attr0 = jax.random.normal(k4, (n_edges0, edge_dim), jnp.float32)

    # self-loop edge_attr = per-destination mean of incoming edge_attr (fill_value='mean')
    dst_oh = jax.nn.one_hot(dst0, n_nodes, dtype=jnp.float32)      # (E0, N)
    sums = dst_oh.T @ edge_attr0
    counts = jnp.sum(dst_oh, axis=0)
    loop_attr = sums / jnp.maximum(counts, 1.0)[:, None]

    src = jnp.concatenate([src0, jnp.arange(n_nodes)])
    dst = jnp.concatenate([dst0, jnp.arange(n_nodes)])
    edge_attr = jnp.concatenate([edge_attr0, loop_attr], axis=0)
    return x, src, dst, edge_attr


if __name__ == "__main__":
    key = jax.random.PRNGKey(0)
    N_NODES = 32
    N_EDGES0 = 96            # +N self-loops -> E = 128
    FEAT = 64                # GATConv(64, hidden)
    HIDDEN = 64              # hidden_size default
    EDGE_DIM = 64

    kg, kp1, kp2 = jax.random.split(key, 3)
    x, src, dst, edge_attr = build_graph(kg, N_NODES, N_EDGES0, FEAT, EDGE_DIM)

    params1 = init_gatconv(kp1, FEAT, HIDDEN, EDGE_DIM, H)   # gat1: 64 -> 64, 16 heads, mean
    params2 = init_gatconv(kp2, HIDDEN, 64, EDGE_DIM, H)     # gat2: 64 -> 64, 16 heads, mean

    out = gat_forward(x, src, dst, edge_attr, params1, params2)
    out = jax.block_until_ready(out)
    assert out.shape == (N_NODES, 64) and out.dtype == jnp.float32

    # Tolerance-checked pure-JAX f32 reference (relaxed: bf16 MXU operands +
    # approximate reciprocal + global-vs-per-segment softmax shift).
    ref = jax.block_until_ready(gat_reference(x, src, dst, edge_attr, params1, params2))
    assert bool(jnp.all(jnp.isfinite(out)))
    assert bool(jnp.allclose(out, ref, rtol=5e-2, atol=5e-2)), \
        f"max abs err {float(jnp.max(jnp.abs(out - ref)))}"

    print("KERNEL_OK")
</pallas_src>

<mosaic_0001>
module attributes {stable_mosaic.version = 11 : i64} {
  func.func @_gat_fused_kernel(%arg0: memref<32x64xbf16, #tpu.memory_space<vmem>>, %arg1: memref<128x64xbf16, #tpu.memory_space<vmem>>, %arg2: memref<128x32xbf16, #tpu.memory_space<vmem>>, %arg3: memref<128x32xbf16, #tpu.memory_space<vmem>>, %arg4: memref<32x128xbf16, #tpu.memory_space<vmem>>, %arg5: memref<64x1056xbf16, #tpu.memory_space<vmem>>, %arg6: memref<64x16xbf16, #tpu.memory_space<vmem>>, %arg7: memref<1x64xf32, #tpu.memory_space<vmem>>, %arg8: memref<64x1056xbf16, #tpu.memory_space<vmem>>, %arg9: memref<64x16xbf16, #tpu.memory_space<vmem>>, %arg10: memref<1x64xf32, #tpu.memory_space<vmem>>, %arg11: memref<16x1024xbf16, #tpu.memory_space<vmem>>, %arg12: memref<1024x64xbf16, #tpu.memory_space<vmem>>, %arg13: memref<32x64xf32, #tpu.memory_space<vmem>>) attributes {dimension_semantics = [], scalar_prefetch = 0 : i64, scratch_operands = 0 : i64, tpu.core_type = #tpu.core_type<tc>} {
    %c0 = arith.constant 0 : index
    %c0_0 = arith.constant 0 : index
    %0 = vector.load %arg2[%c0, %c0_0] : memref<128x32xbf16, #tpu.memory_space<vmem>>, vector<128x32xbf16>
    %c0_1 = arith.constant 0 : index
    %c0_2 = arith.constant 0 : index
    %1 = vector.load %arg3[%c0_1, %c0_2] : memref<128x32xbf16, #tpu.memory_space<vmem>>, vector<128x32xbf16>
    %c0_3 = arith.constant 0 : index
    %c0_4 = arith.constant 0 : index
    %2 = vector.load %arg4[%c0_3, %c0_4] : memref<32x128xbf16, #tpu.memory_space<vmem>>, vector<32x128xbf16>
    %c0_5 = arith.constant 0 : index
    %c0_6 = arith.constant 0 : index
    %3 = vector.load %arg1[%c0_5, %c0_6] : memref<128x64xbf16, #tpu.memory_space<vmem>>, vector<128x64xbf16>
    %c0_7 = arith.constant 0 : index
    %c0_8 = arith.constant 0 : index
    %4 = vector.load %arg11[%c0_7, %c0_8] : memref<16x1024xbf16, #tpu.memory_space<vmem>>, vector<16x1024xbf16>
    %c0_9 = arith.constant 0 : index
    %c0_10 = arith.constant 0 : index
    %5 = vector.load %arg12[%c0_9, %c0_10] : memref<1024x64xbf16, #tpu.memory_space<vmem>>, vector<1024x64xbf16>
    %c0_11 = arith.constant 0 : index
    %c0_12 = arith.constant 0 : index
    %6 = vector.load %arg0[%c0_11, %c0_12] : memref<32x64xbf16, #tpu.memory_space<vmem>>, vector<32x64xbf16>
    %c0_13 = arith.constant 0 : index
    %c0_14 = arith.constant 0 : index
    %7 = vector.load %arg5[%c0_13, %c0_14] : memref<64x1056xbf16, #tpu.memory_space<vmem>>, vector<64x1056xbf16>
    %c0_15 = arith.constant 0 : index
    %c0_16 = arith.constant 0 : index
    %8 = vector.load %arg6[%c0_15, %c0_16] : memref<64x16xbf16, #tpu.memory_space<vmem>>, vector<64x16xbf16>
    %c0_17 = arith.constant 0 : index
    %c0_18 = arith.constant 0 : index
    %9 = vector.load %arg7[%c0_17, %c0_18] : memref<1x64xf32, #tpu.memory_space<vmem>>, vector<1x64xf32>
    %cst = arith.constant dense<0.000000e+00> : vector<32x1056xf32>
    %10 = tpu.matmul %6, %7, %cst {dimension_numbers = #tpu.dot_dimension_numbers<[1], [0], [0], [1], [0, 0, 1, 1], [], []>} : vector<32x64xbf16>, vector<64x1056xbf16>, vector<32x1056xf32> -> vector<32x1056xf32>
    %11 = vector.extract_strided_slice %10 {offsets = [0, 1040], sizes = [32, 16], strides = [1, 1]} : vector<32x1056xf32> to vector<32x16xf32>
    %cst_19 = arith.constant dense<0.000000e+00> : vector<128x16xf32>
    %12 = tpu.matmul %3, %8, %cst_19 {dimension_numbers = #tpu.dot_dimension_numbers<[1], [0], [0], [1], [0, 0, 1, 1], [], []>} : vector<128x64xbf16>, vector<64x16xbf16>, vector<128x16xf32> -> vector<128x16xf32>
    %13 = vector.extract_strided_slice %10 {offsets = [0, 0], sizes = [32, 1040], strides = [1, 1]} : vector<32x1056xf32> to vector<32x1040xf32>
    %14 = arith.truncf %13 : vector<32x1040xf32> to vector<32x1040xbf16>
    %cst_20 = arith.constant dense<0.000000e+00> : vector<128x1040xf32>
    %15 = tpu.matmul %0, %14, %cst_20 {dimension_numbers = #tpu.dot_dimension_numbers<[1], [0], [0], [1], [0, 0, 1, 1], [], []>} : vector<128x32xbf16>, vector<32x1040xbf16>, vector<128x1040xf32> -> vector<128x1040xf32>
    %16 = vector.extract_strided_slice %15 {offsets = [0, 0], sizes = [128, 1024], strides = [1, 1]} : vector<128x1040xf32> to vector<128x1024xf32>
    %17 = vector.extract_strided_slice %15 {offsets = [0, 1024], sizes = [128, 16], strides = [1, 1]} : vector<128x1040xf32> to vector<128x16xf32>
    %18 = arith.truncf %11 : vector<32x16xf32> to vector<32x16xbf16>
    %cst_21 = arith.constant dense<0.000000e+00> : vector<128x16xf32>
    %19 = tpu.matmul %1, %18, %cst_21 {dimension_numbers = #tpu.dot_dimension_numbers<[1], [0], [0], [1], [0, 0, 1, 1], [], []>} : vector<128x32xbf16>, vector<32x16xbf16>, vector<128x16xf32> -> vector<128x16xf32>
    %20 = arith.addf %17, %19 : vector<128x16xf32>
    %21 = arith.addf %20, %12 : vector<128x16xf32>
    %cst_22 = arith.constant 0.000000e+00 : f32
    %22 = vector.broadcast %cst_22 : f32 to vector<128x16xf32>
    %23 = arith.cmpf oge, %21, %22 : vector<128x16xf32>
    %cst_23 = arith.constant 2.000000e-01 : f32
    %24 = vector.broadcast %cst_23 : f32 to vector<128x16xf32>
    %25 = arith.mulf %24, %21 : vector<128x16xf32>
    %26 = arith.select %23, %21, %25 : vector<128x16xi1>, vector<128x16xf32>
    %cst_24 = arith.constant dense<0xFF800000> : vector<16xf32>
    %27 = vector.multi_reduction <maximumf>, %26, %cst_24 [0] : vector<128x16xf32> to vector<16xf32>
    %28 = vector.shape_cast %27 : vector<16xf32> to vector<1x16xf32>
    %29 = vector.broadcast %28 : vector<1x16xf32> to vector<128x16xf32>
    %30 = arith.subf %26, %29 : vector<128x16xf32>
    %31 = math.exp %30 : vector<128x16xf32>
    %32 = arith.truncf %31 : vector<128x16xf32> to vector<128x16xbf16>
    %cst_25 = arith.constant dense<0.000000e+00> : vector<32x16xf32>
    %33 = tpu.matmul %2, %32, %cst_25 {dimension_numbers = #tpu.dot_dimension_numbers<[1], [0], [0], [1], [0, 0, 1, 1], [], []>} : vector<32x128xbf16>, vector<128x16xbf16>, vector<32x16xf32> -> vector<32x16xf32>
    %34 = arith.truncf %33 : vector<32x16xf32> to vector<32x16xbf16>
    %cst_26 = arith.constant dense<0.000000e+00> : vector<128x16xf32>
    %35 = tpu.matmul %1, %34, %cst_26 {dimension_numbers = #tpu.dot_dimension_numbers<[1], [0], [0], [1], [0, 0, 1, 1], [], []>} : vector<128x32xbf16>, vector<32x16xbf16>, vector<128x16xf32> -> vector<128x16xf32>
    %cst_27 = arith.constant 1.000000e-16 : f32
    %36 = vector.broadcast %cst_27 : f32 to vector<128x16xf32>
    %37 = arith.addf %35, %36 : vector<128x16xf32>
    %38 = tpu.reciprocal %37 {approx = true} : vector<128x16xf32> -> vector<128x16xf32>
    %39 = arith.mulf %31, %38 : vector<128x16xf32>
    %40 = arith.truncf %39 : vector<128x16xf32> to vector<128x16xbf16>
    %cst_28 = arith.constant dense<0.000000e+00> : vector<128x1024xf32>
    %41 = tpu.matmul %40, %4, %cst_28 {dimension_numbers = #tpu.dot_dimension_numbers<[1], [0], [0], [1], [0, 0, 1, 1], [], []>} : vector<128x16xbf16>, vector<16x1024xbf16>, vector<128x1024xf32> -> vector<128x1024xf32>
    %42 = arith.mulf %16, %41 : vector<128x1024xf32>
    %43 = arith.truncf %42 : vector<128x1024xf32> to vector<128x1024xbf16>
    %cst_29 = arith.constant dense<0.000000e+00> : vector<128x64xf32>
    %44 = tpu.matmul %43, %5, %cst_29 {dimension_numbers = #tpu.dot_dimension_numbers<[1], [0], [0], [1], [0, 0, 1, 1], [], []>} : vector<128x1024xbf16>, vector<1024x64xbf16>, vector<128x64xf32> -> vector<128x64xf32>
    %45 = arith.truncf %44 : vector<128x64xf32> to vector<128x64xbf16>
    %cst_30 = arith.constant dense<0.000000e+00> : vector<32x64xf32>
    %46 = tpu.matmul %2, %45, %cst_30 {dimension_numbers = #tpu.dot_dimension_numbers<[1], [0], [0], [1], [0, 0, 1, 1], [], []>} : vector<32x128xbf16>, vector<128x64xbf16>, vector<32x64xf32> -> vector<32x64xf32>
    %47 = vector.broadcast %9 : vector<1x64xf32> to vector<32x64xf32>
    %48 = arith.addf %46, %47 : vector<32x64xf32>
    %cst_31 = arith.constant 0.000000e+00 : f32
    %49 = vector.broadcast %cst_31 : f32 to vector<32x64xf32>
    %50 = arith.maximumf %48, %49 : vector<32x64xf32>
    %51 = arith.truncf %50 : vector<32x64xf32> to vector<32x64xbf16>
    %c0_32 = arith.constant 0 : index
    %c0_33 = arith.constant 0 : index
    %52 = vector.load %arg8[%c0_32, %c0_33] : memref<64x1056xbf16, #tpu.memory_space<vmem>>, vector<64x1056xbf16>
    %c0_34 = arith.constant 0 : index
    %c0_35 = arith.constant 0 : index
    %53 = vector.load %arg9[%c0_34, %c0_35] : memref<64x16xbf16, #tpu.memory_space<vmem>>, vector<64x16xbf16>
    %c0_36 = arith.constant 0 : index
    %c0_37 = arith.constant 0 : index
    %54 = vector.load %arg10[%c0_36, %c0_37] : memref<1x64xf32, #tpu.memory_space<vmem>>, vector<1x64xf32>
    %cst_38 = arith.constant dense<0.000000e+00> : vector<32x1056xf32>
    %55 = tpu.matmul %51, %52, %cst_38 {dimension_numbers = #tpu.dot_dimension_numbers<[1], [0], [0], [1], [0, 0, 1, 1], [], []>} : vector<32x64xbf16>, vector<64x1056xbf16>, vector<32x1056xf32> -> vector<32x1056xf32>
    %56 = vector.extract_strided_slice %55 {offsets = [0, 1040], sizes = [32, 16], strides = [1, 1]} : vector<32x1056xf32> to vector<32x16xf32>
    %cst_39 = arith.constant dense<0.000000e+00> : vector<128x16xf32>
    %57 = tpu.matmul %3, %53, %cst_39 {dimension_numbers = #tpu.dot_dimension_numbers<[1], [0], [0], [1], [0, 0, 1, 1], [], []>} : vector<128x64xbf16>, vector<64x16xbf16>, vector<128x16xf32> -> vector<128x16xf32>
    %58 = vector.extract_strided_slice %55 {offsets = [0, 0], sizes = [32, 1040], strides = [1, 1]} : vector<32x1056xf32> to vector<32x1040xf32>
    %59 = arith.truncf %58 : vector<32x1040xf32> to vector<32x1040xbf16>
    %cst_40 = arith.constant dense<0.000000e+00> : vector<128x1040xf32>
    %60 = tpu.matmul %0, %59, %cst_40 {dimension_numbers = #tpu.dot_dimension_numbers<[1], [0], [0], [1], [0, 0, 1, 1], [], []>} : vector<128x32xbf16>, vector<32x1040xbf16>, vector<128x1040xf32> -> vector<128x1040xf32>
    %61 = vector.extract_strided_slice %60 {offsets = [0, 0], sizes = [128, 1024], strides = [1, 1]} : vector<128x1040xf32> to vector<128x1024xf32>
    %62 = vector.extract_strided_slice %60 {offsets = [0, 1024], sizes = [128, 16], strides = [1, 1]} : vector<128x1040xf32> to vector<128x16xf32>
    %63 = arith.truncf %56 : vector<32x16xf32> to vector<32x16xbf16>
    %cst_41 = arith.constant dense<0.000000e+00> : vector<128x16xf32>
    %64 = tpu.matmul %1, %63, %cst_41 {dimension_numbers = #tpu.dot_dimension_numbers<[1], [0], [0], [1], [0, 0, 1, 1], [], []>} : vector<128x32xbf16>, vector<32x16xbf16>, vector<128x16xf32> -> vector<128x16xf32>
    %65 = arith.addf %62, %64 : vector<128x16xf32>
    %66 = arith.addf %65, %57 : vector<128x16xf32>
    %cst_42 = arith.constant 0.000000e+00 : f32
    %67 = vector.broadcast %cst_42 : f32 to vector<128x16xf32>
    %68 = arith.cmpf oge, %66, %67 : vector<128x16xf32>
    %cst_43 = arith.constant 2.000000e-01 : f32
    %69 = vector.broadcast %cst_43 : f32 to vector<128x16xf32>
    %70 = arith.mulf %69, %66 : vector<128x16xf32>
    %71 = arith.select %68, %66, %70 : vector<128x16xi1>, vector<128x16xf32>
    %cst_44 = arith.constant dense<0xFF800000> : vector<16xf32>
    %72 = vector.multi_reduction <maximumf>, %71, %cst_44 [0] : vector<128x16xf32> to vector<16xf32>
    %73 = vector.shape_cast %72 : vector<16xf32> to vector<1x16xf32>
    %74 = vector.broadcast %73 : vector<1x16xf32> to vector<128x16xf32>
    %75 = arith.subf %71, %74 : vector<128x16xf32>
    %76 = math.exp %75 : vector<128x16xf32>
    %77 = arith.truncf %76 : vector<128x16xf32> to vector<128x16xbf16>
    %cst_45 = arith.constant dense<0.000000e+00> : vector<32x16xf32>
    %78 = tpu.matmul %2, %77, %cst_45 {dimension_numbers = #tpu.dot_dimension_numbers<[1], [0], [0], [1], [0, 0, 1, 1], [], []>} : vector<32x128xbf16>, vector<128x16xbf16>, vector<32x16xf32> -> vector<32x16xf32>
    %79 = arith.truncf %78 : vector<32x16xf32> to vector<32x16xbf16>
    %cst_46 = arith.constant dense<0.000000e+00> : vector<128x16xf32>
    %80 = tpu.matmul %1, %79, %cst_46 {dimension_numbers = #tpu.dot_dimension_numbers<[1], [0], [0], [1], [0, 0, 1, 1], [], []>} : vector<128x32xbf16>, vector<32x16xbf16>, vector<128x16xf32> -> vector<128x16xf32>
    %cst_47 = arith.constant 1.000000e-16 : f32
    %81 = vector.broadcast %cst_47 : f32 to vector<128x16xf32>
    %82 = arith.addf %80, %81 : vector<128x16xf32>
    %83 = tpu.reciprocal %82 {approx = true} : vector<128x16xf32> -> vector<128x16xf32>
    %84 = arith.mulf %76, %83 : vector<128x16xf32>
    %85 = arith.truncf %84 : vector<128x16xf32> to vector<128x16xbf16>
    %cst_48 = arith.constant dense<0.000000e+00> : vector<128x1024xf32>
    %86 = tpu.matmul %85, %4, %cst_48 {dimension_numbers = #tpu.dot_dimension_numbers<[1], [0], [0], [1], [0, 0, 1, 1], [], []>} : vector<128x16xbf16>, vector<16x1024xbf16>, vector<128x1024xf32> -> vector<128x1024xf32>
    %87 = arith.mulf %61, %86 : vector<128x1024xf32>
    %88 = arith.truncf %87 : vector<128x1024xf32> to vector<128x1024xbf16>
    %cst_49 = arith.constant dense<0.000000e+00> : vector<128x64xf32>
    %89 = tpu.matmul %88, %5, %cst_49 {dimension_numbers = #tpu.dot_dimension_numbers<[1], [0], [0], [1], [0, 0, 1, 1], [], []>} : vector<128x1024xbf16>, vector<1024x64xbf16>, vector<128x64xf32> -> vector<128x64xf32>
    %90 = arith.truncf %89 : vector<128x64xf32> to vector<128x64xbf16>
    %cst_50 = arith.constant dense<0.000000e+00> : vector<32x64xf32>
    %91 = tpu.matmul %2, %90, %cst_50 {dimension_numbers = #tpu.dot_dimension_numbers<[1], [0], [0], [1], [0, 0, 1, 1], [], []>} : vector<32x128xbf16>, vector<128x64xbf16>, vector<32x64xf32> -> vector<32x64xf32>
    %92 = vector.broadcast %54 : vector<1x64xf32> to vector<32x64xf32>
    %93 = arith.addf %91, %92 : vector<32x64xf32>
    %cst_51 = arith.constant 0.000000e+00 : f32
    %94 = vector.broadcast %cst_51 : f32 to vector<32x64xf32>
    %95 = arith.maximumf %93, %94 : vector<32x64xf32>
    %c0_52 = arith.constant 0 : index
    %c0_53 = arith.constant 0 : index
    %96 = vector.load %arg13[%c0_52, %c0_53] : memref<32x64xf32, #tpu.memory_space<vmem>>, vector<32x64xf32>
    tpu.vector_store %arg13[%c0_52, %c0_53], %95 {strides = array<i32>} : memref<32x64xf32, #tpu.memory_space<vmem>>, vector<32x64xf32>,
    return
  }
}

</mosaic_0001>

<llo_original>
// kernel: tpu_custom_call.1
$region0: #{tpu_custom_call.1}
  #allocation0 [shape = 'u32[]', space=smem, size = 0x4, offset = 0x4, fixed_abs, tag = 'smem constant byte address 0x4 - core index']
  #allocation1 [shape = 'u32[72,128]{1,0:T(1,128)}', space=vmem, size = 0x9000, scoped, tag = 'internal scratch']
  %s0 = inlined_call_operand.vmem [shape: bf16[32,64], index: 0, kind: input, shape index: {}]
  %s1 = inlined_call_operand.vmem [shape: bf16[128,64], index: 1, kind: input, shape index: {}]
  %s2 = inlined_call_operand.vmem [shape: bf16[128,32], index: 2, kind: input, shape index: {}]
  %s3 = inlined_call_operand.vmem [shape: bf16[128,32], index: 3, kind: input, shape index: {}]
  %s4 = inlined_call_operand.vmem [shape: bf16[32,128], index: 4, kind: input, shape index: {}]
  %s5 = inlined_call_operand.vmem [shape: bf16[64,1056], index: 5, kind: input, shape index: {}]
  %s6 = inlined_call_operand.vmem [shape: bf16[64,16], index: 6, kind: input, shape index: {}]
  %s7 = inlined_call_operand.vmem [shape: f32[1,64], index: 7, kind: input, shape index: {}]
  %s8 = inlined_call_operand.vmem [shape: bf16[64,1056], index: 8, kind: input, shape index: {}]
  %s9 = inlined_call_operand.vmem [shape: bf16[64,16], index: 9, kind: input, shape index: {}]
  %s10 = inlined_call_operand.vmem [shape: f32[1,64], index: 10, kind: input, shape index: {}]
  %s11 = inlined_call_operand.vmem [shape: bf16[16,1024], index: 11, kind: input, shape index: {}]
  %s12 = inlined_call_operand.vmem [shape: bf16[1024,64], index: 12, kind: input, shape index: {}]
  %s13 = inlined_call_operand.hbm [shape: f32[32,64], index: 13, kind: output, shape index: {}]
  %s14 = sld [smem:[#allocation0]]
  $region62: #{tpu_custom_call.1} parent=0
    _
  %s16 = ssub.s32 1, %s14
  %s17 = scalar_select 0, %s16, %s14
  $region1: #{tpu_custom_call.1} parent=0
    #allocation2 [shape = 'u8[16384]{0}', space=vmem, size = 0x4000, scoped, tag = 'output window, operand 0, single buffered']
    #allocation3 [shape = 's32[1]{0}', space=sflag, size = 0x4, scoped, tag = 'scoped memory for tpu_custom_call.1']
    %18 = vsyncpa [#allocation3], 0
    // Predicated region
    $region2: #{tpu_custom_call.1} parent=1 // pred_check
      _
    $region3: #{tpu_custom_call.1} parent=1 // pred_check_branch
      %20 = sbr.rel (0) target = $region5
    $region4: #{tpu_custom_call.1} parent=1 // pred_region
      _
    $region5: #{tpu_custom_call.1} parent=1 // pred_fallthru
      _
    // Predicated region
    $region6: #{tpu_custom_call.1} parent=1 // pred_check
      _
    $region7: #{tpu_custom_call.1} parent=1 // pred_check_branch
      %22 = sbr.rel (0) target = $region9
    $region8: #{tpu_custom_call.1} parent=1 // pred_region
      _
    $region9: #{tpu_custom_call.1} parent=1 // pred_fallthru
      _
    // Predicated region
    $region10: #{tpu_custom_call.1} parent=1 // pred_check
      _
    $region11: #{tpu_custom_call.1} parent=1 // pred_check_branch
      %24 = sbr.rel (0) target = $region13
    $region12: #{tpu_custom_call.1} parent=1 // pred_region
      _
    $region13: #{tpu_custom_call.1} parent=1 // pred_fallthru
      _
    // Predicated region
    $region14: #{tpu_custom_call.1} parent=1 // pred_check
      _
    $region15: #{tpu_custom_call.1} parent=1 // pred_check_branch
      %26 = sbr.rel (0) target = $region17
    $region16: #{tpu_custom_call.1} parent=1 // pred_region
      _
    $region17: #{tpu_custom_call.1} parent=1 // pred_fallthru
      _
    // Predicated region
    $region18: #{tpu_custom_call.1} parent=1 // pred_check
      _
    $region19: #{tpu_custom_call.1} parent=1 // pred_check_branch
      %28 = sbr.rel (0) target = $region21
    $region20: #{tpu_custom_call.1} parent=1 // pred_region
      _
    $region21: #{tpu_custom_call.1} parent=1 // pred_fallthru
      _
    // Predicated region
    $region22: #{tpu_custom_call.1} parent=1 // pred_check
      _
    $region23: #{tpu_custom_call.1} parent=1 // pred_check_branch
      %30 = sbr.rel (0) target = $region25
    $region24: #{tpu_custom_call.1} parent=1 // pred_region
      _
    $region25: #{tpu_custom_call.1} parent=1 // pred_fallthru
      _
    // Predicated region
    $region26: #{tpu_custom_call.1} parent=1 // pred_check
      _
    $region27: #{tpu_custom_call.1} parent=1 // pred_check_branch
      %32 = sbr.rel (0) target = $region29
    $region28: #{tpu_custom_call.1} parent=1 // pred_region
      _
    $region29: #{tpu_custom_call.1} parent=1 // pred_fallthru
      _
    // Predicated region
    $region30: #{tpu_custom_call.1} parent=1 // pred_check
      _
    $region31: #{tpu_custom_call.1} parent=1 // pred_check_branch
      %34 = sbr.rel (0) target = $region33
    $region32: #{tpu_custom_call.1} parent=1 // pred_region
      _
    $region33: #{tpu_custom_call.1} parent=1 // pred_fallthru
      _
    // Predicated region
    $region34: #{tpu_custom_call.1} parent=1 // pred_check
      _
    $region35: #{tpu_custom_call.1} parent=1 // pred_check_branch
      %36 = sbr.rel (0) target = $region37
    $region36: #{tpu_custom_call.1} parent=1 // pred_region
      _
    $region37: #{tpu_custom_call.1} parent=1 // pred_fallthru
      _
    // Predicated region
    $region38: #{tpu_custom_call.1} parent=1 // pred_check
      _
    $region39: #{tpu_custom_call.1} parent=1 // pred_check_branch
      %38 = sbr.rel (0) target = $region41
    $region40: #{tpu_custom_call.1} parent=1 // pred_region
      _
    $region41: #{tpu_custom_call.1} parent=1 // pred_fallthru
      _
    // Predicated region
    $region42: #{tpu_custom_call.1} parent=1 // pred_check
      _
    $region43: #{tpu_custom_call.1} parent=1 // pred_check_branch
      %40 = sbr.rel (0) target = $region45
    $region44: #{tpu_custom_call.1} parent=1 // pred_region
      _
    $region45: #{tpu_custom_call.1} parent=1 // pred_fallthru
      _
    // Predicated region
    $region46: #{tpu_custom_call.1} parent=1 // pred_check
      _
    $region47: #{tpu_custom_call.1} parent=1 // pred_check_branch
      %42 = sbr.rel (0) target = $region49
    $region48: #{tpu_custom_call.1} parent=1 // pred_region
      _
    $region49: #{tpu_custom_call.1} parent=1 // pred_fallthru
      _
    // Predicated region
    $region50: #{tpu_custom_call.1} parent=1 // pred_check
      _
    $region51: #{tpu_custom_call.1} parent=1 // pred_check_branch
      %44 = sbr.rel (0) target = $region53
    $region52: #{tpu_custom_call.1} parent=1 // pred_region
      _
    $region53: #{tpu_custom_call.1} parent=1 // pred_fallthru
      _
    %v46 = vld [vmem:[%s2] sm:$0xf]
    %v47 = vld [vmem:[%s2 + $0x4] sm:$0xf]
    %v48 = vld [vmem:[%s2 + $0x8] sm:$0xf]
    %v49 = vld [vmem:[%s2 + $0xc] sm:$0xf]
    %v50 = vld [vmem:[%s2 + $0x10] sm:$0xf]
    %v51 = vld [vmem:[%s2 + $0x14] sm:$0xf]
    %v52 = vld [vmem:[%s2 + $0x18] sm:$0xf]
    %v53 = vld [vmem:[%s2 + $0x1c] sm:$0xf]
    %v54 = vld [vmem:[%s2 + $0x20] sm:$0xf]
    %v55 = vld [vmem:[%s2 + $0x24] sm:$0xf]
    %v56 = vld [vmem:[%s2 + $0x28] sm:$0xf]
    %v57 = vld [vmem:[%s2 + $0x2c] sm:$0xf]
    %v58 = vld [vmem:[%s2 + $0x30] sm:$0xf]
    %v59 = vld [vmem:[%s2 + $0x34] sm:$0xf]
    %v60 = vld [vmem:[%s2 + $0x38] sm:$0xf]
    %v61 = vld [vmem:[%s2 + $0x3c] sm:$0xf]
    %v62 = vld [vmem:[%s3] sm:$0xf]
    %v63 = vld [vmem:[%s3 + $0x4] sm:$0xf]
    %v64 = vld [vmem:[%s3 + $0x8] sm:$0xf]
    %v65 = vld [vmem:[%s3 + $0xc] sm:$0xf]
    %v66 = vld [vmem:[%s3 + $0x10] sm:$0xf]
    %v67 = vld [vmem:[%s3 + $0x14] sm:$0xf]
    %v68 = vld [vmem:[%s3 + $0x18] sm:$0xf]
    %v69 = vld [vmem:[%s3 + $0x1c] sm:$0xf]
    %v70 = vld [vmem:[%s3 + $0x20] sm:$0xf]
    %v71 = vld [vmem:[%s3 + $0x24] sm:$0xf]
    %v72 = vld [vmem:[%s3 + $0x28] sm:$0xf]
    %v73 = vld [vmem:[%s3 + $0x2c] sm:$0xf]
    %v74 = vld [vmem:[%s3 + $0x30] sm:$0xf]
    %v75 = vld [vmem:[%s3 + $0x34] sm:$0xf]
    %v76 = vld [vmem:[%s3 + $0x38] sm:$0xf]
    %v77 = vld [vmem:[%s3 + $0x3c] sm:$0xf]
    %v78 = vld [vmem:[%s4] sm:$0xf]
    %v79 = vld [vmem:[%s4 + $0x4] sm:$0xf]
    %v80 = vld [vmem:[%s4 + $0x8] sm:$0xf]
    %v81 = vld [vmem:[%s4 + $0xc] sm:$0xf]
    %v82 = vld [vmem:[%s1] sm:$0xf]
    %v83 = vld [vmem:[%s1 + $0x4] sm:$0xf]
    %v84 = vld [vmem:[%s1 + $0x8] sm:$0xf]
    %v85 = vld [vmem:[%s1 + $0xc] sm:$0xf]
    %v86 = vld [vmem:[%s1 + $0x10] sm:$0xf]
    %v87 = vld [vmem:[%s1 + $0x14] sm:$0xf]
    %v88 = vld [vmem:[%s1 + $0x18] sm:$0xf]
    %v89 = vld [vmem:[%s1 + $0x1c] sm:$0xf]
    %v90 = vld [vmem:[%s1 + $0x20] sm:$0xf]
    %v91 = vld [vmem:[%s1 + $0x24] sm:$0xf]
    %v92 = vld [vmem:[%s1 + $0x28] sm:$0xf]
    %v93 = vld [vmem:[%s1 + $0x2c] sm:$0xf]
    %v94 = vld [vmem:[%s1 + $0x30] sm:$0xf]
    %v95 = vld [vmem:[%s1 + $0x34] sm:$0xf]
    %v96 = vld [vmem:[%s1 + $0x38] sm:$0xf]
    %v97 = vld [vmem:[%s1 + $0x3c] sm:$0xf]
    %v98 = vld [vmem:[%s11] sm:$0xff]
    %v99 = vld [vmem:[%s11 + $0x8] sm:$0xff]
    %v100 = vld [vmem:[%s11 + $0x10] sm:$0xff]
    %v101 = vld [vmem:[%s11 + $0x18] sm:$0xff]
    %v102 = vld [vmem:[%s11 + $0x20] sm:$0xff]
    %v103 = vld [vmem:[%s11 + $0x28] sm:$0xff]
    %v104 = vld [vmem:[%s11 + $0x30] sm:$0xff]
    %v105 = vld [vmem:[%s11 + $0x38] sm:$0xff]
    %v106 = vld [vmem:[%s12] sm:$0xf]
    %v107 = vld [vmem:[%s12 + $0x4] sm:$0xf]
    %v108 = vld [vmem:[%s12 + $0x8] sm:$0xf]
    %v109 = vld [vmem:[%s12 + $0xc] sm:$0xf]
    %v110 = vld [vmem:[%s12 + $0x10] sm:$0xf]
    %v111 = vld [vmem:[%s12 + $0x14] sm:$0xf]
    %v112 = vld [vmem:[%s12 + $0x18] sm:$0xf]
    %v113 = vld [vmem:[%s12 + $0x1c] sm:$0xf]
    %v114 = vld [vmem:[%s12 + $0x20] sm:$0xf]
    %v115 = vld [vmem:[%s12 + $0x24] sm:$0xf]
    %v116 = vld [vmem:[%s12 + $0x28] sm:$0xf]
    %v117 = vld [vmem:[%s12 + $0x2c] sm:$0xf]
    %v118 = vld [vmem:[%s12 + $0x30] sm:$0xf]
    %v119 = vld [vmem:[%s12 + $0x34] sm:$0xf]
    %v120 = vld [vmem:[%s12 + $0x38] sm:$0xf]
    %v121 = vld [vmem:[%s12 + $0x3c] sm:$0xf]
    %v122 = vld [vmem:[%s12 + $0x40] sm:$0xf]
    %v123 = vld [vmem:[%s12 + $0x44] sm:$0xf]
    %v124 = vld [vmem:[%s12 + $0x48] sm:$0xf]
    %v125 = vld [vmem:[%s12 + $0x4c] sm:$0xf]
    %v126 = vld [vmem:[%s12 + $0x50] sm:$0xf]
    %v127 = vld [vmem:[%s12 + $0x54] sm:$0xf]
    %v128 = vld [vmem:[%s12 + $0x58] sm:$0xf]
    %v129 = vld [vmem:[%s12 + $0x5c] sm:$0xf]
    %v130 = vld [vmem:[%s12 + $0x60] sm:$0xf]
    %v131 = vld [vmem:[%s12 + $0x64] sm:$0xf]
    %v132 = vld [vmem:[%s12 + $0x68] sm:$0xf]
    %v133 = vld [vmem:[%s12 + $0x6c] sm:$0xf]
    %v134 = vld [vmem:[%s12 + $0x70] sm:$0xf]
    %v135 = vld [vmem:[%s12 + $0x74] sm:$0xf]
    %v136 = vld [vmem:[%s12 + $0x78] sm:$0xf]
    %v137 = vld [vmem:[%s12 + $0x7c] sm:$0xf]
    %v138 = vld [vmem:[%s12 + $0x80] sm:$0xf]
    %v139 = vld [vmem:[%s12 + $0x84] sm:$0xf]
    %v140 = vld [vmem:[%s12 + $0x88] sm:$0xf]
    %v141 = vld [vmem:[%s12 + $0x8c] sm:$0xf]
    %v142 = vld [vmem:[%s12 + $0x90] sm:$0xf]
    %v143 = vld [vmem:[%s12 + $0x94] sm:$0xf]
    %v144 = vld [vmem:[%s12 + $0x98] sm:$0xf]
    %v145 = vld [vmem:[%s12 + $0x9c] sm:$0xf]
    %v146 = vld [vmem:[%s12 + $0xa0] sm:$0xf]
    %v147 = vld [vmem:[%s12 + $0xa4] sm:$0xf]
    %v148 = vld [vmem:[%s12 + $0xa8] sm:$0xf]
    %v149 = vld [vmem:[%s12 + $0xac] sm:$0xf]
    %v150 = vld [vmem:[%s12 + $0xb0] sm:$0xf]
    %v151 = vld [vmem:[%s12 + $0xb4] sm:$0xf]
    %v152 = vld [vmem:[%s12 + $0xb8] sm:$0xf]
    %v153 = vld [vmem:[%s12 + $0xbc] sm:$0xf]
    %v154 = vld [vmem:[%s12 + $0xc0] sm:$0xf]
    %v155 = vld [vmem:[%s12 + $0xc4] sm:$0xf]
    %v156 = vld [vmem:[%s12 + $0xc8] sm:$0xf]
    %v157 = vld [vmem:[%s12 + $0xcc] sm:$0xf]
    %v158 = vld [vmem:[%s12 + $0xd0] sm:$0xf]
    %v159 = vld [vmem:[%s12 + $0xd4] sm:$0xf]
    %v160 = vld [vmem:[%s12 + $0xd8] sm:$0xf]
    %v161 = vld [vmem:[%s12 + $0xdc] sm:$0xf]
    %v162 = vld [vmem:[%s12 + $0xe0] sm:$0xf]
    %v163 = vld [vmem:[%s12 + $0xe4] sm:$0xf]
    %v164 = vld [vmem:[%s12 + $0xe8] sm:$0xf]
    %v165 = vld [vmem:[%s12 + $0xec] sm:$0xf]
    %v166 = vld [vmem:[%s12 + $0xf0] sm:$0xf]
    %v167 = vld [vmem:[%s12 + $0xf4] sm:$0xf]
    %v168 = vld [vmem:[%s12 + $0xf8] sm:$0xf]
    %v169 = vld [vmem:[%s12 + $0xfc] sm:$0xf]
    %v170 = vld [vmem:[%s12 + $0x100] sm:$0xf]
    %v171 = vld [vmem:[%s12 + $0x104] sm:$0xf]
    %v172 = vld [vmem:[%s12 + $0x108] sm:$0xf]
    %v173 = vld [vmem:[%s12 + $0x10c] sm:$0xf]
    %v174 = vld [vmem:[%s12 + $0x110] sm:$0xf]
    %v175 = vld [vmem:[%s12 + $0x114] sm:$0xf]
    %v176 = vld [vmem:[%s12 + $0x118] sm:$0xf]
    %v177 = vld [vmem:[%s12 + $0x11c] sm:$0xf]
    %v178 = vld [vmem:[%s12 + $0x120] sm:$0xf]
    %v179 = vld [vmem:[%s12 + $0x124] sm:$0xf]
    %v180 = vld [vmem:[%s12 + $0x128] sm:$0xf]
    %v181 = vld [vmem:[%s12 + $0x12c] sm:$0xf]
    %v182 = vld [vmem:[%s12 + $0x130] sm:$0xf]
    %v183 = vld [vmem:[%s12 + $0x134] sm:$0xf]
    %v184 = vld [vmem:[%s12 + $0x138] sm:$0xf]
    %v185 = vld [vmem:[%s12 + $0x13c] sm:$0xf]
    %v186 = vld [vmem:[%s12 + $0x140] sm:$0xf]
    %v187 = vld [vmem:[%s12 + $0x144] sm:$0xf]
    %v188 = vld [vmem:[%s12 + $0x148] sm:$0xf]
    %v189 = vld [vmem:[%s12 + $0x14c] sm:$0xf]
    %v190 = vld [vmem:[%s12 + $0x150] sm:$0xf]
    %v191 = vld [vmem:[%s12 + $0x154] sm:$0xf]
    %v192 = vld [vmem:[%s12 + $0x158] sm:$0xf]
    %v193 = vld [vmem:[%s12 + $0x15c] sm:$0xf]
    %v194 = vld [vmem:[%s12 + $0x160] sm:$0xf]
    %v195 = vld [vmem:[%s12 + $0x164] sm:$0xf]
    %v196 = vld [vmem:[%s12 + $0x168] sm:$0xf]
    %v197 = vld [vmem:[%s12 + $0x16c] sm:$0xf]
    %v198 = vld [vmem:[%s12 + $0x170] sm:$0xf]
    %v199 = vld [vmem:[%s12 + $0x174] sm:$0xf]
    %v200 = vld [vmem:[%s12 + $0x178] sm:$0xf]
    %v201 = vld [vmem:[%s12 + $0x17c] sm:$0xf]
    %v202 = vld [vmem:[%s12 + $0x180] sm:$0xf]
    %v203 = vld [vmem:[%s12 + $0x184] sm:$0xf]
    %v204 = vld [vmem:[%s12 + $0x188] sm:$0xf]
    %v205 = vld [vmem:[%s12 + $0x18c] sm:$0xf]
    %v206 = vld [vmem:[%s12 + $0x190] sm:$0xf]
    %v207 = vld [vmem:[%s12 + $0x194] sm:$0xf]
    %v208 = vld [vmem:[%s12 + $0x198] sm:$0xf]
    %v209 = vld [vmem:[%s12 + $0x19c] sm:$0xf]
    %v210 = vld [vmem:[%s12 + $0x1a0] sm:$0xf]
    %v211 = vld [vmem:[%s12 + $0x1a4] sm:$0xf]
    %v212 = vld [vmem:[%s12 + $0x1a8] sm:$0xf]
    %v213 = vld [vmem:[%s12 + $0x1ac] sm:$0xf]
    %v214 = vld [vmem:[%s12 + $0x1b0] sm:$0xf]
    %v215 = vld [vmem:[%s12 + $0x1b4] sm:$0xf]
    %v216 = vld [vmem:[%s12 + $0x1b8] sm:$0xf]
    %v217 = vld [vmem:[%s12 + $0x1bc] sm:$0xf]
    %v218 = vld [vmem:[%s12 + $0x1c0] sm:$0xf]
    %v219 = vld [vmem:[%s12 + $0x1c4] sm:$0xf]
    %v220 = vld [vmem:[%s12 + $0x1c8] sm:$0xf]
    %v221 = vld [vmem:[%s12 + $0x1cc] sm:$0xf]
    %v222 = vld [vmem:[%s12 + $0x1d0] sm:$0xf]
    %v223 = vld [vmem:[%s12 + $0x1d4] sm:$0xf]
    %v224 = vld [vmem:[%s12 + $0x1d8] sm:$0xf]
    %v225 = vld [vmem:[%s12 + $0x1dc] sm:$0xf]
    %v226 = vld [vmem:[%s12 + $0x1e0] sm:$0xf]
    %v227 = vld [vmem:[%s12 + $0x1e4] sm:$0xf]
    %v228 = vld [vmem:[%s12 + $0x1e8] sm:$0xf]
    %v229 = vld [vmem:[%s12 + $0x1ec] sm:$0xf]
    %v230 = vld [vmem:[%s12 + $0x1f0] sm:$0xf]
    %v231 = vld [vmem:[%s12 + $0x1f4] sm:$0xf]
    %v232 = vld [vmem:[%s12 + $0x1f8] sm:$0xf]
    %v233 = vld [vmem:[%s12 + $0x1fc] sm:$0xf]
    %v234 = vld [vmem:[%s0] sm:$0xf]
    %v235 = vld [vmem:[%s0 + $0x4] sm:$0xf]
    %v236 = vld [vmem:[%s0 + $0x8] sm:$0xf]
    %v237 = vld [vmem:[%s0 + $0xc] sm:$0xf]
    %v238 = vld [vmem:[%s5] sm:$0xff]
    %v239 = vld [vmem:[%s5 + $0x8] sm:$0xff]
    %v240 = vld [vmem:[%s5 + $0x10] sm:$0xff]
    %v241 = vld [vmem:[%s5 + $0x18] sm:$0xff]
    %v242 = vld [vmem:[%s5 + $0x20] sm:$0xf]
    %v243 = vld [vmem:[%s5 + $0x24] sm:$0xff]
    %v244 = vld [vmem:[%s5 + $0x2c] sm:$0xff]
    %v245 = vld [vmem:[%s5 + $0x34] sm:$0xff]
    %v246 = vld [vmem:[%s5 + $0x3c] sm:$0xff]
    %v247 = vld [vmem:[%s5 + $0x44] sm:$0xf]
    %v248 = vld [vmem:[%s5 + $0x48] sm:$0xff]
    %v249 = vld [vmem:[%s5 + $0x50] sm:$0xff]
    %v250 = vld [vmem:[%s5 + $0x58] sm:$0xff]
    %v251 = vld [vmem:[%s5 + $0x60] sm:$0xff]
    %v252 = vld [vmem:[%s5 + $0x68] sm:$0xf]
    %v253 = vld [vmem:[%s5 + $0x6c] sm:$0xff]
    %v254 = vld [vmem:[%s5 + $0x74] sm:$0xff]
    %v255 = vld [vmem:[%s5 + $0x7c] sm:$0xff]
    %v256 = vld [vmem:[%s5 + $0x84] sm:$0xff]
    %v257 = vld [vmem:[%s5 + $0x8c] sm:$0xf]
    %v258 = vld [vmem:[%s5 + $0x90] sm:$0xff]
    %v259 = vld [vmem:[%s5 + $0x98] sm:$0xff]
    %v260 = vld [vmem:[%s5 + $0xa0] sm:$0xff]
    %v261 = vld [vmem:[%s5 + $0xa8] sm:$0xff]
    %v262 = vld [vmem:[%s5 + $0xb0] sm:$0xf]
    %v263 = vld [vmem:[%s5 + $0xb4] sm:$0xff]
    %v264 = vld [vmem:[%s5 + $0xbc] sm:$0xff]
    %v265 = vld [vmem:[%s5 + $0xc4] sm:$0xff]
    %v266 = vld [vmem:[%s5 + $0xcc] sm:$0xff]
    %v267 = vld [vmem:[%s5 + $0xd4] sm:$0xf]
    %v268 = vld [vmem:[%s5 + $0xd8] sm:$0xff]
    %v269 = vld [vmem:[%s5 + $0xe0] sm:$0xff]
    %v270 = vld [vmem:[%s5 + $0xe8] sm:$0xff]
    %v271 = vld [vmem:[%s5 + $0xf0] sm:$0xff]
    %v272 = vld [vmem:[%s5 + $0xf8] sm:$0xf]
    %v273 = vld [vmem:[%s5 + $0xfc] sm:$0xff]
    %v274 = vld [vmem:[%s5 + $0x104] sm:$0xff]
    %v275 = vld [vmem:[%s5 + $0x10c] sm:$0xff]
    %v276 = vld [vmem:[%s5 + $0x114] sm:$0xff]
    %v277 = vld [vmem:[%s5 + $0x11c] sm:$0xf]
    %v278 = vld [vmem:[%s6] sm:$0xf]
    %v279 = vld [vmem:[%s6 + $0x4] sm:$0xf]
    %v280 = vld [vmem:[%s6 + $0x8] sm:$0xf]
    %v281 = vld [vmem:[%s6 + $0xc] sm:$0xf]
    %v282 = vld [vmem:[%s6 + $0x10] sm:$0xf]
    %v283 = vld [vmem:[%s6 + $0x14] sm:$0xf]
    %v284 = vld [vmem:[%s6 + $0x18] sm:$0xf]
    %v285 = vld [vmem:[%s6 + $0x1c] sm:$0xf]
    %v286 = vld [vmem:[%s7] sm:$0x1]
    %v291 = vunpack.c.l.b16 %v234
    %v292 = vunpack.c.l.b16 %v235
    %v293 = vunpack.c.l.b16 %v236
    %v294 = vunpack.c.l.b16 %v237
    %v295 = vpack.c.b16 %v292, %v291
    %v296 = vpack.c.b16 %v294, %v293
    %v337 = vunpack.c.l.b16 %v238
    %v338 = vunpack.c.h.b16 %v238
    %v339 = vunpack.c.l.b16 %v239
    %v340 = vunpack.c.h.b16 %v239
    %v341 = vunpack.c.l.b16 %v240
    %v342 = vunpack.c.h.b16 %v240
    %v343 = vunpack.c.l.b16 %v241
    %v344 = vunpack.c.h.b16 %v241
    %v345 = vunpack.c.l.b16 %v242
    %v346 = vunpack.c.l.b16 %v243
    %v347 = vunpack.c.h.b16 %v243
    %v348 = vunpack.c.l.b16 %v244
    %v349 = vunpack.c.h.b16 %v244
    %v350 = vunpack.c.l.b16 %v245
    %v351 = vunpack.c.h.b16 %v245
    %v352 = vunpack.c.l.b16 %v246
    %v353 = vunpack.c.h.b16 %v246
    %v354 = vunpack.c.l.b16 %v247
    %v355 = vunpack.c.l.b16 %v248
    %v356 = vunpack.c.h.b16 %v248
    %v357 = vunpack.c.l.b16 %v249
    %v358 = vunpack.c.h.b16 %v249
    %v359 = vunpack.c.l.b16 %v250
    %v360 = vunpack.c.h.b16 %v250
    %v361 = vunpack.c.l.b16 %v251
    %v362 = vunpack.c.h.b16 %v251
    %v363 = vunpack.c.l.b16 %v252
    %v364 = vunpack.c.l.b16 %v253
    %v365 = vunpack.c.h.b16 %v253
    %v366 = vunpack.c.l.b16 %v254
    %v367 = vunpack.c.h.b16 %v254
    %v368 = vunpack.c.l.b16 %v255
    %v369 = vunpack.c.h.b16 %v255
    %v370 = vunpack.c.l.b16 %v256
    %v371 = vunpack.c.h.b16 %v256
    %v372 = vunpack.c.l.b16 %v257
    %v373 = vunpack.c.l.b16 %v258
    %v374 = vunpack.c.h.b16 %v258
    %v375 = vunpack.c.l.b16 %v259
    %v376 = vunpack.c.h.b16 %v259
    %v377 = vunpack.c.l.b16 %v260
    %v378 = vunpack.c.h.b16 %v260
    %v379 = vunpack.c.l.b16 %v261
    %v380 = vunpack.c.h.b16 %v261
    %v381 = vunpack.c.l.b16 %v262
    %v382 = vunpack.c.l.b16 %v263
    %v383 = vunpack.c.h.b16 %v263
    %v384 = vunpack.c.l.b16 %v264
    %v385 = vunpack.c.h.b16 %v264
    %v386 = vunpack.c.l.b16 %v265
    %v387 = vunpack.c.h.b16 %v265
    %v388 = vunpack.c.l.b16 %v266
    %v389 = vunpack.c.h.b16 %v266
    %v390 = vunpack.c.l.b16 %v267
    %v391 = vunpack.c.l.b16 %v268
    %v392 = vunpack.c.h.b16 %v268
    %v393 = vunpack.c.l.b16 %v269
    %v394 = vunpack.c.h.b16 %v269
    %v395 = vunpack.c.l.b16 %v270
    %v396 = vunpack.c.h.b16 %v270
    %v397 = vunpack.c.l.b16 %v271
    %v398 = vunpack.c.h.b16 %v271
    %v399 = vunpack.c.l.b16 %v272
    %v400 = vunpack.c.l.b16 %v273
    %v401 = vunpack.c.h.b16 %v273
    %v402 = vunpack.c.l.b16 %v274
    %v403 = vunpack.c.h.b16 %v274
    %v404 = vunpack.c.l.b16 %v275
    %v405 = vunpack.c.h.b16 %v275
    %v406 = vunpack.c.l.b16 %v276
    %v407 = vunpack.c.h.b16 %v276
    %v408 = vunpack.c.l.b16 %v277
    %v409 = vpack.c.b16 %v346, %v337
    %v410 = vpack.c.b16 %v347, %v338
    %v411 = vpack.c.b16 %v348, %v339
    %v412 = vpack.c.b16 %v349, %v340
    %v413 = vpack.c.b16 %v350, %v341
    %v414 = vpack.c.b16 %v351, %v342
    %v415 = vpack.c.b16 %v352, %v343
    %v416 = vpack.c.b16 %v353, %v344
    %v417 = vpack.c.b16 %v354, %v345
    %v418 = vpack.c.b16 %v364, %v355
    %v419 = vpack.c.b16 %v365, %v356
    %v420 = vpack.c.b16 %v366, %v357
    %v421 = vpack.c.b16 %v367, %v358
    %v422 = vpack.c.b16 %v368, %v359
    %v423 = vpack.c.b16 %v369, %v360
    %v424 = vpack.c.b16 %v370, %v361
    %v425 = vpack.c.b16 %v371, %v362
    %v426 = vpack.c.b16 %v372, %v363
    %v427 = vpack.c.b16 %v382, %v373
    %v428 = vpack.c.b16 %v383, %v374
    %v429 = vpack.c.b16 %v384, %v375
    %v430 = vpack.c.b16 %v385, %v376
    %v431 = vpack.c.b16 %v386, %v377
    %v432 = vpack.c.b16 %v387, %v378
    %v433 = vpack.c.b16 %v388, %v379
    %v434 = vpack.c.b16 %v389, %v380
    %v435 = vpack.c.b16 %v390, %v381
    %v436 = vpack.c.b16 %v400, %v391
    %v437 = vpack.c.b16 %v401, %v392
    %v438 = vpack.c.b16 %v402, %v393
    %v439 = vpack.c.b16 %v403, %v394
    %v440 = vpack.c.b16 %v404, %v395
    %v441 = vpack.c.b16 %v405, %v396
    %v442 = vpack.c.b16 %v406, %v397
    %v443 = vpack.c.b16 %v407, %v398
    %v444 = vpack.c.b16 %v408, %v399
    %vm481 = vcmask 523264
    %v483 = vsel %vm481, %v295, 0
    %v486 = vsel %vm481, %v296, 0
    %488 = vmatpush.bf16.msra.mxu0 0
    %489 = vmatpush.bf16.msra.mxu0 0
    %490 = vmatpush.bf16.msra.mxu0 0
    %491 = vmatpush.bf16.msra.mxu0 0
    %492 = vmatpush.bf16.msra.mxu0 %v436
    %493 = vmatpush.bf16.msra.mxu0 %v427
    %494 = vmatpush.bf16.msra.mxu0 %v418
    %495 = vmatpush.bf16.msra.mxu0 %v409
    %496 = vmatmul.bf16.gmra.mxu0 %v483
    %v497 = vpop.f32.mrf.mxu0
    %v498 = vadd.f32 0.0, %v497
    %v499 = vpop.f32.mrf.mxu0
    %v500 = vadd.f32 0.0, %v499
    %501 = vmatmul.bf16.gmra.mxu0 %v486
    %v502 = vpop.f32.mrf.mxu0
    %v503 = vadd.f32 0.0, %v502
    %v504 = vpop.f32.mrf.mxu0
    %v505 = vadd.f32 0.0, %v504
    %506 = vdwg.mxu0
    %507 = vmatpush.bf16.msra.mxu0 0
    %508 = vmatpush.bf16.msra.mxu0 0
    %509 = vmatpush.bf16.msra.mxu0 0
    %510 = vmatpush.bf16.msra.mxu0 0
    %511 = vmatpush.bf16.msra.mxu0 %v437
    %512 = vmatpush.bf16.msra.mxu0 %v428
    %513 = vmatpush.bf16.msra.mxu0 %v419
    %514 = vmatpush.bf16.msra.mxu0 %v410
    %515 = vmatmul.bf16.gmra.mxu0 %v483
    %v516 = vpop.f32.mrf.mxu0
    %v517 = vadd.f32 0.0, %v516
    %v518 = vpop.f32.mrf.mxu0
    %v519 = vadd.f32 0.0, %v518
    %520 = vmatmul.bf16.gmra.mxu0 %v486
    %v521 = vpop.f32.mrf.mxu0
    %v522 = vadd.f32 0.0, %v521
    %v523 = vpop.f32.mrf.mxu0
    %v524 = vadd.f32 0.0, %v523
    %525 = vdwg.mxu0
    %526 = vmatpush.bf16.msra.mxu0 0
    %527 = vmatpush.bf16.msra.mxu0 0
    %528 = vmatpush.bf16.msra.mxu0 0
    %529 = vmatpush.bf16.msra.mxu0 0
    %530 = vmatpush.bf16.msra.mxu0 %v438
    %531 = vmatpush.bf16.msra.mxu0 %v429
    %532 = vmatpush.bf16.msra.mxu0 %v420
    %533 = vmatpush.bf16.msra.mxu0 %v411
    %534 = vmatmul.bf16.gmra.mxu0 %v483
    %v535 = vpop.f32.mrf.mxu0
    %v536 = vadd.f32 0.0, %v535
    %v537 = vpop.f32.mrf.mxu0
    %v538 = vadd.f32 0.0, %v537
    %539 = vmatmul.bf16.gmra.mxu0 %v486
    %v540 = vpop.f32.mrf.mxu0
    %v541 = vadd.f32 0.0, %v540
    %v542 = vpop.f32.mrf.mxu0
    %v543 = vadd.f32 0.0, %v542
    %544 = vdwg.mxu0
    %545 = vmatpush.bf16.msra.mxu0 0
    %546 = vmatpush.bf16.msra.mxu0 0
    %547 = vmatpush.bf16.msra.mxu0 0
    %548 = vmatpush.bf16.msra.mxu0 0
    %549 = vmatpush.bf16.msra.mxu0 %v439
    %550 = vmatpush.bf16.msra.mxu0 %v430
    %551 = vmatpush.bf16.msra.mxu0 %v421
    %552 = vmatpush.bf16.msra.mxu0 %v412
    %553 = vmatmul.bf16.gmra.mxu0 %v483
    %v554 = vpop.f32.mrf.mxu0
    %v555 = vadd.f32 0.0, %v554
    %v556 = vpop.f32.mrf.mxu0
    %v557 = vadd.f32 0.0, %v556
    %558 = vmatmul.bf16.gmra.mxu0 %v486
    %v559 = vpop.f32.mrf.mxu0
    %v560 = vadd.f32 0.0, %v559
    %v561 = vpop.f32.mrf.mxu0
    %v562 = vadd.f32 0.0, %v561
    %563 = vdwg.mxu0
    %564 = vmatpush.bf16.msra.mxu0 0
    %565 = vmatpush.bf16.msra.mxu0 0
    %566 = vmatpush.bf16.msra.mxu0 0
    %567 = vmatpush.bf16.msra.mxu0 0
    %568 = vmatpush.bf16.msra.mxu0 %v440
    %569 = vmatpush.bf16.msra.mxu0 %v431
    %570 = vmatpush.bf16.msra.mxu0 %v422
    %571 = vmatpush.bf16.msra.mxu0 %v413
    %572 = vmatmul.bf16.gmra.mxu0 %v483
    %v573 = vpop.f32.mrf.mxu0
    %v574 = vadd.f32 0.0, %v573
    %v575 = vpop.f32.mrf.mxu0
    %v576 = vadd.f32 0.0, %v575
    %577 = vmatmul.bf16.gmra.mxu0 %v486
    %v578 = vpop.f32.mrf.mxu0
    %v579 = vadd.f32 0.0, %v578
    %v580 = vpop.f32.mrf.mxu0
    %v581 = vadd.f32 0.0, %v580
    %582 = vdwg.mxu0
    %583 = vmatpush.bf16.msra.mxu0 0
    %584 = vmatpush.bf16.msra.mxu0 0
    %585 = vmatpush.bf16.msra.mxu0 0
    %586 = vmatpush.bf16.msra.mxu0 0
    %587 = vmatpush.bf16.msra.mxu0 %v441
    %588 = vmatpush.bf16.msra.mxu0 %v432
    %589 = vmatpush.bf16.msra.mxu0 %v423
    %590 = vmatpush.bf16.msra.mxu0 %v414
    %591 = vmatmul.bf16.gmra.mxu0 %v483
    %v592 = vpop.f32.mrf.mxu0
    %v593 = vadd.f32 0.0, %v592
    %v594 = vpop.f32.mrf.mxu0
    %v595 = vadd.f32 0.0, %v594
    %596 = vmatmul.bf16.gmra.mxu0 %v486
    %v597 = vpop.f32.mrf.mxu0
    %v598 = vadd.f32 0.0, %v597
    %v599 = vpop.f32.mrf.mxu0
    %v600 = vadd.f32 0.0, %v599
    %601 = vdwg.mxu0
    %602 = vmatpush.bf16.msra.mxu0 0
    %603 = vmatpush.bf16.msra.mxu0 0
    %604 = vmatpush.bf16.msra.mxu0 0
    %605 = vmatpush.bf16.msra.mxu0 0
    %606 = vmatpush.bf16.msra.mxu0 %v442
    %607 = vmatpush.bf16.msra.mxu0 %v433
    %608 = vmatpush.bf16.msra.mxu0 %v424
    %609 = vmatpush.bf16.msra.mxu0 %v415
    %610 = vmatmul.bf16.gmra.mxu0 %v483
    %v611 = vpop.f32.mrf.mxu0
    %v612 = vadd.f32 0.0, %v611
    %v613 = vpop.f32.mrf.mxu0
    %v614 = vadd.f32 0.0, %v613
    %615 = vmatmul.bf16.gmra.mxu0 %v486
    %v616 = vpop.f32.mrf.mxu0
    %v617 = vadd.f32 0.0, %v616
    %v618 = vpop.f32.mrf.mxu0
    %v619 = vadd.f32 0.0, %v618
    %620 = vdwg.mxu0
    %621 = vmatpush.bf16.msra.mxu0 0
    %622 = vmatpush.bf16.msra.mxu0 0
    %623 = vmatpush.bf16.msra.mxu0 0
    %624 = vmatpush.bf16.msra.mxu0 0
    %625 = vmatpush.bf16.msra.mxu0 %v443
    %626 = vmatpush.bf16.msra.mxu0 %v434
    %627 = vmatpush.bf16.msra.mxu0 %v425
    %628 = vmatpush.bf16.msra.mxu0 %v416
    %629 = vmatmul.bf16.gmra.mxu0 %v483
    %v630 = vpop.f32.mrf.mxu0
    %v631 = vadd.f32 0.0, %v630
    %v632 = vpop.f32.mrf.mxu0
    %v633 = vadd.f32 0.0, %v632
    %634 = vmatmul.bf16.gmra.mxu0 %v486
    %v635 = vpop.f32.mrf.mxu0
    %v636 = vadd.f32 0.0, %v635
    %v637 = vpop.f32.mrf.mxu0
    %v638 = vadd.f32 0.0, %v637
    %639 = vdwg.mxu0
    %640 = vmatpush.bf16.msra.mxu0 0
    %641 = vmatpush.bf16.msra.mxu0 0
    %642 = vmatpush.bf16.msra.mxu0 0
    %643 = vmatpush.bf16.msra.mxu0 0
    %644 = vmatpush.bf16.msra.mxu0 %v444
    %645 = vmatpush.bf16.msra.mxu0 %v435
    %646 = vmatpush.bf16.msra.mxu0 %v426
    %647 = vmatpush.bf16.msra.mxu0 %v417
    %648 = vmatmul.bf16.gmra.mxu0 %v483
    %v649 = vpop.f32.mrf.mxu0
    %v650 = vadd.f32 0.0, %v649
    %v651 = vpop.f32.mrf.mxu0
    %v652 = vadd.f32 0.0, %v651
    %653 = vmatmul.bf16.gmra.mxu0 %v486
    %v654 = vpop.f32.mrf.mxu0
    %v655 = vadd.f32 0.0, %v654
    %v656 = vpop.f32.mrf.mxu0
    %v657 = vadd.f32 0.0, %v656
    %658 = vdwg.mxu0
    %v675 = vunpack.c.l.b16 %v82
    %v676 = vunpack.c.l.b16 %v83
    %v677 = vunpack.c.l.b16 %v84
    %v678 = vunpack.c.l.b16 %v85
    %v679 = vunpack.c.l.b16 %v86
    %v680 = vunpack.c.l.b16 %v87
    %v681 = vunpack.c.l.b16 %v88
    %v682 = vunpack.c.l.b16 %v89
    %v683 = vunpack.c.l.b16 %v90
    %v684 = vunpack.c.l.b16 %v91
    %v685 = vunpack.c.l.b16 %v92
    %v686 = vunpack.c.l.b16 %v93
    %v687 = vunpack.c.l.b16 %v94
    %v688 = vunpack.c.l.b16 %v95
    %v689 = vunpack.c.l.b16 %v96
    %v690 = vunpack.c.l.b16 %v97
    %v691 = vpack.c.b16 %v676, %v675
    %v692 = vpack.c.b16 %v678, %v677
    %v693 = vpack.c.b16 %v680, %v679
    %v694 = vpack.c.b16 %v682, %v681
    %v695 = vpack.c.b16 %v684, %v683
    %v696 = vpack.c.b16 %v686, %v685
    %v697 = vpack.c.b16 %v688, %v687
    %v698 = vpack.c.b16 %v690, %v689
    %v707 = vunpack.c.l.b16 %v278
    %v708 = vunpack.c.l.b16 %v279
    %v709 = vunpack.c.l.b16 %v280
    %v710 = vunpack.c.l.b16 %v281
    %v711 = vunpack.c.l.b16 %v282
    %v712 = vunpack.c.l.b16 %v283
    %v713 = vunpack.c.l.b16 %v284
    %v714 = vunpack.c.l.b16 %v285
    %v715 = vpack.c.b16 %v708, %v707
    %v716 = vpack.c.b16 %v710, %v709
    %v717 = vpack.c.b16 %v712, %v711
    %v718 = vpack.c.b16 %v714, %v713
    %v724 = vsel %vm481, %v691, 0
    %v727 = vsel %vm481, %v692, 0
    %v730 = vsel %vm481, %v693, 0
    %v733 = vsel %vm481, %v694, 0
    %v736 = vsel %vm481, %v695, 0
    %v739 = vsel %vm481, %v696, 0
    %v742 = vsel %vm481, %v697, 0
    %v745 = vsel %vm481, %v698, 0
    %747 = vmatpush.bf16.msra.mxu0 0
    %748 = vmatpush.bf16.msra.mxu0 0
    %749 = vmatpush.bf16.msra.mxu0 0
    %750 = vmatpush.bf16.msra.mxu0 0
    %751 = vmatpush.bf16.msra.mxu0 %v718
    %752 = vmatpush.bf16.msra.mxu0 %v717
    %753 = vmatpush.bf16.msra.mxu0 %v716
    %754 = vmatpush.bf16.msra.mxu0 %v715
    %755 = vmatmul.bf16.gmra.mxu0 %v724
    %v756 = vpop.f32.mrf.mxu0
    %v757 = vadd.f32 0.0, %v756
    %v758 = vpop.f32.mrf.mxu0
    %v759 = vadd.f32 0.0, %v758
    %760 = vmatmul.bf16.gmra.mxu0 %v727
    %v761 = vpop.f32.mrf.mxu0
    %v762 = vadd.f32 0.0, %v761
    %v763 = vpop.f32.mrf.mxu0
    %v764 = vadd.f32 0.0, %v763
    %765 = vmatmul.bf16.gmra.mxu0 %v730
    %v766 = vpop.f32.mrf.mxu0
    %v767 = vadd.f32 0.0, %v766
    %v768 = vpop.f32.mrf.mxu0
    %v769 = vadd.f32 0.0, %v768
    %770 = vmatmul.bf16.gmra.mxu0 %v733
    %v771 = vpop.f32.mrf.mxu0
    %v772 = vadd.f32 0.0, %v771
    %v773 = vpop.f32.mrf.mxu0
    %v774 = vadd.f32 0.0, %v773
    %775 = vmatmul.bf16.gmra.mxu0 %v736
    %v776 = vpop.f32.mrf.mxu0
    %v777 = vadd.f32 0.0, %v776
    %v778 = vpop.f32.mrf.mxu0
    %v779 = vadd.f32 0.0, %v778
    %780 = vmatmul.bf16.gmra.mxu0 %v739
    %v781 = vpop.f32.mrf.mxu0
    %v782 = vadd.f32 0.0, %v781
    %v783 = vpop.f32.mrf.mxu0
    %v784 = vadd.f32 0.0, %v783
    %785 = vmatmul.bf16.gmra.mxu0 %v742
    %v786 = vpop.f32.mrf.mxu0
    %v787 = vadd.f32 0.0, %v786
    %v788 = vpop.f32.mrf.mxu0
    %v789 = vadd.f32 0.0, %v788
    %790 = vmatmul.bf16.gmra.mxu0 %v745
    %v791 = vpop.f32.mrf.mxu0
    %v792 = vadd.f32 0.0, %v791
    %v793 = vpop.f32.mrf.mxu0
    %v794 = vadd.f32 0.0, %v793
    %795 = vdwg.mxu0
    %v796 = vpack.c.bf16 %v500, %v498
    %v797 = vpack.c.bf16 %v519, %v517
    %v798 = vpack.c.bf16 %v538, %v536
    %v799 = vpack.c.bf16 %v557, %v555
    %v800 = vpack.c.bf16 %v576, %v574
    %v801 = vpack.c.bf16 %v595, %v593
    %v802 = vpack.c.bf16 %v614, %v612
    %v803 = vpack.c.bf16 %v633, %v631
    %v804 = vpack.c.bf16 %v652, %v650
    %v805 = vpack.c.bf16 %v505, %v503
    %v806 = vpack.c.bf16 %v524, %v522
    %v807 = vpack.c.bf16 %v543, %v541
    %v808 = vpack.c.bf16 %v562, %v560
    %v809 = vpack.c.bf16 %v581, %v579
    %v810 = vpack.c.bf16 %v600, %v598
    %v811 = vpack.c.bf16 %v619, %v617
    %v812 = vpack.c.bf16 %v638, %v636
    %v813 = vpack.c.bf16 %v657, %v655
    %v830 = vunpack.c.l.b16 %v46
    %v831 = vunpack.c.l.b16 %v47
    %v832 = vunpack.c.l.b16 %v48
    %v833 = vunpack.c.l.b16 %v49
    %v834 = vunpack.c.l.b16 %v50
    %v835 = vunpack.c.l.b16 %v51
    %v836 = vunpack.c.l.b16 %v52
    %v837 = vunpack.c.l.b16 %v53
    %v838 = vunpack.c.l.b16 %v54
    %v839 = vunpack.c.l.b16 %v55
    %v840 = vunpack.c.l.b16 %v56
    %v841 = vunpack.c.l.b16 %v57
    %v842 = vunpack.c.l.b16 %v58
    %v843 = vunpack.c.l.b16 %v59
    %v844 = vunpack.c.l.b16 %v60
    %v845 = vunpack.c.l.b16 %v61
    %v846 = vpack.c.b16 %v831, %v830
    %v847 = vpack.c.b16 %v833, %v832
    %v848 = vpack.c.b16 %v835, %v834
    %v849 = vpack.c.b16 %v837, %v836
    %v850 = vpack.c.b16 %v839, %v838
    %v851 = vpack.c.b16 %v841, %v840
    %v852 = vpack.c.b16 %v843, %v842
    %v853 = vpack.c.b16 %v845, %v844
    %vm854 = vcmask 261120
    %v856 = vsel %vm854, %v846, 0
    %v859 = vsel %vm854, %v847, 0
    %v862 = vsel %vm854, %v848, 0
    %v865 = vsel %vm854, %v849, 0
    %v868 = vsel %vm854, %v850, 0
    %v871 = vsel %vm854, %v851, 0
    %v874 = vsel %vm854, %v852, 0
    %v877 = vsel %vm854, %v853, 0
    %879 = vmatpush.bf16.msra.mxu0 0
    %880 = vmatpush.bf16.msra.mxu0 0
    %881 = vmatpush.bf16.msra.mxu0 0
    %882 = vmatpush.bf16.msra.mxu0 0
    %883 = vmatpush.bf16.msra.mxu0 0
    %884 = vmatpush.bf16.msra.mxu0 0
    %885 = vmatpush.bf16.msra.mxu0 %v805
    %886 = vmatpush.bf16.msra.mxu0 %v796
    %887 = vmatmul.bf16.gmra.mxu0 %v856
    %v888 = vpop.f32.mrf.mxu0
    %v889 = vadd.f32 0.0, %v888
    %v890 = vpop.f32.mrf.mxu0
    %v891 = vadd.f32 0.0, %v890
    %892 = vmatmul.bf16.gmra.mxu0 %v859
    %v893 = vpop.f32.mrf.mxu0
    %v894 = vadd.f32 0.0, %v893
    %v895 = vpop.f32.mrf.mxu0
    %v896 = vadd.f32 0.0, %v895
    %897 = vmatmul.bf16.gmra.mxu0 %v862
    %v898 = vpop.f32.mrf.mxu0
    %v899 = vadd.f32 0.0, %v898
    %v900 = vpop.f32.mrf.mxu0
    %v901 = vadd.f32 0.0, %v900
    %902 = vmatmul.bf16.gmra.mxu0 %v865
    %v903 = vpop.f32.mrf.mxu0
    %v904 = vadd.f32 0.0, %v903
    %v905 = vpop.f32.mrf.mxu0
    %v906 = vadd.f32 0.0, %v905
    %907 = vmatmul.bf16.gmra.mxu0 %v868
    %v908 = vpop.f32.mrf.mxu0
    %v909 = vadd.f32 0.0, %v908
    %v910 = vpop.f32.mrf.mxu0
    %v911 = vadd.f32 0.0, %v910
    %912 = vmatmul.bf16.gmra.mxu0 %v871
    %v913 = vpop.f32.mrf.mxu0
    %v914 = vadd.f32 0.0, %v913
    %v915 = vpop.f32.mrf.mxu0
    %v916 = vadd.f32 0.0, %v915
    %917 = vmatmul.bf16.gmra.mxu0 %v874
    %v918 = vpop.f32.mrf.mxu0
    %v919 = vadd.f32 0.0, %v918
    %v920 = vpop.f32.mrf.mxu0
    %v921 = vadd.f32 0.0, %v920
    %922 = vmatmul.bf16.gmra.mxu0 %v877
    %v923 = vpop.f32.mrf.mxu0
    %v924 = vadd.f32 0.0, %v923
    %v925 = vpop.f32.mrf.mxu0
    %v926 = vadd.f32 0.0, %v925
    %927 = vdwg.mxu0
    %928 = vmatpush.bf16.msra.mxu0 0
    %929 = vmatpush.bf16.msra.mxu0 0
    %930 = vmatpush.bf16.msra.mxu0 0
    %931 = vmatpush.bf16.msra.mxu0 0
    %932 = vmatpush.bf16.msra.mxu0 0
    %933 = vmatpush.bf16.msra.mxu0 0
    %934 = vmatpush.bf16.msra.mxu0 %v806
    %935 = vmatpush.bf16.msra.mxu0 %v797
    %936 = vmatmul.bf16.gmra.mxu0 %v856
    %v937 = vpop.f32.mrf.mxu0
    %v938 = vadd.f32 0.0, %v937
    %v939 = vpop.f32.mrf.mxu0
    %v940 = vadd.f32 0.0, %v939
    %941 = vmatmul.bf16.gmra.mxu0 %v859
    %v942 = vpop.f32.mrf.mxu0
    %v943 = vadd.f32 0.0, %v942
    %v944 = vpop.f32.mrf.mxu0
    %v945 = vadd.f32 0.0, %v944
    %946 = vmatmul.bf16.gmra.mxu0 %v862
    %v947 = vpop.f32.mrf.mxu0
    %v948 = vadd.f32 0.0, %v947
    %v949 = vpop.f32.mrf.mxu0
    %v950 = vadd.f32 0.0, %v949
    %951 = vmatmul.bf16.gmra.mxu0 %v865
    %v952 = vpop.f32.mrf.mxu0
    %v953 = vadd.f32 0.0, %v952
    %v954 = vpop.f32.mrf.mxu0
    %v955 = vadd.f32 0.0, %v954
    %956 = vmatmul.bf16.gmra.mxu0 %v868
    %v957 = vpop.f32.mrf.mxu0
    %v958 = vadd.f32 0.0, %v957
    %v959 = vpop.f32.mrf.mxu0
    %v960 = vadd.f32 0.0, %v959
    %961 = vmatmul.bf16.gmra.mxu0 %v871
    %v962 = vpop.f32.mrf.mxu0
    %v963 = vadd.f32 0.0, %v962
    %v964 = vpop.f32.mrf.mxu0
    %v965 = vadd.f32 0.0, %v964
    %966 = vmatmul.bf16.gmra.mxu0 %v874
    %v967 = vpop.f32.mrf.mxu0
    %v968 = vadd.f32 0.0, %v967
    %v969 = vpop.f32.mrf.mxu0
    %v970 = vadd.f32 0.0, %v969
    %971 = vmatmul.bf16.gmra.mxu0 %v877
    %v972 = vpop.f32.mrf.mxu0
    %v973 = vadd.f32 0.0, %v972
    %v974 = vpop.f32.mrf.mxu0
    %v975 = vadd.f32 0.0, %v974
    %976 = vdwg.mxu0
    %977 = vmatpush.bf16.msra.mxu0 0
    %978 = vmatpush.bf16.msra.mxu0 0
    %979 = vmatpush.bf16.msra.mxu0 0
    %980 = vmatpush.bf16.msra.mxu0 0
    %981 = vmatpush.bf16.msra.mxu0 0
    %982 = vmatpush.bf16.msra.mxu0 0
    %983 = vmatpush.bf16.msra.mxu0 %v807
    %984 = vmatpush.bf16.msra.mxu0 %v798
    %985 = vmatmul.bf16.gmra.mxu0 %v856
    %v986 = vpop.f32.mrf.mxu0
    %v987 = vadd.f32 0.0, %v986
    %v988 = vpop.f32.mrf.mxu0
    %v989 = vadd.f32 0.0, %v988
    %990 = vmatmul.bf16.gmra.mxu0 %v859
    %v991 = vpop.f32.mrf.mxu0
    %v992 = vadd.f32 0.0, %v991
    %v993 = vpop.f32.mrf.mxu0
    %v994 = vadd.f32 0.0, %v993
    %995 = vmatmul.bf16.gmra.mxu0 %v862
    %v996 = vpop.f32.mrf.mxu0
    %v997 = vadd.f32 0.0, %v996
    %v998 = vpop.f32.mrf.mxu0
    %v999 = vadd.f32 0.0, %v998
    %1000 = vmatmul.bf16.gmra.mxu0 %v865
    %v1001 = vpop.f32.mrf.mxu0
    %v1002 = vadd.f32 0.0, %v1001
    %v1003 = vpop.f32.mrf.mxu0
    %v1004 = vadd.f32 0.0, %v1003
    %1005 = vmatmul.bf16.gmra.mxu0 %v868
    %v1006 = vpop.f32.mrf.mxu0
    %v1007 = vadd.f32 0.0, %v1006
    %v1008 = vpop.f32.mrf.mxu0
    %v1009 = vadd.f32 0.0, %v1008
    %1010 = vmatmul.bf16.gmra.mxu0 %v871
    %v1011 = vpop.f32.mrf.mxu0
    %v1012 = vadd.f32 0.0, %v1011
    %v1013 = vpop.f32.mrf.mxu0
    %v1014 = vadd.f32 0.0, %v1013
    %1015 = vmatmul.bf16.gmra.mxu0 %v874
    %v1016 = vpop.f32.mrf.mxu0
    %v1017 = vadd.f32 0.0, %v1016
    %v1018 = vpop.f32.mrf.mxu0
    %v1019 = vadd.f32 0.0, %v1018
    %1020 = vmatmul.bf16.gmra.mxu0 %v877
    %v1021 = vpop.f32.mrf.mxu0
    %v1022 = vadd.f32 0.0, %v1021
    %v1023 = vpop.f32.mrf.mxu0
    %v1024 = vadd.f32 0.0, %v1023
    %1025 = vdwg.mxu0
    %1026 = vmatpush.bf16.msra.mxu0 0
    %1027 = vmatpush.bf16.msra.mxu0 0
    %1028 = vmatpush.bf16.msra.mxu0 0
    %1029 = vmatpush.bf16.msra.mxu0 0
    %1030 = vmatpush.bf16.msra.mxu0 0
    %1031 = vmatpush.bf16.msra.mxu0 0
    %1032 = vmatpush.bf16.msra.mxu0 %v808
    %1033 = vmatpush.bf16.msra.mxu0 %v799
    %1034 = vmatmul.bf16.gmra.mxu0 %v856
    %v1035 = vpop.f32.mrf.mxu0
    %v1036 = vadd.f32 0.0, %v1035
    %v1037 = vpop.f32.mrf.mxu0
    %v1038 = vadd.f32 0.0, %v1037
    %1039 = vmatmul.bf16.gmra.mxu0 %v859
    %v1040 = vpop.f32.mrf.mxu0
    %v1041 = vadd.f32 0.0, %v1040
    %v1042 = vpop.f32.mrf.mxu0
    %v1043 = vadd.f32 0.0, %v1042
    %1044 = vmatmul.bf16.gmra.mxu0 %v862
    %v1045 = vpop.f32.mrf.mxu0
    %v1046 = vadd.f32 0.0, %v1045
    %v1047 = vpop.f32.mrf.mxu0
    %v1048 = vadd.f32 0.0, %v1047
    %1049 = vmatmul.bf16.gmra.mxu0 %v865
    %v1050 = vpop.f32.mrf.mxu0
    %v1051 = vadd.f32 0.0, %v1050
    %v1052 = vpop.f32.mrf.mxu0
    %v1053 = vadd.f32 0.0, %v1052
    %1054 = vmatmul.bf16.gmra.mxu0 %v868
    %v1055 = vpop.f32.mrf.mxu0
    %v1056 = vadd.f32 0.0, %v1055
    %v1057 = vpop.f32.mrf.mxu0
    %v1058 = vadd.f32 0.0, %v1057
    %1059 = vmatmul.bf16.gmra.mxu0 %v871
    %v1060 = vpop.f32.mrf.mxu0
    %v1061 = vadd.f32 0.0, %v1060
    %v1062 = vpop.f32.mrf.mxu0
    %v1063 = vadd.f32 0.0, %v1062
    %1064 = vmatmul.bf16.gmra.mxu0 %v874
    %v1065 = vpop.f32.mrf.mxu0
    %v1066 = vadd.f32 0.0, %v1065
    %v1067 = vpop.f32.mrf.mxu0
    %v1068 = vadd.f32 0.0, %v1067
    %1069 = vmatmul.bf16.gmra.mxu0 %v877
    %v1070 = vpop.f32.mrf.mxu0
    %v1071 = vadd.f32 0.0, %v1070
    %v1072 = vpop.f32.mrf.mxu0
    %v1073 = vadd.f32 0.0, %v1072
    %1074 = vdwg.mxu0
    %1075 = vmatpush.bf16.msra.mxu0 0
    %1076 = vmatpush.bf16.msra.mxu0 0
    %1077 = vmatpush.bf16.msra.mxu0 0
    %1078 = vmatpush.bf16.msra.mxu0 0
    %1079 = vmatpush.bf16.msra.mxu0 0
    %1080 = vmatpush.bf16.msra.mxu0 0
    %1081 = vmatpush.bf16.msra.mxu0 %v809
    %1082 = vmatpush.bf16.msra.mxu0 %v800
    %1083 = vmatmul.bf16.gmra.mxu0 %v856
    %v1084 = vpop.f32.mrf.mxu0
    %v1085 = vadd.f32 0.0, %v1084
    %v1086 = vpop.f32.mrf.mxu0
    %v1087 = vadd.f32 0.0, %v1086
    %1088 = vmatmul.bf16.gmra.mxu0 %v859
    %v1089 = vpop.f32.mrf.mxu0
    %v1090 = vadd.f32 0.0, %v1089
    %v1091 = vpop.f32.mrf.mxu0
    %v1092 = vadd.f32 0.0, %v1091
    %1093 = vmatmul.bf16.gmra.mxu0 %v862
    %v1094 = vpop.f32.mrf.mxu0
    %v1095 = vadd.f32 0.0, %v1094
    %v1096 = vpop.f32.mrf.mxu0
    %v1097 = vadd.f32 0.0, %v1096
    %1098 = vmatmul.bf16.gmra.mxu0 %v865
    %v1099 = vpop.f32.mrf.mxu0
    %v1100 = vadd.f32 0.0, %v1099
    %v1101 = vpop.f32.mrf.mxu0
    %v1102 = vadd.f32 0.0, %v1101
    %1103 = vmatmul.bf16.gmra.mxu0 %v868
    %v1104 = vpop.f32.mrf.mxu0
    %v1105 = vadd.f32 0.0, %v1104
    %v1106 = vpop.f32.mrf.mxu0
    %v1107 = vadd.f32 0.0, %v1106
    %1108 = vmatmul.bf16.gmra.mxu0 %v871
    %v1109 = vpop.f32.mrf.mxu0
    %v1110 = vadd.f32 0.0, %v1109
    %v1111 = vpop.f32.mrf.mxu0
    %v1112 = vadd.f32 0.0, %v1111
    %1113 = vmatmul.bf16.gmra.mxu0 %v874
    %v1114 = vpop.f32.mrf.mxu0
    %v1115 = vadd.f32 0.0, %v1114
    %v1116 = vpop.f32.mrf.mxu0
    %v1117 = vadd.f32 0.0, %v1116
    %1118 = vmatmul.bf16.gmra.mxu0 %v877
    %v1119 = vpop.f32.mrf.mxu0
    %v1120 = vadd.f32 0.0, %v1119
    %v1121 = vpop.f32.mrf.mxu0
    %v1122 = vadd.f32 0.0, %v1121
    %1123 = vdwg.mxu0
    %1124 = vmatpush.bf16.msra.mxu0 0
    %1125 = vmatpush.bf16.msra.mxu0 0
    %1126 = vmatpush.bf16.msra.mxu0 0
    %1127 = vmatpush.bf16.msra.mxu0 0
    %1128 = vmatpush.bf16.msra.mxu0 0
    %1129 = vmatpush.bf16.msra.mxu0 0
    %1130 = vmatpush.bf16.msra.mxu0 %v810
    %1131 = vmatpush.bf16.msra.mxu0 %v801
    %1132 = vmatmul.bf16.gmra.mxu0 %v856
    %v1133 = vpop.f32.mrf.mxu0
    %v1134 = vadd.f32 0.0, %v1133
    %v1135 = vpop.f32.mrf.mxu0
    %v1136 = vadd.f32 0.0, %v1135
    %1137 = vmatmul.bf16.gmra.mxu0 %v859
    %v1138 = vpop.f32.mrf.mxu0
    %v1139 = vadd.f32 0.0, %v1138
    %v1140 = vpop.f32.mrf.mxu0
    %v1141 = vadd.f32 0.0, %v1140
    %1142 = vmatmul.bf16.gmra.mxu0 %v862
    %v1143 = vpop.f32.mrf.mxu0
    %v1144 = vadd.f32 0.0, %v1143
    %v1145 = vpop.f32.mrf.mxu0
    %v1146 = vadd.f32 0.0, %v1145
    %1147 = vmatmul.bf16.gmra.mxu0 %v865
    %v1148 = vpop.f32.mrf.mxu0
    %v1149 = vadd.f32 0.0, %v1148
    %v1150 = vpop.f32.mrf.mxu0
    %v1151 = vadd.f32 0.0, %v1150
    %1152 = vmatmul.bf16.gmra.mxu0 %v868
    %v1153 = vpop.f32.mrf.mxu0
    %v1154 = vadd.f32 0.0, %v1153
    %v1155 = vpop.f32.mrf.mxu0
    %v1156 = vadd.f32 0.0, %v1155
    %1157 = vmatmul.bf16.gmra.mxu0 %v871
    %v1158 = vpop.f32.mrf.mxu0
    %v1159 = vadd.f32 0.0, %v1158
    %v1160 = vpop.f32.mrf.mxu0
    %v1161 = vadd.f32 0.0, %v1160
    %1162 = vmatmul.bf16.gmra.mxu0 %v874
    %v1163 = vpop.f32.mrf.mxu0
    %v1164 = vadd.f32 0.0, %v1163
    %v1165 = vpop.f32.mrf.mxu0
    %v1166 = vadd.f32 0.0, %v1165
    %1167 = vmatmul.bf16.gmra.mxu0 %v877
    %v1168 = vpop.f32.mrf.mxu0
    %v1169 = vadd.f32 0.0, %v1168
    %v1170 = vpop.f32.mrf.mxu0
    %v1171 = vadd.f32 0.0, %v1170
    %1172 = vdwg.mxu0
    %1173 = vmatpush.bf16.msra.mxu0 0
    %1174 = vmatpush.bf16.msra.mxu0 0
    %1175 = vmatpush.bf16.msra.mxu0 0
    %1176 = vmatpush.bf16.msra.mxu0 0
    %1177 = vmatpush.bf16.msra.mxu0 0
    %1178 = vmatpush.bf16.msra.mxu0 0
    %1179 = vmatpush.bf16.msra.mxu0 %v811
    %1180 = vmatpush.bf16.msra.mxu0 %v802
    %1181 = vmatmul.bf16.gmra.mxu0 %v856
    %v1182 = vpop.f32.mrf.mxu0
    %v1183 = vadd.f32 0.0, %v1182
    %v1184 = vpop.f32.mrf.mxu0
    %v1185 = vadd.f32 0.0, %v1184
    %1186 = vmatmul.bf16.gmra.mxu0 %v859
    %v1187 = vpop.f32.mrf.mxu0
    %v1188 = vadd.f32 0.0, %v1187
    %v1189 = vpop.f32.mrf.mxu0
    %v1190 = vadd.f32 0.0, %v1189
    %1191 = vmatmul.bf16.gmra.mxu0 %v862
    %v1192 = vpop.f32.mrf.mxu0
    %v1193 = vadd.f32 0.0, %v1192
    %v1194 = vpop.f32.mrf.mxu0
    %v1195 = vadd.f32 0.0, %v1194
    %1196 = vmatmul.bf16.gmra.mxu0 %v865
    %v1197 = vpop.f32.mrf.mxu0
    %v1198 = vadd.f32 0.0, %v1197
    %v1199 = vpop.f32.mrf.mxu0
    %v1200 = vadd.f32 0.0, %v1199
    %1201 = vmatmul.bf16.gmra.mxu0 %v868
    %v1202 = vpop.f32.mrf.mxu0
    %v1203 = vadd.f32 0.0, %v1202
    %v1204 = vpop.f32.mrf.mxu0
    %v1205 = vadd.f32 0.0, %v1204
    %1206 = vmatmul.bf16.gmra.mxu0 %v871
    %v1207 = vpop.f32.mrf.mxu0
    %v1208 = vadd.f32 0.0, %v1207
    %v1209 = vpop.f32.mrf.mxu0
    %v1210 = vadd.f32 0.0, %v1209
    %1211 = vmatmul.bf16.gmra.mxu0 %v874
    %v1212 = vpop.f32.mrf.mxu0
    %v1213 = vadd.f32 0.0, %v1212
    %v1214 = vpop.f32.mrf.mxu0
    %v1215 = vadd.f32 0.0, %v1214
    %1216 = vmatmul.bf16.gmra.mxu0 %v877
    %v1217 = vpop.f32.mrf.mxu0
    %v1218 = vadd.f32 0.0, %v1217
    %v1219 = vpop.f32.mrf.mxu0
    %v1220 = vadd.f32 0.0, %v1219
    %1221 = vdwg.mxu0
    %1222 = vmatpush.bf16.msra.mxu0 0
    %1223 = vmatpush.bf16.msra.mxu0 0
    %1224 = vmatpush.bf16.msra.mxu0 0
    %1225 = vmatpush.bf16.msra.mxu0 0
    %1226 = vmatpush.bf16.msra.mxu0 0
    %1227 = vmatpush.bf16.msra.mxu0 0
    %1228 = vmatpush.bf16.msra.mxu0 %v812
    %1229 = vmatpush.bf16.msra.mxu0 %v803
    %1230 = vmatmul.bf16.gmra.mxu0 %v856
    %v1231 = vpop.f32.mrf.mxu0
    %v1232 = vadd.f32 0.0, %v1231
    %v1233 = vpop.f32.mrf.mxu0
    %v1234 = vadd.f32 0.0, %v1233
    %1235 = vmatmul.bf16.gmra.mxu0 %v859
    %v1236 = vpop.f32.mrf.mxu0
    %v1237 = vadd.f32 0.0, %v1236
    %v1238 = vpop.f32.mrf.mxu0
    %v1239 = vadd.f32 0.0, %v1238
    %1240 = vmatmul.bf16.gmra.mxu0 %v862
    %v1241 = vpop.f32.mrf.mxu0
    %v1242 = vadd.f32 0.0, %v1241
    %v1243 = vpop.f32.mrf.mxu0
    %v1244 = vadd.f32 0.0, %v1243
    %1245 = vmatmul.bf16.gmra.mxu0 %v865
    %v1246 = vpop.f32.mrf.mxu0
    %v1247 = vadd.f32 0.0, %v1246
    %v1248 = vpop.f32.mrf.mxu0
    %v1249 = vadd.f32 0.0, %v1248
    %1250 = vmatmul.bf16.gmra.mxu0 %v868
    %v1251 = vpop.f32.mrf.mxu0
    %v1252 = vadd.f32 0.0, %v1251
    %v1253 = vpop.f32.mrf.mxu0
    %v1254 = vadd.f32 0.0, %v1253
    %1255 = vmatmul.bf16.gmra.mxu0 %v871
    %v1256 = vpop.f32.mrf.mxu0
    %v1257 = vadd.f32 0.0, %v1256
    %v1258 = vpop.f32.mrf.mxu0
    %v1259 = vadd.f32 0.0, %v1258
    %1260 = vmatmul.bf16.gmra.mxu0 %v874
    %v1261 = vpop.f32.mrf.mxu0
    %v1262 = vadd.f32 0.0, %v1261
    %v1263 = vpop.f32.mrf.mxu0
    %v1264 = vadd.f32 0.0, %v1263
    %1265 = vmatmul.bf16.gmra.mxu0 %v877
    %v1266 = vpop.f32.mrf.mxu0
    %v1267 = vadd.f32 0.0, %v1266
    %v1268 = vpop.f32.mrf.mxu0
    %v1269 = vadd.f32 0.0, %v1268
    %1270 = vdwg.mxu0
    %1271 = vmatpush.bf16.msra.mxu0 0
    %1272 = vmatpush.bf16.msra.mxu0 0
    %1273 = vmatpush.bf16.msra.mxu0 0
    %1274 = vmatpush.bf16.msra.mxu0 0
    %1275 = vmatpush.bf16.msra.mxu0 0
    %1276 = vmatpush.bf16.msra.mxu0 0
    %1277 = vmatpush.bf16.msra.mxu0 %v813
    %1278 = vmatpush.bf16.msra.mxu0 %v804
    %1279 = vmatmul.bf16.gmra.mxu0 %v856
    %v1280 = vpop.f32.mrf.mxu0
    %v1281 = vadd.f32 0.0, %v1280
    %v1282 = vpop.f32.mrf.mxu0
    %v1283 = vadd.f32 0.0, %v1282
    %1284 = vmatmul.bf16.gmra.mxu0 %v859
    %v1285 = vpop.f32.mrf.mxu0
    %v1286 = vadd.f32 0.0, %v1285
    %v1287 = vpop.f32.mrf.mxu0
    %v1288 = vadd.f32 0.0, %v1287
    %1289 = vmatmul.bf16.gmra.mxu0 %v862
    %v1290 = vpop.f32.mrf.mxu0
    %v1291 = vadd.f32 0.0, %v1290
    %v1292 = vpop.f32.mrf.mxu0
    %v1293 = vadd.f32 0.0, %v1292
    %1294 = vmatmul.bf16.gmra.mxu0 %v865
    %v1295 = vpop.f32.mrf.mxu0
    %v1296 = vadd.f32 0.0, %v1295
    %v1297 = vpop.f32.mrf.mxu0
    %v1298 = vadd.f32 0.0, %v1297
    %1299 = vmatmul.bf16.gmra.mxu0 %v868
    %v1300 = vpop.f32.mrf.mxu0
    %v1301 = vadd.f32 0.0, %v1300
    %v1302 = vpop.f32.mrf.mxu0
    %v1303 = vadd.f32 0.0, %v1302
    %1304 = vmatmul.bf16.gmra.mxu0 %v871
    %v1305 = vpop.f32.mrf.mxu0
    %v1306 = vadd.f32 0.0, %v1305
    %v1307 = vpop.f32.mrf.mxu0
    %v1308 = vadd.f32 0.0, %v1307
    %1309 = vmatmul.bf16.gmra.mxu0 %v874
    %v1310 = vpop.f32.mrf.mxu0
    %v1311 = vadd.f32 0.0, %v1310
    %v1312 = vpop.f32.mrf.mxu0
    %v1313 = vadd.f32 0.0, %v1312
    %1314 = vmatmul.bf16.gmra.mxu0 %v877
    %v1315 = vpop.f32.mrf.mxu0
    %v1316 = vadd.f32 0.0, %v1315
    %v1317 = vpop.f32.mrf.mxu0
    %v1318 = vadd.f32 0.0, %v1317
    %1319 = vdwg.mxu0
    %v1336 = vunpack.c.l.b16 %v62
    %v1337 = vunpack.c.l.b16 %v63
    %v1338 = vunpack.c.l.b16 %v64
    %v1339 = vunpack.c.l.b16 %v65
    %v1340 = vunpack.c.l.b16 %v66
    %v1341 = vunpack.c.l.b16 %v67
    %v1342 = vunpack.c.l.b16 %v68
    %v1343 = vunpack.c.l.b16 %v69
    %v1344 = vunpack.c.l.b16 %v70
    %v1345 = vunpack.c.l.b16 %v71
    %v1346 = vunpack.c.l.b16 %v72
    %v1347 = vunpack.c.l.b16 %v73
    %v1348 = vunpack.c.l.b16 %v74
    %v1349 = vunpack.c.l.b16 %v75
    %v1350 = vunpack.c.l.b16 %v76
    %v1351 = vunpack.c.l.b16 %v77
    %v1352 = vpack.c.b16 %v1337, %v1336
    %v1353 = vpack.c.b16 %v1339, %v1338
    %v1354 = vpack.c.b16 %v1341, %v1340
    %v1355 = vpack.c.b16 %v1343, %v1342
    %v1356 = vpack.c.b16 %v1345, %v1344
    %v1357 = vpack.c.b16 %v1347, %v1346
    %v1358 = vpack.c.b16 %v1349, %v1348
    %v1359 = vpack.c.b16 %v1351, %v1350
    %1362 = vrot.lane.b32.xlu0 %v804, 112
    %v1363 = vpop.permute.xlu0 %1362
    %1364 = vrot.lane.b32.xlu0 %v813, 112
    %v1365 = vpop.permute.xlu0 %1364
    %v1369 = vsel %vm854, %v1352, 0
    %v1372 = vsel %vm854, %v1353, 0
    %v1375 = vsel %vm854, %v1354, 0
    %v1378 = vsel %vm854, %v1355, 0
    %v1381 = vsel %vm854, %v1356, 0
    %v1384 = vsel %vm854, %v1357, 0
    %v1387 = vsel %vm854, %v1358, 0
    %v1390 = vsel %vm854, %v1359, 0
    %1392 = vmatpush.bf16.msra.mxu0 0
    %1393 = vmatpush.bf16.msra.mxu0 0
    %1394 = vmatpush.bf16.msra.mxu0 0
    %1395 = vmatpush.bf16.msra.mxu0 0
    %1396 = vmatpush.bf16.msra.mxu0 0
    %1397 = vmatpush.bf16.msra.mxu0 0
    %1398 = vmatpush.bf16.msra.mxu0 %v1365
    %1399 = vmatpush.bf16.msra.mxu0 %v1363
    %1400 = vmatmul.bf16.gmra.mxu0 %v1369
    %v1401 = vpop.f32.mrf.mxu0
    %v1402 = vadd.f32 0.0, %v1401
    %v1403 = vpop.f32.mrf.mxu0
    %v1404 = vadd.f32 0.0, %v1403
    %1405 = vmatmul.bf16.gmra.mxu0 %v1372
    %v1406 = vpop.f32.mrf.mxu0
    %v1407 = vadd.f32 0.0, %v1406
    %v1408 = vpop.f32.mrf.mxu0
    %v1409 = vadd.f32 0.0, %v1408
    %1410 = vmatmul.bf16.gmra.mxu0 %v1375
    %v1411 = vpop.f32.mrf.mxu0
    %v1412 = vadd.f32 0.0, %v1411
    %v1413 = vpop.f32.mrf.mxu0
    %v1414 = vadd.f32 0.0, %v1413
    %1415 = vmatmul.bf16.gmra.mxu0 %v1378
    %v1416 = vpop.f32.mrf.mxu0
    %v1417 = vadd.f32 0.0, %v1416
    %v1418 = vpop.f32.mrf.mxu0
    %v1419 = vadd.f32 0.0, %v1418
    %1420 = vmatmul.bf16.gmra.mxu0 %v1381
    %v1421 = vpop.f32.mrf.mxu0
    %v1422 = vadd.f32 0.0, %v1421
    %v1423 = vpop.f32.mrf.mxu0
    %v1424 = vadd.f32 0.0, %v1423
    %1425 = vmatmul.bf16.gmra.mxu0 %v1384
    %v1426 = vpop.f32.mrf.mxu0
    %v1427 = vadd.f32 0.0, %v1426
    %v1428 = vpop.f32.mrf.mxu0
    %v1429 = vadd.f32 0.0, %v1428
    %1430 = vmatmul.bf16.gmra.mxu0 %v1387
    %v1431 = vpop.f32.mrf.mxu0
    %v1432 = vadd.f32 0.0, %v1431
    %v1433 = vpop.f32.mrf.mxu0
    %v1434 = vadd.f32 0.0, %v1433
    %1435 = vmatmul.bf16.gmra.mxu0 %v1390
    %v1436 = vpop.f32.mrf.mxu0
    %v1437 = vadd.f32 0.0, %v1436
    %v1438 = vpop.f32.mrf.mxu0
    %v1439 = vadd.f32 0.0, %v1438
    %1440 = vdwg.mxu0
    %v1441 = vadd.f32 %v1281, %v1402
    %v1442 = vadd.f32 %v1283, %v1404
    %v1443 = vadd.f32 %v1286, %v1407
    %v1444 = vadd.f32 %v1288, %v1409
    %v1445 = vadd.f32 %v1291, %v1412
    %v1446 = vadd.f32 %v1293, %v1414
    %v1447 = vadd.f32 %v1296, %v1417
    %v1448 = vadd.f32 %v1298, %v1419
    %v1449 = vadd.f32 %v1301, %v1422
    %v1450 = vadd.f32 %v1303, %v1424
    %v1451 = vadd.f32 %v1306, %v1427
    %v1452 = vadd.f32 %v1308, %v1429
    %v1453 = vadd.f32 %v1311, %v1432
    %v1454 = vadd.f32 %v1313, %v1434
    %v1455 = vadd.f32 %v1316, %v1437
    %v1456 = vadd.f32 %v1318, %v1439
    %v1457 = vadd.f32 %v1441, %v757
    %v1458 = vadd.f32 %v1442, %v759
    %v1459 = vadd.f32 %v1443, %v762
    %v1460 = vadd.f32 %v1444, %v764
    %v1461 = vadd.f32 %v1445, %v767
    %v1462 = vadd.f32 %v1446, %v769
    %v1463 = vadd.f32 %v1447, %v772
    %v1464 = vadd.f32 %v1448, %v774
    %v1465 = vadd.f32 %v1449, %v777
    %v1466 = vadd.f32 %v1450, %v779
    %v1467 = vadd.f32 %v1451, %v782
    %v1468 = vadd.f32 %v1452, %v784
    %v1469 = vadd.f32 %v1453, %v787
    %v1470 = vadd.f32 %v1454, %v789
    %v1471 = vadd.f32 %v1455, %v792
    %v1472 = vadd.f32 %v1456, %v794
    %vm1473 = vcmp.ge.f32.partialorder %v1457, 0.0
    %vm1474 = vcmp.ge.f32.partialorder %v1458, 0.0
    %vm1475 = vcmp.ge.f32.partialorder %v1459, 0.0
    %vm1476 = vcmp.ge.f32.partialorder %v1460, 0.0
    %vm1477 = vcmp.ge.f32.partialorder %v1461, 0.0
    %vm1478 = vcmp.ge.f32.partialorder %v1462, 0.0
    %vm1479 = vcmp.ge.f32.partialorder %v1463, 0.0
    %vm1480 = vcmp.ge.f32.partialorder %v1464, 0.0
    %vm1481 = vcmp.ge.f32.partialorder %v1465, 0.0
    %vm1482 = vcmp.ge.f32.partialorder %v1466, 0.0
    %vm1483 = vcmp.ge.f32.partialorder %v1467, 0.0
    %vm1484 = vcmp.ge.f32.partialorder %v1468, 0.0
    %vm1485 = vcmp.ge.f32.partialorder %v1469, 0.0
    %vm1486 = vcmp.ge.f32.partialorder %v1470, 0.0
    %vm1487 = vcmp.ge.f32.partialorder %v1471, 0.0
    %vm1488 = vcmp.ge.f32.partialorder %v1472, 0.0
    %v1489 = vmul.f32 %v1457, 0.2
    %v1490 = vmul.f32 %v1458, 0.2
    %v1491 = vmul.f32 %v1459, 0.2
    %v1492 = vmul.f32 %v1460, 0.2
    %v1493 = vmul.f32 %v1461, 0.2
    %v1494 = vmul.f32 %v1462, 0.2
    %v1495 = vmul.f32 %v1463, 0.2
    %v1496 = vmul.f32 %v1464, 0.2
    %v1497 = vmul.f32 %v1465, 0.2
    %v1498 = vmul.f32 %v1466, 0.2
    %v1499 = vmul.f32 %v1467, 0.2
    %v1500 = vmul.f32 %v1468, 0.2
    %v1501 = vmul.f32 %v1469, 0.2
    %v1502 = vmul.f32 %v1470, 0.2
    %v1503 = vmul.f32 %v1471, 0.2
    %v1504 = vmul.f32 %v1472, 0.2
    %v1505 = vsel %vm1473, %v1457, %v1489
    %v1506 = vsel %vm1474, %v1458, %v1490
    %v1507 = vsel %vm1475, %v1459, %v1491
    %v1508 = vsel %vm1476, %v1460, %v1492
    %v1509 = vsel %vm1477, %v1461, %v1493
    %v1510 = vsel %vm1478, %v1462, %v1494
    %v1511 = vsel %vm1479, %v1463, %v1495
    %v1512 = vsel %vm1480, %v1464, %v1496
    %v1513 = vsel %vm1481, %v1465, %v1497
    %v1514 = vsel %vm1482, %v1466, %v1498
    %v1515 = vsel %vm1483, %v1467, %v1499
    %v1516 = vsel %vm1484, %v1468, %v1500
    %v1517 = vsel %vm1485, %v1469, %v1501
    %v1518 = vsel %vm1486, %v1470, %v1502
    %v1519 = vsel %vm1487, %v1471, %v1503
    %v1520 = vsel %vm1488, %v1472, %v1504
    %vm1521 = vcmask 130048
    %v1522 = vsel %vm1521, %v1505, -inf
    %v1523 = vsel %vm1521, %v1506, -inf
    %v1524 = vsel %vm1521, %v1507, -inf
    %v1525 = vsel %vm1521, %v1508, -inf
    %v1526 = vsel %vm1521, %v1509, -inf
    %v1527 = vmax.f32 %v1522, %v1526
    %v1528 = vsel %vm1521, %v1510, -inf
    %v1529 = vmax.f32 %v1523, %v1528
    %v1530 = vsel %vm1521, %v1511, -inf
    %v1531 = vmax.f32 %v1524, %v1530
    %v1532 = vsel %vm1521, %v1512, -inf
    %v1533 = vmax.f32 %v1525, %v1532
    %v1534 = vsel %vm1521, %v1513, -inf
    %v1535 = vmax.f32 %v1527, %v1534
    %v1536 = vsel %vm1521, %v1514, -inf
    %v1537 = vmax.f32 %v1529, %v1536
    %v1538 = vsel %vm1521, %v1515, -inf
    %v1539 = vmax.f32 %v1531, %v1538
    %v1540 = vsel %vm1521, %v1516, -inf
    %v1541 = vmax.f32 %v1533, %v1540
    %v1542 = vsel %vm1521, %v1517, -inf
    %v1543 = vmax.f32 %v1535, %v1542
    %v1544 = vsel %vm1521, %v1518, -inf
    %v1545 = vmax.f32 %v1537, %v1544
    %v1546 = vsel %vm1521, %v1519, -inf
    %v1547 = vmax.f32 %v1539, %v1546
    %v1548 = vsel %vm1521, %v1520, -inf
    %v1549 = vmax.f32 %v1541, %v1548
    %v1550 = vmax.f32 %v1543, %v1545
    %v1551 = vmax.f32 %v1547, %v1549
    %v1552 = vmax.f32 %v1550, %v1551
    %v1553 = vrot.slane %v1552, 4
    %v1554 = vmax.f32 %v1552, %v1553
    %v1555 = vrot.slane %v1554, 2
    %v1556 = vmax.f32 %v1554, %v1555
    %v1557 = vrot.slane %v1556, 1
    %v1558 = vmax.f32 %v1556, %v1557
    %v1559 = vsub.f32 %v1505, %v1558
    %v1560 = vsub.f32 %v1506, %v1558
    %v1561 = vsub.f32 %v1507, %v1558
    %v1562 = vsub.f32 %v1508, %v1558
    %v1563 = vsub.f32 %v1509, %v1558
    %v1564 = vsub.f32 %v1510, %v1558
    %v1565 = vsub.f32 %v1511, %v1558
    %v1566 = vsub.f32 %v1512, %v1558
    %v1567 = vsub.f32 %v1513, %v1558
    %v1568 = vsub.f32 %v1514, %v1558
    %v1569 = vsub.f32 %v1515, %v1558
    %v1570 = vsub.f32 %v1516, %v1558
    %v1571 = vsub.f32 %v1517, %v1558
    %v1572 = vsub.f32 %v1518, %v1558
    %v1573 = vsub.f32 %v1519, %v1558
    %v1574 = vsub.f32 %v1520, %v1558
    %v1575 = vmul.f32 %v1559, 1.442695
    %v1576 = vpow.pop %v1575
    %v1577 = vmul.f32 %v1560, 1.442695
    %v1578 = vpow.pop %v1577
    %v1579 = vmul.f32 %v1561, 1.442695
    %v1580 = vpow.pop %v1579
    %v1581 = vmul.f32 %v1562, 1.442695
    %v1582 = vpow.pop %v1581
    %v1583 = vmul.f32 %v1563, 1.442695
    %v1584 = vpow.pop %v1583
    %v1585 = vmul.f32 %v1564, 1.442695
    %v1586 = vpow.pop %v1585
    %v1587 = vmul.f32 %v1565, 1.442695
    %v1588 = vpow.pop %v1587
    %v1589 = vmul.f32 %v1566, 1.442695
    %v1590 = vpow.pop %v1589
    %v1591 = vmul.f32 %v1567, 1.442695
    %v1592 = vpow.pop %v1591
    %v1593 = vmul.f32 %v1568, 1.442695
    %v1594 = vpow.pop %v1593
    %v1595 = vmul.f32 %v1569, 1.442695
    %v1596 = vpow.pop %v1595
    %v1597 = vmul.f32 %v1570, 1.442695
    %v1598 = vpow.pop %v1597
    %v1599 = vmul.f32 %v1571, 1.442695
    %v1600 = vpow.pop %v1599
    %v1601 = vmul.f32 %v1572, 1.442695
    %v1602 = vpow.pop %v1601
    %v1603 = vmul.f32 %v1573, 1.442695
    %v1604 = vpow.pop %v1603
    %v1605 = vmul.f32 %v1574, 1.442695
    %v1606 = vpow.pop %v1605
    %v1607 = vpack.c.bf16 %v1578, %v1576
    %v1608 = vpack.c.bf16 %v1582, %v1580
    %v1609 = vpack.c.bf16 %v1586, %v1584
    %v1610 = vpack.c.bf16 %v1590, %v1588
    %v1611 = vpack.c.bf16 %v1594, %v1592
    %v1612 = vpack.c.bf16 %v1598, %v1596
    %v1613 = vpack.c.bf16 %v1602, %v1600
    %v1614 = vpack.c.bf16 %v1606, %v1604
    %v1619 = vunpack.c.l.b16 %v78
    %v1620 = vunpack.c.l.b16 %v79
    %v1621 = vunpack.c.l.b16 %v80
    %v1622 = vunpack.c.l.b16 %v81
    %v1623 = vpack.c.b16 %v1620, %v1619
    %v1624 = vpack.c.b16 %v1622, %v1621
    %1627 = vmatpush.bf16.msra.mxu0 %v1614
    %1628 = vmatpush.bf16.msra.mxu0 %v1613
    %1629 = vmatpush.bf16.msra.mxu0 %v1612
    %1630 = vmatpush.bf16.msra.mxu0 %v1611
    %1631 = vmatpush.bf16.msra.mxu0 %v1610
    %1632 = vmatpush.bf16.msra.mxu0 %v1609
    %1633 = vmatpush.bf16.msra.mxu0 %v1608
    %1634 = vmatpush.bf16.msra.mxu0 %v1607
    %1635 = vmatmul.bf16.gmra.mxu0 %v1623
    %v1636 = vpop.f32.mrf.mxu0
    %v1637 = vadd.f32 0.0, %v1636
    %v1638 = vpop.f32.mrf.mxu0
    %v1639 = vadd.f32 0.0, %v1638
    %1640 = vmatmul.bf16.gmra.mxu0 %v1624
    %v1641 = vpop.f32.mrf.mxu0
    %v1642 = vadd.f32 0.0, %v1641
    %v1643 = vpop.f32.mrf.mxu0
    %v1644 = vadd.f32 0.0, %v1643
    %1645 = vdwg.mxu0
    %v1646 = vpack.c.bf16 %v1639, %v1637
    %v1647 = vpack.c.bf16 %v1644, %v1642
    %1648 = vmatpush.bf16.msra.mxu0 0
    %1649 = vmatpush.bf16.msra.mxu0 0
    %1650 = vmatpush.bf16.msra.mxu0 0
    %1651 = vmatpush.bf16.msra.mxu0 0
    %1652 = vmatpush.bf16.msra.mxu0 0
    %1653 = vmatpush.bf16.msra.mxu0 0
    %1654 = vmatpush.bf16.msra.mxu0 %v1647
    %1655 = vmatpush.bf16.msra.mxu0 %v1646
    %1656 = vmatmul.bf16.gmra.mxu0 %v1369
    %v1657 = vpop.f32.mrf.mxu0
    %v1658 = vadd.f32 1e-16, %v1657
    %v1659 = vpop.f32.mrf.mxu0
    %v1660 = vadd.f32 1e-16, %v1659
    %1661 = vmatmul.bf16.gmra.mxu0 %v1372
    %v1662 = vpop.f32.mrf.mxu0
    %v1663 = vadd.f32 1e-16, %v1662
    %v1664 = vpop.f32.mrf.mxu0
    %v1665 = vadd.f32 1e-16, %v1664
    %1666 = vmatmul.bf16.gmra.mxu0 %v1375
    %v1667 = vpop.f32.mrf.mxu0
    %v1668 = vadd.f32 1e-16, %v1667
    %v1669 = vpop.f32.mrf.mxu0
    %v1670 = vadd.f32 1e-16, %v1669
    %1671 = vmatmul.bf16.gmra.mxu0 %v1378
    %v1672 = vpop.f32.mrf.mxu0
    %v1673 = vadd.f32 1e-16, %v1672
    %v1674 = vpop.f32.mrf.mxu0
    %v1675 = vadd.f32 1e-16, %v1674
    %1676 = vmatmul.bf16.gmra.mxu0 %v1381
    %v1677 = vpop.f32.mrf.mxu0
    %v1678 = vadd.f32 1e-16, %v1677
    %v1679 = vpop.f32.mrf.mxu0
    %v1680 = vadd.f32 1e-16, %v1679
    %1681 = vmatmul.bf16.gmra.mxu0 %v1384
    %v1682 = vpop.f32.mrf.mxu0
    %v1683 = vadd.f32 1e-16, %v1682
    %v1684 = vpop.f32.mrf.mxu0
    %v1685 = vadd.f32 1e-16, %v1684
    %1686 = vmatmul.bf16.gmra.mxu0 %v1387
    %v1687 = vpop.f32.mrf.mxu0
    %v1688 = vadd.f32 1e-16, %v1687
    %v1689 = vpop.f32.mrf.mxu0
    %v1690 = vadd.f32 1e-16, %v1689
    %1691 = vmatmul.bf16.gmra.mxu0 %v1390
    %v1692 = vpop.f32.mrf.mxu0
    %v1693 = vadd.f32 1e-16, %v1692
    %v1694 = vpop.f32.mrf.mxu0
    %v1695 = vadd.f32 1e-16, %v1694
    %1696 = vdwg.mxu0
    %v1697 = vrcp.pop %v1658
    %v1698 = vrcp.pop %v1660
    %v1699 = vrcp.pop %v1663
    %v1700 = vrcp.pop %v1665
    %v1701 = vrcp.pop %v1668
    %v1702 = vrcp.pop %v1670
    %v1703 = vrcp.pop %v1673
    %v1704 = vrcp.pop %v1675
    %v1705 = vrcp.pop %v1678
    %v1706 = vrcp.pop %v1680
    %v1707 = vrcp.pop %v1683
    %v1708 = vrcp.pop %v1685
    %v1709 = vrcp.pop %v1688
    %v1710 = vrcp.pop %v1690
    %v1711 = vrcp.pop %v1693
    %v1712 = vrcp.pop %v1695
    %v1713 = vmul.f32 %v1576, %v1697
    %v1714 = vmul.f32 %v1578, %v1698
    %v1715 = vmul.f32 %v1580, %v1699
    %v1716 = vmul.f32 %v1582, %v1700
    %v1717 = vmul.f32 %v1584, %v1701
    %v1718 = vmul.f32 %v1586, %v1702
    %v1719 = vmul.f32 %v1588, %v1703
    %v1720 = vmul.f32 %v1590, %v1704
    %v1721 = vmul.f32 %v1592, %v1705
    %v1722 = vmul.f32 %v1594, %v1706
    %v1723 = vmul.f32 %v1596, %v1707
    %v1724 = vmul.f32 %v1598, %v1708
    %v1725 = vmul.f32 %v1600, %v1709
    %v1726 = vmul.f32 %v1602, %v1710
    %v1727 = vmul.f32 %v1604, %v1711
    %v1728 = vmul.f32 %v1606, %v1712
    %v1729 = vpack.c.bf16 %v1714, %v1713
    %v1730 = vpack.c.bf16 %v1716, %v1715
    %v1731 = vpack.c.bf16 %v1718, %v1717
    %v1732 = vpack.c.bf16 %v1720, %v1719
    %v1733 = vpack.c.bf16 %v1722, %v1721
    %v1734 = vpack.c.bf16 %v1724, %v1723
    %v1735 = vpack.c.bf16 %v1726, %v1725
    %v1736 = vpack.c.bf16 %v1728, %v1727
    %v1745 = vunpack.c.l.b16 %v98
    %v1746 = vunpack.c.h.b16 %v98
    %v1747 = vunpack.c.l.b16 %v99
    %v1748 = vunpack.c.h.b16 %v99
    %v1749 = vunpack.c.l.b16 %v100
    %v1750 = vunpack.c.h.b16 %v100
    %v1751 = vunpack.c.l.b16 %v101
    %v1752 = vunpack.c.h.b16 %v101
    %v1753 = vunpack.c.l.b16 %v102
    %v1754 = vunpack.c.h.b16 %v102
    %v1755 = vunpack.c.l.b16 %v103
    %v1756 = vunpack.c.h.b16 %v103
    %v1757 = vunpack.c.l.b16 %v104
    %v1758 = vunpack.c.h.b16 %v104
    %v1759 = vunpack.c.l.b16 %v105
    %v1760 = vunpack.c.h.b16 %v105
    %v1761 = vpack.c.b16 %v1753, %v1745
    %v1762 = vpack.c.b16 %v1754, %v1746
    %v1763 = vpack.c.b16 %v1755, %v1747
    %v1764 = vpack.c.b16 %v1756, %v1748
    %v1765 = vpack.c.b16 %v1757, %v1749
    %v1766 = vpack.c.b16 %v1758, %v1750
    %v1767 = vpack.c.b16 %v1759, %v1751
    %v1768 = vpack.c.b16 %v1760, %v1752
    %v1778 = vsel %vm1521, %v1729, 0
    %v1781 = vsel %vm1521, %v1730, 0
    %v1784 = vsel %vm1521, %v1731, 0
    %v1787 = vsel %vm1521, %v1732, 0
    %v1790 = vsel %vm1521, %v1733, 0
    %v1793 = vsel %vm1521, %v1734, 0
    %v1796 = vsel %vm1521, %v1735, 0
    %v1799 = vsel %vm1521, %v1736, 0
    %1801 = vmatpush.bf16.msra.mxu0 0
    %1802 = vmatpush.bf16.msra.mxu0 0
    %1803 = vmatpush.bf16.msra.mxu0 0
    %1804 = vmatpush.bf16.msra.mxu0 0
    %1805 = vmatpush.bf16.msra.mxu0 0
    %1806 = vmatpush.bf16.msra.mxu0 0
    %1807 = vmatpush.bf16.msra.mxu0 0
    %1808 = vmatpush.bf16.msra.mxu0 %v1761
    %1809 = vmatmul.bf16.gmra.mxu0 %v1778
    %v1810 = vpop.f32.mrf.mxu0
    %v1811 = vadd.f32 0.0, %v1810
    %v1812 = vpop.f32.mrf.mxu0
    %v1813 = vadd.f32 0.0, %v1812
    %1814 = vmatmul.bf16.gmra.mxu0 %v1781
    %v1815 = vpop.f32.mrf.mxu0
    %v1816 = vadd.f32 0.0, %v1815
    %v1817 = vpop.f32.mrf.mxu0
    %v1818 = vadd.f32 0.0, %v1817
    %1819 = vmatmul.bf16.gmra.mxu0 %v1784
    %v1820 = vpop.f32.mrf.mxu0
    %v1821 = vadd.f32 0.0, %v1820
    %v1822 = vpop.f32.mrf.mxu0
    %v1823 = vadd.f32 0.0, %v1822
    %1824 = vmatmul.bf16.gmra.mxu0 %v1787
    %v1825 = vpop.f32.mrf.mxu0
    %v1826 = vadd.f32 0.0, %v1825
    %v1827 = vpop.f32.mrf.mxu0
    %v1828 = vadd.f32 0.0, %v1827
    %1829 = vmatmul.bf16.gmra.mxu0 %v1790
    %v1830 = vpop.f32.mrf.mxu0
    %v1831 = vadd.f32 0.0, %v1830
    %v1832 = vpop.f32.mrf.mxu0
    %v1833 = vadd.f32 0.0, %v1832
    %1834 = vmatmul.bf16.gmra.mxu0 %v1793
    %v1835 = vpop.f32.mrf.mxu0
    %v1836 = vadd.f32 0.0, %v1835
    %v1837 = vpop.f32.mrf.mxu0
    %v1838 = vadd.f32 0.0, %v1837
    %1839 = vmatmul.bf16.gmra.mxu0 %v1796
    %v1840 = vpop.f32.mrf.mxu0
    %v1841 = vadd.f32 0.0, %v1840
    %v1842 = vpop.f32.mrf.mxu0
    %v1843 = vadd.f32 0.0, %v1842
    %1844 = vmatmul.bf16.gmra.mxu0 %v1799
    %v1845 = vpop.f32.mrf.mxu0
    %v1846 = vadd.f32 0.0, %v1845
    %v1847 = vpop.f32.mrf.mxu0
    %v1848 = vadd.f32 0.0, %v1847
    %1849 = vdwg.mxu0
    %1850 = vmatpush.bf16.msra.mxu0 0
    %1851 = vmatpush.bf16.msra.mxu0 0
    %1852 = vmatpush.bf16.msra.mxu0 0
    %1853 = vmatpush.bf16.msra.mxu0 0
    %1854 = vmatpush.bf16.msra.mxu0 0
    %1855 = vmatpush.bf16.msra.mxu0 0
    %1856 = vmatpush.bf16.msra.mxu0 0
    %1857 = vmatpush.bf16.msra.mxu0 %v1762
    %1858 = vmatmul.bf16.gmra.mxu0 %v1778
    %v1859 = vpop.f32.mrf.mxu0
    %v1860 = vadd.f32 0.0, %v1859
    %v1861 = vpop.f32.mrf.mxu0
    %v1862 = vadd.f32 0.0, %v1861
    %1863 = vmatmul.bf16.gmra.mxu0 %v1781
    %v1864 = vpop.f32.mrf.mxu0
    %v1865 = vadd.f32 0.0, %v1864
    %v1866 = vpop.f32.mrf.mxu0
    %v1867 = vadd.f32 0.0, %v1866
    %1868 = vmatmul.bf16.gmra.mxu0 %v1784
    %v1869 = vpop.f32.mrf.mxu0
    %v1870 = vadd.f32 0.0, %v1869
    %v1871 = vpop.f32.mrf.mxu0
    %v1872 = vadd.f32 0.0, %v1871
    %1873 = vmatmul.bf16.gmra.mxu0 %v1787
    %v1874 = vpop.f32.mrf.mxu0
    %v1875 = vadd.f32 0.0, %v1874
    %v1876 = vpop.f32.mrf.mxu0
    %v1877 = vadd.f32 0.0, %v1876
    %1878 = vmatmul.bf16.gmra.mxu0 %v1790
    %v1879 = vpop.f32.mrf.mxu0
    %v1880 = vadd.f32 0.0, %v1879
    %v1881 = vpop.f32.mrf.mxu0
    %v1882 = vadd.f32 0.0, %v1881
    %1883 = vmatmul.bf16.gmra.mxu0 %v1793
    %v1884 = vpop.f32.mrf.mxu0
    %v1885 = vadd.f32 0.0, %v1884
    %v1886 = vpop.f32.mrf.mxu0
    %v1887 = vadd.f32 0.0, %v1886
    %1888 = vmatmul.bf16.gmra.mxu0 %v1796
    %v1889 = vpop.f32.mrf.mxu0
    %v1890 = vadd.f32 0.0, %v1889
    %v1891 = vpop.f32.mrf.mxu0
    %v1892 = vadd.f32 0.0, %v1891
    %1893 = vmatmul.bf16.gmra.mxu0 %v1799
    %v1894 = vpop.f32.mrf.mxu0
    %v1895 = vadd.f32 0.0, %v1894
    %v1896 = vpop.f32.mrf.mxu0
    %v1897 = vadd.f32 0.0, %v1896
    %1898 = vdwg.mxu0
    %1899 = vmatpush.bf16.msra.mxu0 0
    %1900 = vmatpush.bf16.msra.mxu0 0
    %1901 = vmatpush.bf16.msra.mxu0 0
    %1902 = vmatpush.bf16.msra.mxu0 0
    %1903 = vmatpush.bf16.msra.mxu0 0
    %1904 = vmatpush.bf16.msra.mxu0 0
    %1905 = vmatpush.bf16.msra.mxu0 0
    %1906 = vmatpush.bf16.msra.mxu0 %v1763
    %1907 = vmatmul.bf16.gmra.mxu0 %v1778
    %v1908 = vpop.f32.mrf.mxu0
    %v1909 = vadd.f32 0.0, %v1908
    %v1910 = vpop.f32.mrf.mxu0
    %v1911 = vadd.f32 0.0, %v1910
    %1912 = vmatmul.bf16.gmra.mxu0 %v1781
    %v1913 = vpop.f32.mrf.mxu0
    %v1914 = vadd.f32 0.0, %v1913
    %v1915 = vpop.f32.mrf.mxu0
    %v1916 = vadd.f32 0.0, %v1915
    %1917 = vmatmul.bf16.gmra.mxu0 %v1784
    %v1918 = vpop.f32.mrf.mxu0
    %v1919 = vadd.f32 0.0, %v1918
    %v1920 = vpop.f32.mrf.mxu0
    %v1921 = vadd.f32 0.0, %v1920
    %1922 = vmatmul.bf16.gmra.mxu0 %v1787
    %v1923 = vpop.f32.mrf.mxu0
    %v1924 = vadd.f32 0.0, %v1923
    %v1925 = vpop.f32.mrf.mxu0
    %v1926 = vadd.f32 0.0, %v1925
    %1927 = vmatmul.bf16.gmra.mxu0 %v1790
    %v1928 = vpop.f32.mrf.mxu0
    %v1929 = vadd.f32 0.0, %v1928
    %v1930 = vpop.f32.mrf.mxu0
    %v1931 = vadd.f32 0.0, %v1930
    %1932 = vmatmul.bf16.gmra.mxu0 %v1793
    %v1933 = vpop.f32.mrf.mxu0
    %v1934 = vadd.f32 0.0, %v1933
    %v1935 = vpop.f32.mrf.mxu0
    %v1936 = vadd.f32 0.0, %v1935
    %1937 = vmatmul.bf16.gmra.mxu0 %v1796
    %v1938 = vpop.f32.mrf.mxu0
    %v1939 = vadd.f32 0.0, %v1938
    %v1940 = vpop.f32.mrf.mxu0
    %v1941 = vadd.f32 0.0, %v1940
    %1942 = vmatmul.bf16.gmra.mxu0 %v1799
    %v1943 = vpop.f32.mrf.mxu0
    %v1944 = vadd.f32 0.0, %v1943
    %v1945 = vpop.f32.mrf.mxu0
    %v1946 = vadd.f32 0.0, %v1945
    %1947 = vdwg.mxu0
    %1948 = vmatpush.bf16.msra.mxu0 0
    %1949 = vmatpush.bf16.msra.mxu0 0
    %1950 = vmatpush.bf16.msra.mxu0 0
    %1951 = vmatpush.bf16.msra.mxu0 0
    %1952 = vmatpush.bf16.msra.mxu0 0
    %1953 = vmatpush.bf16.msra.mxu0 0
    %1954 = vmatpush.bf16.msra.mxu0 0
    %1955 = vmatpush.bf16.msra.mxu0 %v1764
    %1956 = vmatmul.bf16.gmra.mxu0 %v1778
    %v1957 = vpop.f32.mrf.mxu0
    %v1958 = vadd.f32 0.0, %v1957
    %v1959 = vpop.f32.mrf.mxu0
    %v1960 = vadd.f32 0.0, %v1959
    %1961 = vmatmul.bf16.gmra.mxu0 %v1781
    %v1962 = vpop.f32.mrf.mxu0
    %v1963 = vadd.f32 0.0, %v1962
    %v1964 = vpop.f32.mrf.mxu0
    %v1965 = vadd.f32 0.0, %v1964
    %1966 = vmatmul.bf16.gmra.mxu0 %v1784
    %v1967 = vpop.f32.mrf.mxu0
    %v1968 = vadd.f32 0.0, %v1967
    %v1969 = vpop.f32.mrf.mxu0
    %v1970 = vadd.f32 0.0, %v1969
    %1971 = vmatmul.bf16.gmra.mxu0 %v1787
    %v1972 = vpop.f32.mrf.mxu0
    %v1973 = vadd.f32 0.0, %v1972
    %v1974 = vpop.f32.mrf.mxu0
    %v1975 = vadd.f32 0.0, %v1974
    %1976 = vmatmul.bf16.gmra.mxu0 %v1790
    %v1977 = vpop.f32.mrf.mxu0
    %v1978 = vadd.f32 0.0, %v1977
    %v1979 = vpop.f32.mrf.mxu0
    %v1980 = vadd.f32 0.0, %v1979
    %1981 = vmatmul.bf16.gmra.mxu0 %v1793
    %v1982 = vpop.f32.mrf.mxu0
    %v1983 = vadd.f32 0.0, %v1982
    %v1984 = vpop.f32.mrf.mxu0
    %v1985 = vadd.f32 0.0, %v1984
    %1986 = vmatmul.bf16.gmra.mxu0 %v1796
    %v1987 = vpop.f32.mrf.mxu0
    %v1988 = vadd.f32 0.0, %v1987
    %v1989 = vpop.f32.mrf.mxu0
    %v1990 = vadd.f32 0.0, %v1989
    %1991 = vmatmul.bf16.gmra.mxu0 %v1799
    %v1992 = vpop.f32.mrf.mxu0
    %v1993 = vadd.f32 0.0, %v1992
    %v1994 = vpop.f32.mrf.mxu0
    %v1995 = vadd.f32 0.0, %v1994
    %1996 = vdwg.mxu0
    %1997 = vmatpush.bf16.msra.mxu0 0
    %1998 = vmatpush.bf16.msra.mxu0 0
    %1999 = vmatpush.bf16.msra.mxu0 0
    %2000 = vmatpush.bf16.msra.mxu0 0
    %2001 = vmatpush.bf16.msra.mxu0 0
    %2002 = vmatpush.bf16.msra.mxu0 0
    %2003 = vmatpush.bf16.msra.mxu0 0
    %2004 = vmatpush.bf16.msra.mxu0 %v1765
    %2005 = vmatmul.bf16.gmra.mxu0 %v1778
    %v2006 = vpop.f32.mrf.mxu0
    %v2007 = vadd.f32 0.0, %v2006
    %v2008 = vpop.f32.mrf.mxu0
    %v2009 = vadd.f32 0.0, %v2008
    %2010 = vmatmul.bf16.gmra.mxu0 %v1781
    %v2011 = vpop.f32.mrf.mxu0
    %v2012 = vadd.f32 0.0, %v2011
    %v2013 = vpop.f32.mrf.mxu0
    %v2014 = vadd.f32 0.0, %v2013
    %2015 = vmatmul.bf16.gmra.mxu0 %v1784
    %v2016 = vpop.f32.mrf.mxu0
    %v2017 = vadd.f32 0.0, %v2016
    %v2018 = vpop.f32.mrf.mxu0
    %v2019 = vadd.f32 0.0, %v2018
    %2020 = vmatmul.bf16.gmra.mxu0 %v1787
    %v2021 = vpop.f32.mrf.mxu0
    %v2022 = vadd.f32 0.0, %v2021
    %v2023 = vpop.f32.mrf.mxu0
    %v2024 = vadd.f32 0.0, %v2023
    %2025 = vmatmul.bf16.gmra.mxu0 %v1790
    %v2026 = vpop.f32.mrf.mxu0
    %v2027 = vadd.f32 0.0, %v2026
    %v2028 = vpop.f32.mrf.mxu0
    %v2029 = vadd.f32 0.0, %v2028
    %2030 = vmatmul.bf16.gmra.mxu0 %v1793
    %v2031 = vpop.f32.mrf.mxu0
    %v2032 = vadd.f32 0.0, %v2031
    %v2033 = vpop.f32.mrf.mxu0
    %v2034 = vadd.f32 0.0, %v2033
    %2035 = vmatmul.bf16.gmra.mxu0 %v1796
    %v2036 = vpop.f32.mrf.mxu0
    %v2037 = vadd.f32 0.0, %v2036
    %v2038 = vpop.f32.mrf.mxu0
    %v2039 = vadd.f32 0.0, %v2038
    %2040 = vmatmul.bf16.gmra.mxu0 %v1799
    %v2041 = vpop.f32.mrf.mxu0
    %v2042 = vadd.f32 0.0, %v2041
    %v2043 = vpop.f32.mrf.mxu0
    %v2044 = vadd.f32 0.0, %v2043
    %2045 = vdwg.mxu0
    %2046 = vmatpush.bf16.msra.mxu0 0
    %2047 = vmatpush.bf16.msra.mxu0 0
    %2048 = vmatpush.bf16.msra.mxu0 0
    %2049 = vmatpush.bf16.msra.mxu0 0
    %2050 = vmatpush.bf16.msra.mxu0 0
    %2051 = vmatpush.bf16.msra.mxu0 0
    %2052 = vmatpush.bf16.msra.mxu0 0
    %2053 = vmatpush.bf16.msra.mxu0 %v1766
    %2054 = vmatmul.bf16.gmra.mxu0 %v1778
    %v2055 = vpop.f32.mrf.mxu0
    %v2056 = vadd.f32 0.0, %v2055
    %v2057 = vpop.f32.mrf.mxu0
    %v2058 = vadd.f32 0.0, %v2057
    %2059 = vmatmul.bf16.gmra.mxu0 %v1781
    %v2060 = vpop.f32.mrf.mxu0
    %v2061 = vadd.f32 0.0, %v2060
    %v2062 = vpop.f32.mrf.mxu0
    %v2063 = vadd.f32 0.0, %v2062
    %2064 = vmatmul.bf16.gmra.mxu0 %v1784
    %v2065 = vpop.f32.mrf.mxu0
    %v2066 = vadd.f32 0.0, %v2065
    %v2067 = vpop.f32.mrf.mxu0
    %v2068 = vadd.f32 0.0, %v2067
    %2069 = vmatmul.bf16.gmra.mxu0 %v1787
    %v2070 = vpop.f32.mrf.mxu0
    %v2071 = vadd.f32 0.0, %v2070
    %v2072 = vpop.f32.mrf.mxu0
    %v2073 = vadd.f32 0.0, %v2072
    %2074 = vmatmul.bf16.gmra.mxu0 %v1790
    %v2075 = vpop.f32.mrf.mxu0
    %v2076 = vadd.f32 0.0, %v2075
    %v2077 = vpop.f32.mrf.mxu0
    %v2078 = vadd.f32 0.0, %v2077
    %2079 = vmatmul.bf16.gmra.mxu0 %v1793
    %v2080 = vpop.f32.mrf.mxu0
    %v2081 = vadd.f32 0.0, %v2080
    %v2082 = vpop.f32.mrf.mxu0
    %v2083 = vadd.f32 0.0, %v2082
    %2084 = vmatmul.bf16.gmra.mxu0 %v1796
    %v2085 = vpop.f32.mrf.mxu0
    %v2086 = vadd.f32 0.0, %v2085
    %v2087 = vpop.f32.mrf.mxu0
    %v2088 = vadd.f32 0.0, %v2087
    %2089 = vmatmul.bf16.gmra.mxu0 %v1799
    %v2090 = vpop.f32.mrf.mxu0
    %v2091 = vadd.f32 0.0, %v2090
    %v2092 = vpop.f32.mrf.mxu0
    %v2093 = vadd.f32 0.0, %v2092
    %2094 = vdwg.mxu0
    %2095 = vmatpush.bf16.msra.mxu0 0
    %2096 = vmatpush.bf16.msra.mxu0 0
    %2097 = vmatpush.bf16.msra.mxu0 0
    %2098 = vmatpush.bf16.msra.mxu0 0
    %2099 = vmatpush.bf16.msra.mxu0 0
    %2100 = vmatpush.bf16.msra.mxu0 0
    %2101 = vmatpush.bf16.msra.mxu0 0
    %2102 = vmatpush.bf16.msra.mxu0 %v1767
    %2103 = vmatmul.bf16.gmra.mxu0 %v1778
    %v2104 = vpop.f32.mrf.mxu0
    %v2105 = vadd.f32 0.0, %v2104
    %v2106 = vpop.f32.mrf.mxu0
    %v2107 = vadd.f32 0.0, %v2106
    %2108 = vmatmul.bf16.gmra.mxu0 %v1781
    %v2109 = vpop.f32.mrf.mxu0
    %v2110 = vadd.f32 0.0, %v2109
    %v2111 = vpop.f32.mrf.mxu0
    %v2112 = vadd.f32 0.0, %v2111
    %2113 = vmatmul.bf16.gmra.mxu0 %v1784
    %v2114 = vpop.f32.mrf.mxu0
    %v2115 = vadd.f32 0.0, %v2114
    %v2116 = vpop.f32.mrf.mxu0
    %v2117 = vadd.f32 0.0, %v2116
    %2118 = vmatmul.bf16.gmra.mxu0 %v1787
    %v2119 = vpop.f32.mrf.mxu0
    %v2120 = vadd.f32 0.0, %v2119
    %v2121 = vpop.f32.mrf.mxu0
    %v2122 = vadd.f32 0.0, %v2121
    %2123 = vmatmul.bf16.gmra.mxu0 %v1790
    %v2124 = vpop.f32.mrf.mxu0
    %v2125 = vadd.f32 0.0, %v2124
    %v2126 = vpop.f32.mrf.mxu0
    %v2127 = vadd.f32 0.0, %v2126
    %2128 = vmatmul.bf16.gmra.mxu0 %v1793
    %v2129 = vpop.f32.mrf.mxu0
    %v2130 = vadd.f32 0.0, %v2129
    %v2131 = vpop.f32.mrf.mxu0
    %v2132 = vadd.f32 0.0, %v2131
    %2133 = vmatmul.bf16.gmra.mxu0 %v1796
    %v2134 = vpop.f32.mrf.mxu0
    %v2135 = vadd.f32 0.0, %v2134
    %v2136 = vpop.f32.mrf.mxu0
    %v2137 = vadd.f32 0.0, %v2136
    %2138 = vmatmul.bf16.gmra.mxu0 %v1799
    %v2139 = vpop.f32.mrf.mxu0
    %v2140 = vadd.f32 0.0, %v2139
    %v2141 = vpop.f32.mrf.mxu0
    %v2142 = vadd.f32 0.0, %v2141
    %2143 = vdwg.mxu0
    %2144 = vmatpush.bf16.msra.mxu0 0
    %2145 = vmatpush.bf16.msra.mxu0 0
    %2146 = vmatpush.bf16.msra.mxu0 0
    %2147 = vmatpush.bf16.msra.mxu0 0
    %2148 = vmatpush.bf16.msra.mxu0 0
    %2149 = vmatpush.bf16.msra.mxu0 0
    %2150 = vmatpush.bf16.msra.mxu0 0
    %2151 = vmatpush.bf16.msra.mxu0 %v1768
    %2152 = vmatmul.bf16.gmra.mxu0 %v1778
    %v2153 = vpop.f32.mrf.mxu0
    %v2154 = vadd.f32 0.0, %v2153
    %v2155 = vpop.f32.mrf.mxu0
    %v2156 = vadd.f32 0.0, %v2155
    %2157 = vmatmul.bf16.gmra.mxu0 %v1781
    %v2158 = vpop.f32.mrf.mxu0
    %v2159 = vadd.f32 0.0, %v2158
    %v2160 = vpop.f32.mrf.mxu0
    %v2161 = vadd.f32 0.0, %v2160
    %2162 = vmatmul.bf16.gmra.mxu0 %v1784
    %v2163 = vpop.f32.mrf.mxu0
    %v2164 = vadd.f32 0.0, %v2163
    %v2165 = vpop.f32.mrf.mxu0
    %v2166 = vadd.f32 0.0, %v2165
    %2167 = vmatmul.bf16.gmra.mxu0 %v1787
    %v2168 = vpop.f32.mrf.mxu0
    %v2169 = vadd.f32 0.0, %v2168
    %v2170 = vpop.f32.mrf.mxu0
    %v2171 = vadd.f32 0.0, %v2170
    %2172 = vmatmul.bf16.gmra.mxu0 %v1790
    %v2173 = vpop.f32.mrf.mxu0
    %v2174 = vadd.f32 0.0, %v2173
    %v2175 = vpop.f32.mrf.mxu0
    %v2176 = vadd.f32 0.0, %v2175
    %2177 = vmatmul.bf16.gmra.mxu0 %v1793
    %v2178 = vpop.f32.mrf.mxu0
    %v2179 = vadd.f32 0.0, %v2178
    %v2180 = vpop.f32.mrf.mxu0
    %v2181 = vadd.f32 0.0, %v2180
    %2182 = vmatmul.bf16.gmra.mxu0 %v1796
    %v2183 = vpop.f32.mrf.mxu0
    %v2184 = vadd.f32 0.0, %v2183
    %v2185 = vpop.f32.mrf.mxu0
    %v2186 = vadd.f32 0.0, %v2185
    %2187 = vmatmul.bf16.gmra.mxu0 %v1799
    %v2188 = vpop.f32.mrf.mxu0
    %v2189 = vadd.f32 0.0, %v2188
    %v2190 = vpop.f32.mrf.mxu0
    %v2191 = vadd.f32 0.0, %v2190
    %2192 = vdwg.mxu0
    %v2193 = vmul.f32 %v889, %v1811
    %v2194 = vmul.f32 %v938, %v1860
    %v2195 = vmul.f32 %v987, %v1909
    %v2196 = vmul.f32 %v1036, %v1958
    %v2197 = vmul.f32 %v1085, %v2007
    %v2198 = vmul.f32 %v1134, %v2056
    %v2199 = vmul.f32 %v1183, %v2105
    %v2200 = vmul.f32 %v1232, %v2154
    %v2201 = vmul.f32 %v891, %v1813
    %v2202 = vmul.f32 %v940, %v1862
    %v2203 = vmul.f32 %v989, %v1911
    %v2204 = vmul.f32 %v1038, %v1960
    %v2205 = vmul.f32 %v1087, %v2009
    %v2206 = vmul.f32 %v1136, %v2058
    %v2207 = vmul.f32 %v1185, %v2107
    %v2208 = vmul.f32 %v1234, %v2156
    %v2209 = vmul.f32 %v894, %v1816
    %v2210 = vmul.f32 %v943, %v1865
    %v2211 = vmul.f32 %v992, %v1914
    %v2212 = vmul.f32 %v1041, %v1963
    %v2213 = vmul.f32 %v1090, %v2012
    %v2214 = vmul.f32 %v1139, %v2061
    %v2215 = vmul.f32 %v1188, %v2110
    %v2216 = vmul.f32 %v1237, %v2159
    %v2217 = vmul.f32 %v896, %v1818
    %v2218 = vmul.f32 %v945, %v1867
    %v2219 = vmul.f32 %v994, %v1916
    %v2220 = vmul.f32 %v1043, %v1965
    %v2221 = vmul.f32 %v1092, %v2014
    %v2222 = vmul.f32 %v1141, %v2063
    %v2223 = vmul.f32 %v1190, %v2112
    %v2224 = vmul.f32 %v1239, %v2161
    %v2225 = vmul.f32 %v899, %v1821
    %v2226 = vmul.f32 %v948, %v1870
    %v2227 = vmul.f32 %v997, %v1919
    %v2228 = vmul.f32 %v1046, %v1968
    %v2229 = vmul.f32 %v1095, %v2017
    %v2230 = vmul.f32 %v1144, %v2066
    %v2231 = vmul.f32 %v1193, %v2115
    %v2232 = vmul.f32 %v1242, %v2164
    %v2233 = vmul.f32 %v901, %v1823
    %v2234 = vmul.f32 %v950, %v1872
    %v2235 = vmul.f32 %v999, %v1921
    %v2236 = vmul.f32 %v1048, %v1970
    %v2237 = vmul.f32 %v1097, %v2019
    %v2238 = vmul.f32 %v1146, %v2068
    %v2239 = vmul.f32 %v1195, %v2117
    %v2240 = vmul.f32 %v1244, %v2166
    %v2241 = vmul.f32 %v904, %v1826
    %v2242 = vmul.f32 %v953, %v1875
    %v2243 = vmul.f32 %v1002, %v1924
    %v2244 = vmul.f32 %v1051, %v1973
    %v2245 = vmul.f32 %v1100, %v2022
    %v2246 = vmul.f32 %v1149, %v2071
    %v2247 = vmul.f32 %v1198, %v2120
    %v2248 = vmul.f32 %v1247, %v2169
    %v2249 = vmul.f32 %v906, %v1828
    %v2250 = vmul.f32 %v955, %v1877
    %v2251 = vmul.f32 %v1004, %v1926
    %v2252 = vmul.f32 %v1053, %v1975
    %v2253 = vmul.f32 %v1102, %v2024
    %v2254 = vmul.f32 %v1151, %v2073
    %v2255 = vmul.f32 %v1200, %v2122
    %v2256 = vmul.f32 %v1249, %v2171
    %v2257 = vmul.f32 %v909, %v1831
    %v2258 = vmul.f32 %v958, %v1880
    %v2259 = vmul.f32 %v1007, %v1929
    %v2260 = vmul.f32 %v1056, %v1978
    %v2261 = vmul.f32 %v1105, %v2027
    %v2262 = vmul.f32 %v1154, %v2076
    %v2263 = vmul.f32 %v1203, %v2125
    %v2264 = vmul.f32 %v1252, %v2174
    %v2265 = vmul.f32 %v911, %v1833
    %v2266 = vmul.f32 %v960, %v1882
    %v2267 = vmul.f32 %v1009, %v1931
    %v2268 = vmul.f32 %v1058, %v1980
    %v2269 = vmul.f32 %v1107, %v2029
    %v2270 = vmul.f32 %v1156, %v2078
    %v2271 = vmul.f32 %v1205, %v2127
    %v2272 = vmul.f32 %v1254, %v2176
    %v2273 = vmul.f32 %v914, %v1836
    %v2274 = vmul.f32 %v963, %v1885
    %v2275 = vmul.f32 %v1012, %v1934
    %v2276 = vmul.f32 %v1061, %v1983
    %v2277 = vmul.f32 %v1110, %v2032
    %v2278 = vmul.f32 %v1159, %v2081
    %v2279 = vmul.f32 %v1208, %v2130
    %v2280 = vmul.f32 %v1257, %v2179
    %v2281 = vmul.f32 %v916, %v1838
    %v2282 = vmul.f32 %v965, %v1887
    %v2283 = vmul.f32 %v1014, %v1936
    %v2284 = vmul.f32 %v1063, %v1985
    %v2285 = vmul.f32 %v1112, %v2034
    %v2286 = vmul.f32 %v1161, %v2083
    %v2287 = vmul.f32 %v1210, %v2132
    %v2288 = vmul.f32 %v1259, %v2181
    %v2289 = vmul.f32 %v919, %v1841
    %v2290 = vmul.f32 %v968, %v1890
    %v2291 = vmul.f32 %v1017, %v1939
    %v2292 = vmul.f32 %v1066, %v1988
    %v2293 = vmul.f32 %v1115, %v2037
    %v2294 = vmul.f32 %v1164, %v2086
    %v2295 = vmul.f32 %v1213, %v2135
    %v2296 = vmul.f32 %v1262, %v2184
    %v2297 = vmul.f32 %v921, %v1843
    %v2298 = vmul.f32 %v970, %v1892
    %v2299 = vmul.f32 %v1019, %v1941
    %v2300 = vmul.f32 %v1068, %v1990
    %v2301 = vmul.f32 %v1117, %v2039
    %v2302 = vmul.f32 %v1166, %v2088
    %v2303 = vmul.f32 %v1215, %v2137
    %v2304 = vmul.f32 %v1264, %v2186
    %v2305 = vmul.f32 %v924, %v1846
    %v2306 = vmul.f32 %v973, %v1895
    %v2307 = vmul.f32 %v1022, %v1944
    %v2308 = vmul.f32 %v1071, %v1993
    %v2309 = vmul.f32 %v1120, %v2042
    %v2310 = vmul.f32 %v1169, %v2091
    %v2311 = vmul.f32 %v1218, %v2140
    %v2312 = vmul.f32 %v1267, %v2189
    %v2313 = vmul.f32 %v926, %v1848
    %v2314 = vmul.f32 %v975, %v1897
    %v2315 = vmul.f32 %v1024, %v1946
    %v2316 = vmul.f32 %v1073, %v1995
    %v2317 = vmul.f32 %v1122, %v2044
    %v2318 = vmul.f32 %v1171, %v2093
    %v2319 = vmul.f32 %v1220, %v2142
    %v2320 = vmul.f32 %v1269, %v2191
    %v2321 = vpack.c.bf16 %v2201, %v2193
    %v2322 = vpack.c.bf16 %v2202, %v2194
    %v2323 = vpack.c.bf16 %v2203, %v2195
    %v2324 = vpack.c.bf16 %v2204, %v2196
    %v2325 = vpack.c.bf16 %v2205, %v2197
    %v2326 = vpack.c.bf16 %v2206, %v2198
    %v2327 = vpack.c.bf16 %v2207, %v2199
    %v2328 = vpack.c.bf16 %v2208, %v2200
    %v2329 = vpack.c.bf16 %v2217, %v2209
    %v2330 = vpack.c.bf16 %v2218, %v2210
    %v2331 = vpack.c.bf16 %v2219, %v2211
    %v2332 = vpack.c.bf16 %v2220, %v2212
    %v2333 = vpack.c.bf16 %v2221, %v2213
    %v2334 = vpack.c.bf16 %v2222, %v2214
    %v2335 = vpack.c.bf16 %v2223, %v2215
    %v2336 = vpack.c.bf16 %v2224, %v2216
    %v2337 = vpack.c.bf16 %v2233, %v2225
    %v2338 = vpack.c.bf16 %v2234, %v2226
    %v2339 = vpack.c.bf16 %v2235, %v2227
    %v2340 = vpack.c.bf16 %v2236, %v2228
    %v2341 = vpack.c.bf16 %v2237, %v2229
    %v2342 = vpack.c.bf16 %v2238, %v2230
    %v2343 = vpack.c.bf16 %v2239, %v2231
    %v2344 = vpack.c.bf16 %v2240, %v2232
    %v2345 = vpack.c.bf16 %v2249, %v2241
    %v2346 = vpack.c.bf16 %v2250, %v2242
    %v2347 = vpack.c.bf16 %v2251, %v2243
    %v2348 = vpack.c.bf16 %v2252, %v2244
    %v2349 = vpack.c.bf16 %v2253, %v2245
    %v2350 = vpack.c.bf16 %v2254, %v2246
    %v2351 = vpack.c.bf16 %v2255, %v2247
    %v2352 = vpack.c.bf16 %v2256, %v2248
    %v2353 = vpack.c.bf16 %v2265, %v2257
    %v2354 = vpack.c.bf16 %v2266, %v2258
    %v2355 = vpack.c.bf16 %v2267, %v2259
    %v2356 = vpack.c.bf16 %v2268, %v2260
    %v2357 = vpack.c.bf16 %v2269, %v2261
    %v2358 = vpack.c.bf16 %v2270, %v2262
    %v2359 = vpack.c.bf16 %v2271, %v2263
    %v2360 = vpack.c.bf16 %v2272, %v2264
    %v2361 = vpack.c.bf16 %v2281, %v2273
    %v2362 = vpack.c.bf16 %v2282, %v2274
    %v2363 = vpack.c.bf16 %v2283, %v2275
    %v2364 = vpack.c.bf16 %v2284, %v2276
    %v2365 = vpack.c.bf16 %v2285, %v2277
    %v2366 = vpack.c.bf16 %v2286, %v2278
    %v2367 = vpack.c.bf16 %v2287, %v2279
    %v2368 = vpack.c.bf16 %v2288, %v2280
    %v2369 = vpack.c.bf16 %v2297, %v2289
    %v2370 = vpack.c.bf16 %v2298, %v2290
    %v2371 = vpack.c.bf16 %v2299, %v2291
    %v2372 = vpack.c.bf16 %v2300, %v2292
    %v2373 = vpack.c.bf16 %v2301, %v2293
    %v2374 = vpack.c.bf16 %v2302, %v2294
    %v2375 = vpack.c.bf16 %v2303, %v2295
    %v2376 = vpack.c.bf16 %v2304, %v2296
    %v2377 = vpack.c.bf16 %v2313, %v2305
    %v2378 = vpack.c.bf16 %v2314, %v2306
    %v2379 = vpack.c.bf16 %v2315, %v2307
    %v2380 = vpack.c.bf16 %v2316, %v2308
    %v2381 = vpack.c.bf16 %v2317, %v2309
    %v2382 = vpack.c.bf16 %v2318, %v2310
    %v2383 = vpack.c.bf16 %v2319, %v2311
    %v2384 = vpack.c.bf16 %v2320, %v2312
    %v2513 = vunpack.c.l.b16 %v106
    %v2514 = vunpack.c.l.b16 %v107
    %v2515 = vunpack.c.l.b16 %v108
    %v2516 = vunpack.c.l.b16 %v109
    %v2517 = vunpack.c.l.b16 %v110
    %v2518 = vunpack.c.l.b16 %v111
    %v2519 = vunpack.c.l.b16 %v112
    %v2520 = vunpack.c.l.b16 %v113
    %v2521 = vunpack.c.l.b16 %v114
    %v2522 = vunpack.c.l.b16 %v115
    %v2523 = vunpack.c.l.b16 %v116
    %v2524 = vunpack.c.l.b16 %v117
    %v2525 = vunpack.c.l.b16 %v118
    %v2526 = vunpack.c.l.b16 %v119
    %v2527 = vunpack.c.l.b16 %v120
    %v2528 = vunpack.c.l.b16 %v121
    %v2529 = vunpack.c.l.b16 %v122
    %v2530 = vunpack.c.l.b16 %v123
    %v2531 = vunpack.c.l.b16 %v124
    %v2532 = vunpack.c.l.b16 %v125
    %v2533 = vunpack.c.l.b16 %v126
    %v2534 = vunpack.c.l.b16 %v127
    %v2535 = vunpack.c.l.b16 %v128
    %v2536 = vunpack.c.l.b16 %v129
    %v2537 = vunpack.c.l.b16 %v130
    %v2538 = vunpack.c.l.b16 %v131
    %v2539 = vunpack.c.l.b16 %v132
    %v2540 = vunpack.c.l.b16 %v133
    %v2541 = vunpack.c.l.b16 %v134
    %v2542 = vunpack.c.l.b16 %v135
    %v2543 = vunpack.c.l.b16 %v136
    %v2544 = vunpack.c.l.b16 %v137
    %v2545 = vunpack.c.l.b16 %v138
    %v2546 = vunpack.c.l.b16 %v139
    %v2547 = vunpack.c.l.b16 %v140
    %v2548 = vunpack.c.l.b16 %v141
    %v2549 = vunpack.c.l.b16 %v142
    %v2550 = vunpack.c.l.b16 %v143
    %v2551 = vunpack.c.l.b16 %v144
    %v2552 = vunpack.c.l.b16 %v145
    %v2553 = vunpack.c.l.b16 %v146
    %v2554 = vunpack.c.l.b16 %v147
    %v2555 = vunpack.c.l.b16 %v148
    %v2556 = vunpack.c.l.b16 %v149
    %v2557 = vunpack.c.l.b16 %v150
    %v2558 = vunpack.c.l.b16 %v151
    %v2559 = vunpack.c.l.b16 %v152
    %v2560 = vunpack.c.l.b16 %v153
    %v2561 = vunpack.c.l.b16 %v154
    %v2562 = vunpack.c.l.b16 %v155
    %v2563 = vunpack.c.l.b16 %v156
    %v2564 = vunpack.c.l.b16 %v157
    %v2565 = vunpack.c.l.b16 %v158
    %v2566 = vunpack.c.l.b16 %v159
    %v2567 = vunpack.c.l.b16 %v160
    %v2568 = vunpack.c.l.b16 %v161
    %v2569 = vunpack.c.l.b16 %v162
    %v2570 = vunpack.c.l.b16 %v163
    %v2571 = vunpack.c.l.b16 %v164
    %v2572 = vunpack.c.l.b16 %v165
    %v2573 = vunpack.c.l.b16 %v166
    %v2574 = vunpack.c.l.b16 %v167
    %v2575 = vunpack.c.l.b16 %v168
    %v2576 = vunpack.c.l.b16 %v169
    %v2577 = vunpack.c.l.b16 %v170
    %v2578 = vunpack.c.l.b16 %v171
    %v2579 = vunpack.c.l.b16 %v172
    %v2580 = vunpack.c.l.b16 %v173
    %v2581 = vunpack.c.l.b16 %v174
    %v2582 = vunpack.c.l.b16 %v175
    %v2583 = vunpack.c.l.b16 %v176
    %v2584 = vunpack.c.l.b16 %v177
    %v2585 = vunpack.c.l.b16 %v178
    %v2586 = vunpack.c.l.b16 %v179
    %v2587 = vunpack.c.l.b16 %v180
    %v2588 = vunpack.c.l.b16 %v181
    %v2589 = vunpack.c.l.b16 %v182
    %v2590 = vunpack.c.l.b16 %v183
    %v2591 = vunpack.c.l.b16 %v184
    %v2592 = vunpack.c.l.b16 %v185
    %v2593 = vunpack.c.l.b16 %v186
    %v2594 = vunpack.c.l.b16 %v187
    %v2595 = vunpack.c.l.b16 %v188
    %v2596 = vunpack.c.l.b16 %v189
    %v2597 = vunpack.c.l.b16 %v190
    %v2598 = vunpack.c.l.b16 %v191
    %v2599 = vunpack.c.l.b16 %v192
    %v2600 = vunpack.c.l.b16 %v193
    %v2601 = vunpack.c.l.b16 %v194
    %v2602 = vunpack.c.l.b16 %v195
    %v2603 = vunpack.c.l.b16 %v196
    %v2604 = vunpack.c.l.b16 %v197
    %v2605 = vunpack.c.l.b16 %v198
    %v2606 = vunpack.c.l.b16 %v199
    %v2607 = vunpack.c.l.b16 %v200
    %v2608 = vunpack.c.l.b16 %v201
    %v2609 = vunpack.c.l.b16 %v202
    %v2610 = vunpack.c.l.b16 %v203
    %v2611 = vunpack.c.l.b16 %v204
    %v2612 = vunpack.c.l.b16 %v205
    %v2613 = vunpack.c.l.b16 %v206
    %v2614 = vunpack.c.l.b16 %v207
    %v2615 = vunpack.c.l.b16 %v208
    %v2616 = vunpack.c.l.b16 %v209
    %v2617 = vunpack.c.l.b16 %v210
    %v2618 = vunpack.c.l.b16 %v211
    %v2619 = vunpack.c.l.b16 %v212
    %v2620 = vunpack.c.l.b16 %v213
    %v2621 = vunpack.c.l.b16 %v214
    %v2622 = vunpack.c.l.b16 %v215
    %v2623 = vunpack.c.l.b16 %v216
    %v2624 = vunpack.c.l.b16 %v217
    %v2625 = vunpack.c.l.b16 %v218
    %v2626 = vunpack.c.l.b16 %v219
    %v2627 = vunpack.c.l.b16 %v220
    %v2628 = vunpack.c.l.b16 %v221
    %v2629 = vunpack.c.l.b16 %v222
    %v2630 = vunpack.c.l.b16 %v223
    %v2631 = vunpack.c.l.b16 %v224
    %v2632 = vunpack.c.l.b16 %v225
    %v2633 = vunpack.c.l.b16 %v226
    %v2634 = vunpack.c.l.b16 %v227
    %v2635 = vunpack.c.l.b16 %v228
    %v2636 = vunpack.c.l.b16 %v229
    %v2637 = vunpack.c.l.b16 %v230
    %v2638 = vunpack.c.l.b16 %v231
    %v2639 = vunpack.c.l.b16 %v232
    %v2640 = vunpack.c.l.b16 %v233
    %v2641 = vpack.c.b16 %v2514, %v2513
    %v2642 = vpack.c.b16 %v2516, %v2515
    %v2643 = vpack.c.b16 %v2518, %v2517
    %v2644 = vpack.c.b16 %v2520, %v2519
    %v2645 = vpack.c.b16 %v2522, %v2521
    %v2646 = vpack.c.b16 %v2524, %v2523
    %v2647 = vpack.c.b16 %v2526, %v2525
    %v2648 = vpack.c.b16 %v2528, %v2527
    %v2649 = vpack.c.b16 %v2530, %v2529
    %v2650 = vpack.c.b16 %v2532, %v2531
    %v2651 = vpack.c.b16 %v2534, %v2533
    %v2652 = vpack.c.b16 %v2536, %v2535
    %v2653 = vpack.c.b16 %v2538, %v2537
    %v2654 = vpack.c.b16 %v2540, %v2539
    %v2655 = vpack.c.b16 %v2542, %v2541
    %v2656 = vpack.c.b16 %v2544, %v2543
    %v2657 = vpack.c.b16 %v2546, %v2545
    %v2658 = vpack.c.b16 %v2548, %v2547
    %v2659 = vpack.c.b16 %v2550, %v2549
    %v2660 = vpack.c.b16 %v2552, %v2551
    %v2661 = vpack.c.b16 %v2554, %v2553
    %v2662 = vpack.c.b16 %v2556, %v2555
    %v2663 = vpack.c.b16 %v2558, %v2557
    %v2664 = vpack.c.b16 %v2560, %v2559
    %v2665 = vpack.c.b16 %v2562, %v2561
    %v2666 = vpack.c.b16 %v2564, %v2563
    %v2667 = vpack.c.b16 %v2566, %v2565
    %v2668 = vpack.c.b16 %v2568, %v2567
    %v2669 = vpack.c.b16 %v2570, %v2569
    %v2670 = vpack.c.b16 %v2572, %v2571
    %v2671 = vpack.c.b16 %v2574, %v2573
    %v2672 = vpack.c.b16 %v2576, %v2575
    %v2673 = vpack.c.b16 %v2578, %v2577
    %v2674 = vpack.c.b16 %v2580, %v2579
    %v2675 = vpack.c.b16 %v2582, %v2581
    %v2676 = vpack.c.b16 %v2584, %v2583
    %v2677 = vpack.c.b16 %v2586, %v2585
    %v2678 = vpack.c.b16 %v2588, %v2587
    %v2679 = vpack.c.b16 %v2590, %v2589
    %v2680 = vpack.c.b16 %v2592, %v2591
    %v2681 = vpack.c.b16 %v2594, %v2593
    %v2682 = vpack.c.b16 %v2596, %v2595
    %v2683 = vpack.c.b16 %v2598, %v2597
    %v2684 = vpack.c.b16 %v2600, %v2599
    %v2685 = vpack.c.b16 %v2602, %v2601
    %v2686 = vpack.c.b16 %v2604, %v2603
    %v2687 = vpack.c.b16 %v2606, %v2605
    %v2688 = vpack.c.b16 %v2608, %v2607
    %v2689 = vpack.c.b16 %v2610, %v2609
    %v2690 = vpack.c.b16 %v2612, %v2611
    %v2691 = vpack.c.b16 %v2614, %v2613
    %v2692 = vpack.c.b16 %v2616, %v2615
    %v2693 = vpack.c.b16 %v2618, %v2617
    %v2694 = vpack.c.b16 %v2620, %v2619
    %v2695 = vpack.c.b16 %v2622, %v2621
    %v2696 = vpack.c.b16 %v2624, %v2623
    %v2697 = vpack.c.b16 %v2626, %v2625
    %v2698 = vpack.c.b16 %v2628, %v2627
    %v2699 = vpack.c.b16 %v2630, %v2629
    %v2700 = vpack.c.b16 %v2632, %v2631
    %v2701 = vpack.c.b16 %v2634, %v2633
    %v2702 = vpack.c.b16 %v2636, %v2635
    %v2703 = vpack.c.b16 %v2638, %v2637
    %v2704 = vpack.c.b16 %v2640, %v2639
    %2769 = vmatpush.bf16.msra.mxu0 %v2648
    %2770 = vmatpush.bf16.msra.mxu0 %v2647
    %2771 = vmatpush.bf16.msra.mxu0 %v2646
    %2772 = vmatpush.bf16.msra.mxu0 %v2645
    %2773 = vmatpush.bf16.msra.mxu0 %v2644
    %2774 = vmatpush.bf16.msra.mxu0 %v2643
    %2775 = vmatpush.bf16.msra.mxu0 %v2642
    %2776 = vmatpush.bf16.msra.mxu0 %v2641
    %2777 = vmatmul.bf16.gmra.mxu0 %v2321
    %v2778 = vpop.f32.mrf.mxu0
    %v2779 = vadd.f32 0.0, %v2778
    %v2780 = vpop.f32.mrf.mxu0
    %v2781 = vadd.f32 0.0, %v2780
    %2782 = vmatmul.bf16.gmra.mxu0 %v2329
    %v2783 = vpop.f32.mrf.mxu0
    %v2784 = vadd.f32 0.0, %v2783
    %v2785 = vpop.f32.mrf.mxu0
    %v2786 = vadd.f32 0.0, %v2785
    %2787 = vmatmul.bf16.gmra.mxu0 %v2337
    %v2788 = vpop.f32.mrf.mxu0
    %v2789 = vadd.f32 0.0, %v2788
    %v2790 = vpop.f32.mrf.mxu0
    %v2791 = vadd.f32 0.0, %v2790
    %2792 = vmatmul.bf16.gmra.mxu0 %v2345
    %v2793 = vpop.f32.mrf.mxu0
    %v2794 = vadd.f32 0.0, %v2793
    %v2795 = vpop.f32.mrf.mxu0
    %v2796 = vadd.f32 0.0, %v2795
    %2797 = vmatmul.bf16.gmra.mxu0 %v2353
    %v2798 = vpop.f32.mrf.mxu0
    %v2799 = vadd.f32 0.0, %v2798
    %v2800 = vpop.f32.mrf.mxu0
    %v2801 = vadd.f32 0.0, %v2800
    %2802 = vmatmul.bf16.gmra.mxu0 %v2361
    %v2803 = vpop.f32.mrf.mxu0
    %v2804 = vadd.f32 0.0, %v2803
    %v2805 = vpop.f32.mrf.mxu0
    %v2806 = vadd.f32 0.0, %v2805
    %2807 = vmatmul.bf16.gmra.mxu0 %v2369
    %v2808 = vpop.f32.mrf.mxu0
    %v2809 = vadd.f32 0.0, %v2808
    %v2810 = vpop.f32.mrf.mxu0
    %v2811 = vadd.f32 0.0, %v2810
    %2812 = vmatmul.bf16.gmra.mxu0 %v2377
    %v2813 = vpop.f32.mrf.mxu0
    %v2814 = vadd.f32 0.0, %v2813
    %v2815 = vpop.f32.mrf.mxu0
    %v2816 = vadd.f32 0.0, %v2815
    %2817 = vdwg.mxu0
    %2818 = vmatpush.bf16.msra.mxu0 %v2656
    %2819 = vmatpush.bf16.msra.mxu0 %v2655
    %2820 = vmatpush.bf16.msra.mxu0 %v2654
    %2821 = vmatpush.bf16.msra.mxu0 %v2653
    %2822 = vmatpush.bf16.msra.mxu0 %v2652
    %2823 = vmatpush.bf16.msra.mxu0 %v2651
    %2824 = vmatpush.bf16.msra.mxu0 %v2650
    %2825 = vmatpush.bf16.msra.mxu0 %v2649
    %2826 = vmatmul.bf16.gmra.mxu0 %v2322
    %v2827 = vpop.f32.mrf.mxu0
    %v2828 = vadd.f32 %v2779, %v2827
    %v2829 = vpop.f32.mrf.mxu0
    %v2830 = vadd.f32 %v2781, %v2829
    %2831 = vmatmul.bf16.gmra.mxu0 %v2330
    %v2832 = vpop.f32.mrf.mxu0
    %v2833 = vadd.f32 %v2784, %v2832
    %v2834 = vpop.f32.mrf.mxu0
    %v2835 = vadd.f32 %v2786, %v2834
    %2836 = vmatmul.bf16.gmra.mxu0 %v2338
    %v2837 = vpop.f32.mrf.mxu0
    %v2838 = vadd.f32 %v2789, %v2837
    %v2839 = vpop.f32.mrf.mxu0
    %v2840 = vadd.f32 %v2791, %v2839
    %2841 = vmatmul.bf16.gmra.mxu0 %v2346
    %v2842 = vpop.f32.mrf.mxu0
    %v2843 = vadd.f32 %v2794, %v2842
    %v2844 = vpop.f32.mrf.mxu0
    %v2845 = vadd.f32 %v2796, %v2844
    %2846 = vmatmul.bf16.gmra.mxu0 %v2354
    %v2847 = vpop.f32.mrf.mxu0
    %v2848 = vadd.f32 %v2799, %v2847
    %v2849 = vpop.f32.mrf.mxu0
    %v2850 = vadd.f32 %v2801, %v2849
    %2851 = vmatmul.bf16.gmra.mxu0 %v2362
    %v2852 = vpop.f32.mrf.mxu0
    %v2853 = vadd.f32 %v2804, %v2852
    %v2854 = vpop.f32.mrf.mxu0
    %v2855 = vadd.f32 %v2806, %v2854
    %2856 = vmatmul.bf16.gmra.mxu0 %v2370
    %v2857 = vpop.f32.mrf.mxu0
    %v2858 = vadd.f32 %v2809, %v2857
    %v2859 = vpop.f32.mrf.mxu0
    %v2860 = vadd.f32 %v2811, %v2859
    %2861 = vmatmul.bf16.gmra.mxu0 %v2378
    %v2862 = vpop.f32.mrf.mxu0
    %v2863 = vadd.f32 %v2814, %v2862
    %v2864 = vpop.f32.mrf.mxu0
    %v2865 = vadd.f32 %v2816, %v2864
    %2866 = vdwg.mxu0
    %2867 = vmatpush.bf16.msra.mxu0 %v2664
    %2868 = vmatpush.bf16.msra.mxu0 %v2663
    %2869 = vmatpush.bf16.msra.mxu0 %v2662
    %2870 = vmatpush.bf16.msra.mxu0 %v2661
    %2871 = vmatpush.bf16.msra.mxu0 %v2660
    %2872 = vmatpush.bf16.msra.mxu0 %v2659
    %2873 = vmatpush.bf16.msra.mxu0 %v2658
    %2874 = vmatpush.bf16.msra.mxu0 %v2657
    %2875 = vmatmul.bf16.gmra.mxu0 %v2323
    %v2876 = vpop.f32.mrf.mxu0
    %v2877 = vadd.f32 %v2828, %v2876
    %v2878 = vpop.f32.mrf.mxu0
    %v2879 = vadd.f32 %v2830, %v2878
    %2880 = vmatmul.bf16.gmra.mxu0 %v2331
    %v2881 = vpop.f32.mrf.mxu0
    %v2882 = vadd.f32 %v2833, %v2881
    %v2883 = vpop.f32.mrf.mxu0
    %v2884 = vadd.f32 %v2835, %v2883
    %2885 = vmatmul.bf16.gmra.mxu0 %v2339
    %v2886 = vpop.f32.mrf.mxu0
    %v2887 = vadd.f32 %v2838, %v2886
    %v2888 = vpop.f32.mrf.mxu0
    %v2889 = vadd.f32 %v2840, %v2888
    %2890 = vmatmul.bf16.gmra.mxu0 %v2347
    %v2891 = vpop.f32.mrf.mxu0
    %v2892 = vadd.f32 %v2843, %v2891
    %v2893 = vpop.f32.mrf.mxu0
    %v2894 = vadd.f32 %v2845, %v2893
    %2895 = vmatmul.bf16.gmra.mxu0 %v2355
    %v2896 = vpop.f32.mrf.mxu0
    %v2897 = vadd.f32 %v2848, %v2896
    %v2898 = vpop.f32.mrf.mxu0
    %v2899 = vadd.f32 %v2850, %v2898
    %2900 = vmatmul.bf16.gmra.mxu0 %v2363
    %v2901 = vpop.f32.mrf.mxu0
    %v2902 = vadd.f32 %v2853, %v2901
    %v2903 = vpop.f32.mrf.mxu0
    %v2904 = vadd.f32 %v2855, %v2903
    %2905 = vmatmul.bf16.gmra.mxu0 %v2371
    %v2906 = vpop.f32.mrf.mxu0
    %v2907 = vadd.f32 %v2858, %v2906
    %v2908 = vpop.f32.mrf.mxu0
    %v2909 = vadd.f32 %v2860, %v2908
    %2910 = vmatmul.bf16.gmra.mxu0 %v2379
    %v2911 = vpop.f32.mrf.mxu0
    %v2912 = vadd.f32 %v2863, %v2911
    %v2913 = vpop.f32.mrf.mxu0
    %v2914 = vadd.f32 %v2865, %v2913
    %2915 = vdwg.mxu0
    %2916 = vmatpush.bf16.msra.mxu0 %v2672
    %2917 = vmatpush.bf16.msra.mxu0 %v2671
    %2918 = vmatpush.bf16.msra.mxu0 %v2670
    %2919 = vmatpush.bf16.msra.mxu0 %v2669
    %2920 = vmatpush.bf16.msra.mxu0 %v2668
    %2921 = vmatpush.bf16.msra.mxu0 %v2667
    %2922 = vmatpush.bf16.msra.mxu0 %v2666
    %2923 = vmatpush.bf16.msra.mxu0 %v2665
    %2924 = vmatmul.bf16.gmra.mxu0 %v2324
    %v2925 = vpop.f32.mrf.mxu0
    %v2926 = vadd.f32 %v2877, %v2925
    %v2927 = vpop.f32.mrf.mxu0
    %v2928 = vadd.f32 %v2879, %v2927
    %2929 = vmatmul.bf16.gmra.mxu0 %v2332
    %v2930 = vpop.f32.mrf.mxu0
    %v2931 = vadd.f32 %v2882, %v2930
    %v2932 = vpop.f32.mrf.mxu0
    %v2933 = vadd.f32 %v2884, %v2932
    %2934 = vmatmul.bf16.gmra.mxu0 %v2340
    %v2935 = vpop.f32.mrf.mxu0
    %v2936 = vadd.f32 %v2887, %v2935
    %v2937 = vpop.f32.mrf.mxu0
    %v2938 = vadd.f32 %v2889, %v2937
    %2939 = vmatmul.bf16.gmra.mxu0 %v2348
    %v2940 = vpop.f32.mrf.mxu0
    %v2941 = vadd.f32 %v2892, %v2940
    %v2942 = vpop.f32.mrf.mxu0
    %v2943 = vadd.f32 %v2894, %v2942
    %2944 = vmatmul.bf16.gmra.mxu0 %v2356
    %v2945 = vpop.f32.mrf.mxu0
    %v2946 = vadd.f32 %v2897, %v2945
    %v2947 = vpop.f32.mrf.mxu0
    %v2948 = vadd.f32 %v2899, %v2947
    %2949 = vmatmul.bf16.gmra.mxu0 %v2364
    %v2950 = vpop.f32.mrf.mxu0
    %v2951 = vadd.f32 %v2902, %v2950
    %v2952 = vpop.f32.mrf.mxu0
    %v2953 = vadd.f32 %v2904, %v2952
    %2954 = vmatmul.bf16.gmra.mxu0 %v2372
    %v2955 = vpop.f32.mrf.mxu0
    %v2956 = vadd.f32 %v2907, %v2955
    %v2957 = vpop.f32.mrf.mxu0
    %v2958 = vadd.f32 %v2909, %v2957
    %2959 = vmatmul.bf16.gmra.mxu0 %v2380
    %v2960 = vpop.f32.mrf.mxu0
    %v2961 = vadd.f32 %v2912, %v2960
    %v2962 = vpop.f32.mrf.mxu0
    %v2963 = vadd.f32 %v2914, %v2962
    %2964 = vdwg.mxu0
    %2965 = vmatpush.bf16.msra.mxu0 %v2680
    %2966 = vmatpush.bf16.msra.mxu0 %v2679
    %2967 = vmatpush.bf16.msra.mxu0 %v2678
    %2968 = vmatpush.bf16.msra.mxu0 %v2677
    %2969 = vmatpush.bf16.msra.mxu0 %v2676
    %2970 = vmatpush.bf16.msra.mxu0 %v2675
    %2971 = vmatpush.bf16.msra.mxu0 %v2674
    %2972 = vmatpush.bf16.msra.mxu0 %v2673
    %2973 = vmatmul.bf16.gmra.mxu0 %v2325
    %v2974 = vpop.f32.mrf.mxu0
    %v2975 = vadd.f32 %v2926, %v2974
    %v2976 = vpop.f32.mrf.mxu0
    %v2977 = vadd.f32 %v2928, %v2976
    %2978 = vmatmul.bf16.gmra.mxu0 %v2333
    %v2979 = vpop.f32.mrf.mxu0
    %v2980 = vadd.f32 %v2931, %v2979
    %v2981 = vpop.f32.mrf.mxu0
    %v2982 = vadd.f32 %v2933, %v2981
    %2983 = vmatmul.bf16.gmra.mxu0 %v2341
    %v2984 = vpop.f32.mrf.mxu0
    %v2985 = vadd.f32 %v2936, %v2984
    %v2986 = vpop.f32.mrf.mxu0
    %v2987 = vadd.f32 %v2938, %v2986
    %2988 = vmatmul.bf16.gmra.mxu0 %v2349
    %v2989 = vpop.f32.mrf.mxu0
    %v2990 = vadd.f32 %v2941, %v2989
    %v2991 = vpop.f32.mrf.mxu0
    %v2992 = vadd.f32 %v2943, %v2991
    %2993 = vmatmul.bf16.gmra.mxu0 %v2357
    %v2994 = vpop.f32.mrf.mxu0
    %v2995 = vadd.f32 %v2946, %v2994
    %v2996 = vpop.f32.mrf.mxu0
    %v2997 = vadd.f32 %v2948, %v2996
    %2998 = vmatmul.bf16.gmra.mxu0 %v2365
    %v2999 = vpop.f32.mrf.mxu0
    %v3000 = vadd.f32 %v2951, %v2999
    %v3001 = vpop.f32.mrf.mxu0
    %v3002 = vadd.f32 %v2953, %v3001
    %3003 = vmatmul.bf16.gmra.mxu0 %v2373
    %v3004 = vpop.f32.mrf.mxu0
    %v3005 = vadd.f32 %v2956, %v3004
    %v3006 = vpop.f32.mrf.mxu0
    %v3007 = vadd.f32 %v2958, %v3006
    %3008 = vmatmul.bf16.gmra.mxu0 %v2381
    %v3009 = vpop.f32.mrf.mxu0
    %v3010 = vadd.f32 %v2961, %v3009
    %v3011 = vpop.f32.mrf.mxu0
    %v3012 = vadd.f32 %v2963, %v3011
    %3013 = vdwg.mxu0
    %3014 = vmatpush.bf16.msra.mxu0 %v2688
    %3015 = vmatpush.bf16.msra.mxu0 %v2687
    %3016 = vmatpush.bf16.msra.mxu0 %v2686
    %3017 = vmatpush.bf16.msra.mxu0 %v2685
    %3018 = vmatpush.bf16.msra.mxu0 %v2684
    %3019 = vmatpush.bf16.msra.mxu0 %v2683
    %3020 = vmatpush.bf16.msra.mxu0 %v2682
    %3021 = vmatpush.bf16.msra.mxu0 %v2681
    %3022 = vmatmul.bf16.gmra.mxu0 %v2326
    %v3023 = vpop.f32.mrf.mxu0
    %v3024 = vadd.f32 %v2975, %v3023
    %v3025 = vpop.f32.mrf.mxu0
    %v3026 = vadd.f32 %v2977, %v3025
    %3027 = vmatmul.bf16.gmra.mxu0 %v2334
    %v3028 = vpop.f32.mrf.mxu0
    %v3029 = vadd.f32 %v2980, %v3028
    %v3030 = vpop.f32.mrf.mxu0
    %v3031 = vadd.f32 %v2982, %v3030
    %3032 = vmatmul.bf16.gmra.mxu0 %v2342
    %v3033 = vpop.f32.mrf.mxu0
    %v3034 = vadd.f32 %v2985, %v3033
    %v3035 = vpop.f32.mrf.mxu0
    %v3036 = vadd.f32 %v2987, %v3035
    %3037 = vmatmul.bf16.gmra.mxu0 %v2350
    %v3038 = vpop.f32.mrf.mxu0
    %v3039 = vadd.f32 %v2990, %v3038
    %v3040 = vpop.f32.mrf.mxu0
    %v3041 = vadd.f32 %v2992, %v3040
    %3042 = vmatmul.bf16.gmra.mxu0 %v2358
    %v3043 = vpop.f32.mrf.mxu0
    %v3044 = vadd.f32 %v2995, %v3043
    %v3045 = vpop.f32.mrf.mxu0
    %v3046 = vadd.f32 %v2997, %v3045
    %3047 = vmatmul.bf16.gmra.mxu0 %v2366
    %v3048 = vpop.f32.mrf.mxu0
    %v3049 = vadd.f32 %v3000, %v3048
    %v3050 = vpop.f32.mrf.mxu0
    %v3051 = vadd.f32 %v3002, %v3050
    %3052 = vmatmul.bf16.gmra.mxu0 %v2374
    %v3053 = vpop.f32.mrf.mxu0
    %v3054 = vadd.f32 %v3005, %v3053
    %v3055 = vpop.f32.mrf.mxu0
    %v3056 = vadd.f32 %v3007, %v3055
    %3057 = vmatmul.bf16.gmra.mxu0 %v2382
    %v3058 = vpop.f32.mrf.mxu0
    %v3059 = vadd.f32 %v3010, %v3058
    %v3060 = vpop.f32.mrf.mxu0
    %v3061 = vadd.f32 %v3012, %v3060
    %3062 = vdwg.mxu0
    %3063 = vmatpush.bf16.msra.mxu0 %v2696
    %3064 = vmatpush.bf16.msra.mxu0 %v2695
    %3065 = vmatpush.bf16.msra.mxu0 %v2694
    %3066 = vmatpush.bf16.msra.mxu0 %v2693
    %3067 = vmatpush.bf16.msra.mxu0 %v2692
    %3068 = vmatpush.bf16.msra.mxu0 %v2691
    %3069 = vmatpush.bf16.msra.mxu0 %v2690
    %3070 = vmatpush.bf16.msra.mxu0 %v2689
    %3071 = vmatmul.bf16.gmra.mxu0 %v2327
    %v3072 = vpop.f32.mrf.mxu0
    %v3073 = vadd.f32 %v3024, %v3072
    %v3074 = vpop.f32.mrf.mxu0
    %v3075 = vadd.f32 %v3026, %v3074
    %3076 = vmatmul.bf16.gmra.mxu0 %v2335
    %v3077 = vpop.f32.mrf.mxu0
    %v3078 = vadd.f32 %v3029, %v3077
    %v3079 = vpop.f32.mrf.mxu0
    %v3080 = vadd.f32 %v3031, %v3079
    %3081 = vmatmul.bf16.gmra.mxu0 %v2343
    %v3082 = vpop.f32.mrf.mxu0
    %v3083 = vadd.f32 %v3034, %v3082
    %v3084 = vpop.f32.mrf.mxu0
    %v3085 = vadd.f32 %v3036, %v3084
    %3086 = vmatmul.bf16.gmra.mxu0 %v2351
    %v3087 = vpop.f32.mrf.mxu0
    %v3088 = vadd.f32 %v3039, %v3087
    %v3089 = vpop.f32.mrf.mxu0
    %v3090 = vadd.f32 %v3041, %v3089
    %3091 = vmatmul.bf16.gmra.mxu0 %v2359
    %v3092 = vpop.f32.mrf.mxu0
    %v3093 = vadd.f32 %v3044, %v3092
    %v3094 = vpop.f32.mrf.mxu0
    %v3095 = vadd.f32 %v3046, %v3094
    %3096 = vmatmul.bf16.gmra.mxu0 %v2367
    %v3097 = vpop.f32.mrf.mxu0
    %v3098 = vadd.f32 %v3049, %v3097
    %v3099 = vpop.f32.mrf.mxu0
    %v3100 = vadd.f32 %v3051, %v3099
    %3101 = vmatmul.bf16.gmra.mxu0 %v2375
    %v3102 = vpop.f32.mrf.mxu0
    %v3103 = vadd.f32 %v3054, %v3102
    %v3104 = vpop.f32.mrf.mxu0
    %v3105 = vadd.f32 %v3056, %v3104
    %3106 = vmatmul.bf16.gmra.mxu0 %v2383
    %v3107 = vpop.f32.mrf.mxu0
    %v3108 = vadd.f32 %v3059, %v3107
    %v3109 = vpop.f32.mrf.mxu0
    %v3110 = vadd.f32 %v3061, %v3109
    %3111 = vdwg.mxu0
    %3112 = vmatpush.bf16.msra.mxu0 %v2704
    %3113 = vmatpush.bf16.msra.mxu0 %v2703
    %3114 = vmatpush.bf16.msra.mxu0 %v2702
    %3115 = vmatpush.bf16.msra.mxu0 %v2701
    %3116 = vmatpush.bf16.msra.mxu0 %v2700
    %3117 = vmatpush.bf16.msra.mxu0 %v2699
    %3118 = vmatpush.bf16.msra.mxu0 %v2698
    %3119 = vmatpush.bf16.msra.mxu0 %v2697
    %3120 = vmatmul.bf16.gmra.mxu0 %v2328
    %v3121 = vpop.f32.mrf.mxu0
    %v3122 = vadd.f32 %v3073, %v3121
    %v3123 = vpop.f32.mrf.mxu0
    %v3124 = vadd.f32 %v3075, %v3123
    %3125 = vmatmul.bf16.gmra.mxu0 %v2336
    %v3126 = vpop.f32.mrf.mxu0
    %v3127 = vadd.f32 %v3078, %v3126
    %v3128 = vpop.f32.mrf.mxu0
    %v3129 = vadd.f32 %v3080, %v3128
    %3130 = vmatmul.bf16.gmra.mxu0 %v2344
    %v3131 = vpop.f32.mrf.mxu0
    %v3132 = vadd.f32 %v3083, %v3131
    %v3133 = vpop.f32.mrf.mxu0
    %v3134 = vadd.f32 %v3085, %v3133
    %3135 = vmatmul.bf16.gmra.mxu0 %v2352
    %v3136 = vpop.f32.mrf.mxu0
    %v3137 = vadd.f32 %v3088, %v3136
    %v3138 = vpop.f32.mrf.mxu0
    %v3139 = vadd.f32 %v3090, %v3138
    %3140 = vmatmul.bf16.gmra.mxu0 %v2360
    %v3141 = vpop.f32.mrf.mxu0
    %v3142 = vadd.f32 %v3093, %v3141
    %v3143 = vpop.f32.mrf.mxu0
    %v3144 = vadd.f32 %v3095, %v3143
    %3145 = vmatmul.bf16.gmra.mxu0 %v2368
    %v3146 = vpop.f32.mrf.mxu0
    %v3147 = vadd.f32 %v3098, %v3146
    %v3148 = vpop.f32.mrf.mxu0
    %v3149 = vadd.f32 %v3100, %v3148
    %3150 = vmatmul.bf16.gmra.mxu0 %v2376
    %v3151 = vpop.f32.mrf.mxu0
    %v3152 = vadd.f32 %v3103, %v3151
    %v3153 = vpop.f32.mrf.mxu0
    %v3154 = vadd.f32 %v3105, %v3153
    %3155 = vmatmul.bf16.gmra.mxu0 %v2384
    %v3156 = vpop.f32.mrf.mxu0
    %v3157 = vadd.f32 %v3108, %v3156
    %v3158 = vpop.f32.mrf.mxu0
    %v3159 = vadd.f32 %v3110, %v3158
    %3160 = vdwg.mxu0
    %v3161 = vpack.c.bf16 %v3124, %v3122
    %v3162 = vpack.c.bf16 %v3129, %v3127
    %v3163 = vpack.c.bf16 %v3134, %v3132
    %v3164 = vpack.c.bf16 %v3139, %v3137
    %v3165 = vpack.c.bf16 %v3144, %v3142
    %v3166 = vpack.c.bf16 %v3149, %v3147
    %v3167 = vpack.c.bf16 %v3154, %v3152
    %v3168 = vpack.c.bf16 %v3159, %v3157
    %v3170 = vperm.slane %v286, 0
    %3172 = vmatpush.bf16.msra.mxu0 %v3168
    %3173 = vmatpush.bf16.msra.mxu0 %v3167
    %3174 = vmatpush.bf16.msra.mxu0 %v3166
    %3175 = vmatpush.bf16.msra.mxu0 %v3165
    %3176 = vmatpush.bf16.msra.mxu0 %v3164
    %3177 = vmatpush.bf16.msra.mxu0 %v3163
    %3178 = vmatpush.bf16.msra.mxu0 %v3162
    %3179 = vmatpush.bf16.msra.mxu0 %v3161
    %3180 = vmatmul.bf16.gmra.mxu0 %v1623
    %v3181 = vpop.f32.mrf.mxu0
    %v3182 = vadd.f32 %v3170, %v3181
    %v3183 = vpop.f32.mrf.mxu0
    %v3184 = vadd.f32 %v3170, %v3183
    %3185 = vmatmul.bf16.gmra.mxu0 %v1624
    %v3186 = vpop.f32.mrf.mxu0
    %v3187 = vadd.f32 %v3170, %v3186
    %v3188 = vpop.f32.mrf.mxu0
    %v3189 = vadd.f32 %v3170, %v3188
    %3190 = vdwg.mxu0
    %v3191 = vmax.f32 %v3182, 0.0
    %v3192 = vmax.f32 %v3184, 0.0
    %v3193 = vmax.f32 %v3187, 0.0
    %v3194 = vmax.f32 %v3189, 0.0
    %v3195 = vpack.c.bf16 %v3192, %v3191
    %v3196 = vpack.c.bf16 %v3194, %v3193
    %v3197 = vld [vmem:[%s8] sm:$0xff]
    %v3198 = vld [vmem:[%s8 + $0x8] sm:$0xff]
    %v3199 = vld [vmem:[%s8 + $0x10] sm:$0xff]
    %v3200 = vld [vmem:[%s8 + $0x18] sm:$0xff]
    %v3201 = vld [vmem:[%s8 + $0x20] sm:$0xf]
    %v3202 = vld [vmem:[%s8 + $0x24] sm:$0xff]
    %v3203 = vld [vmem:[%s8 + $0x2c] sm:$0xff]
    %v3204 = vld [vmem:[%s8 + $0x34] sm:$0xff]
    %v3205 = vld [vmem:[%s8 + $0x3c] sm:$0xff]
    %v3206 = vld [vmem:[%s8 + $0x44] sm:$0xf]
    %v3207 = vld [vmem:[%s8 + $0x48] sm:$0xff]
    %v3208 = vld [vmem:[%s8 + $0x50] sm:$0xff]
    %v3209 = vld [vmem:[%s8 + $0x58] sm:$0xff]
    %v3210 = vld [vmem:[%s8 + $0x60] sm:$0xff]
    %v3211 = vld [vmem:[%s8 + $0x68] sm:$0xf]
    %v3212 = vld [vmem:[%s8 + $0x6c] sm:$0xff]
    %v3213 = vld [vmem:[%s8 + $0x74] sm:$0xff]
    %v3214 = vld [vmem:[%s8 + $0x7c] sm:$0xff]
    %v3215 = vld [vmem:[%s8 + $0x84] sm:$0xff]
    %v3216 = vld [vmem:[%s8 + $0x8c] sm:$0xf]
    %v3217 = vld [vmem:[%s8 + $0x90] sm:$0xff]
    %v3218 = vld [vmem:[%s8 + $0x98] sm:$0xff]
    %v3219 = vld [vmem:[%s8 + $0xa0] sm:$0xff]
    %v3220 = vld [vmem:[%s8 + $0xa8] sm:$0xff]
    %v3221 = vld [vmem:[%s8 + $0xb0] sm:$0xf]
    %v3222 = vld [vmem:[%s8 + $0xb4] sm:$0xff]
    %v3223 = vld [vmem:[%s8 + $0xbc] sm:$0xff]
    %v3224 = vld [vmem:[%s8 + $0xc4] sm:$0xff]
    %v3225 = vld [vmem:[%s8 + $0xcc] sm:$0xff]
    %v3226 = vld [vmem:[%s8 + $0xd4] sm:$0xf]
    %v3227 = vld [vmem:[%s8 + $0xd8] sm:$0xff]
    %v3228 = vld [vmem:[%s8 + $0xe0] sm:$0xff]
    %v3229 = vld [vmem:[%s8 + $0xe8] sm:$0xff]
    %v3230 = vld [vmem:[%s8 + $0xf0] sm:$0xff]
    %v3231 = vld [vmem:[%s8 + $0xf8] sm:$0xf]
    %v3232 = vld [vmem:[%s8 + $0xfc] sm:$0xff]
    %v3233 = vld [vmem:[%s8 + $0x104] sm:$0xff]
    %v3234 = vld [vmem:[%s8 + $0x10c] sm:$0xff]
    %v3235 = vld [vmem:[%s8 + $0x114] sm:$0xff]
    %v3236 = vld [vmem:[%s8 + $0x11c] sm:$0xf]
    %v3237 = vld [vmem:[%s9] sm:$0xf]
    %v3238 = vld [vmem:[%s9 + $0x4] sm:$0xf]
    %v3239 = vld [vmem:[%s9 + $0x8] sm:$0xf]
    %v3240 = vld [vmem:[%s9 + $0xc] sm:$0xf]
    %v3241 = vld [vmem:[%s9 + $0x10] sm:$0xf]
    %v3242 = vld [vmem:[%s9 + $0x14] sm:$0xf]
    %v3243 = vld [vmem:[%s9 + $0x18] sm:$0xf]
    %v3244 = vld [vmem:[%s9 + $0x1c] sm:$0xf]
    %v3245 = vld [vmem:[%s10] sm:$0x1]
    %v3286 = vunpack.c.l.b16 %v3197
    %v3287 = vunpack.c.h.b16 %v3197
    %v3288 = vunpack.c.l.b16 %v3198
    %v3289 = vunpack.c.h.b16 %v3198
    %v3290 = vunpack.c.l.b16 %v3199
    %v3291 = vunpack.c.h.b16 %v3199
    %v3292 = vunpack.c.l.b16 %v3200
    %v3293 = vunpack.c.h.b16 %v3200
    %v3294 = vunpack.c.l.b16 %v3201
    %v3295 = vunpack.c.l.b16 %v3202
    %v3296 = vunpack.c.h.b16 %v3202
    %v3297 = vunpack.c.l.b16 %v3203
    %v3298 = vunpack.c.h.b16 %v3203
    %v3299 = vunpack.c.l.b16 %v3204
    %v3300 = vunpack.c.h.b16 %v3204
    %v3301 = vunpack.c.l.b16 %v3205
    %v3302 = vunpack.c.h.b16 %v3205
    %v3303 = vunpack.c.l.b16 %v3206
    %v3304 = vunpack.c.l.b16 %v3207
    %v3305 = vunpack.c.h.b16 %v3207
    %v3306 = vunpack.c.l.b16 %v3208
    %v3307 = vunpack.c.h.b16 %v3208
    %v3308 = vunpack.c.l.b16 %v3209
    %v3309 = vunpack.c.h.b16 %v3209
    %v3310 = vunpack.c.l.b16 %v3210
    %v3311 = vunpack.c.h.b16 %v3210
    %v3312 = vunpack.c.l.b16 %v3211
    %v3313 = vunpack.c.l.b16 %v3212
    %v3314 = vunpack.c.h.b16 %v3212
    %v3315 = vunpack.c.l.b16 %v3213
    %v3316 = vunpack.c.h.b16 %v3213
    %v3317 = vunpack.c.l.b16 %v3214
    %v3318 = vunpack.c.h.b16 %v3214
    %v3319 = vunpack.c.l.b16 %v3215
    %v3320 = vunpack.c.h.b16 %v3215
    %v3321 = vunpack.c.l.b16 %v3216
    %v3322 = vunpack.c.l.b16 %v3217
    %v3323 = vunpack.c.h.b16 %v3217
    %v3324 = vunpack.c.l.b16 %v3218
    %v3325 = vunpack.c.h.b16 %v3218
    %v3326 = vunpack.c.l.b16 %v3219
    %v3327 = vunpack.c.h.b16 %v3219
    %v3328 = vunpack.c.l.b16 %v3220
    %v3329 = vunpack.c.h.b16 %v3220
    %v3330 = vunpack.c.l.b16 %v3221
    %v3331 = vunpack.c.l.b16 %v3222
    %v3332 = vunpack.c.h.b16 %v3222
    %v3333 = vunpack.c.l.b16 %v3223
    %v3334 = vunpack.c.h.b16 %v3223
    %v3335 = vunpack.c.l.b16 %v3224
    %v3336 = vunpack.c.h.b16 %v3224
    %v3337 = vunpack.c.l.b16 %v3225
    %v3338 = vunpack.c.h.b16 %v3225
    %v3339 = vunpack.c.l.b16 %v3226
    %v3340 = vunpack.c.l.b16 %v3227
    %v3341 = vunpack.c.h.b16 %v3227
    %v3342 = vunpack.c.l.b16 %v3228
    %v3343 = vunpack.c.h.b16 %v3228
    %v3344 = vunpack.c.l.b16 %v3229
    %v3345 = vunpack.c.h.b16 %v3229
    %v3346 = vunpack.c.l.b16 %v3230
    %v3347 = vunpack.c.h.b16 %v3230
    %v3348 = vunpack.c.l.b16 %v3231
    %v3349 = vunpack.c.l.b16 %v3232
    %v3350 = vunpack.c.h.b16 %v3232
    %v3351 = vunpack.c.l.b16 %v3233
    %v3352 = vunpack.c.h.b16 %v3233
    %v3353 = vunpack.c.l.b16 %v3234
    %v3354 = vunpack.c.h.b16 %v3234
    %v3355 = vunpack.c.l.b16 %v3235
    %v3356 = vunpack.c.h.b16 %v3235
    %v3357 = vunpack.c.l.b16 %v3236
    %v3358 = vpack.c.b16 %v3295, %v3286
    %v3359 = vpack.c.b16 %v3296, %v3287
    %v3360 = vpack.c.b16 %v3297, %v3288
    %v3361 = vpack.c.b16 %v3298, %v3289
    %v3362 = vpack.c.b16 %v3299, %v3290
    %v3363 = vpack.c.b16 %v3300, %v3291
    %v3364 = vpack.c.b16 %v3301, %v3292
    %v3365 = vpack.c.b16 %v3302, %v3293
    %v3366 = vpack.c.b16 %v3303, %v3294
    %v3367 = vpack.c.b16 %v3313, %v3304
    %v3368 = vpack.c.b16 %v3314, %v3305
    %v3369 = vpack.c.b16 %v3315, %v3306
    %v3370 = vpack.c.b16 %v3316, %v3307
    %v3371 = vpack.c.b16 %v3317, %v3308
    %v3372 = vpack.c.b16 %v3318, %v3309
    %v3373 = vpack.c.b16 %v3319, %v3310
    %v3374 = vpack.c.b16 %v3320, %v3311
    %v3375 = vpack.c.b16 %v3321, %v3312
    %v3376 = vpack.c.b16 %v3331, %v3322
    %v3377 = vpack.c.b16 %v3332, %v3323
    %v3378 = vpack.c.b16 %v3333, %v3324
    %v3379 = vpack.c.b16 %v3334, %v3325
    %v3380 = vpack.c.b16 %v3335, %v3326
    %v3381 = vpack.c.b16 %v3336, %v3327
    %v3382 = vpack.c.b16 %v3337, %v3328
    %v3383 = vpack.c.b16 %v3338, %v3329
    %v3384 = vpack.c.b16 %v3339, %v3330
    %v3385 = vpack.c.b16 %v3349, %v3340
    %v3386 = vpack.c.b16 %v3350, %v3341
    %v3387 = vpack.c.b16 %v3351, %v3342
    %v3388 = vpack.c.b16 %v3352, %v3343
    %v3389 = vpack.c.b16 %v3353, %v3344
    %v3390 = vpack.c.b16 %v3354, %v3345
    %v3391 = vpack.c.b16 %v3355, %v3346
    %v3392 = vpack.c.b16 %v3356, %v3347
    %v3393 = vpack.c.b16 %v3357, %v3348
    %v3431 = vsel %vm481, %v3195, 0
    %v3434 = vsel %vm481, %v3196, 0
    %3436 = vmatpush.bf16.msra.mxu0 0
    %3437 = vmatpush.bf16.msra.mxu0 0
    %3438 = vmatpush.bf16.msra.mxu0 0
    %3439 = vmatpush.bf16.msra.mxu0 0
    %3440 = vmatpush.bf16.msra.mxu0 %v3385
    %3441 = vmatpush.bf16.msra.mxu0 %v3376
    %3442 = vmatpush.bf16.msra.mxu0 %v3367
    %3443 = vmatpush.bf16.msra.mxu0 %v3358
    %3444 = vmatmul.bf16.gmra.mxu0 %v3431
    %v3445 = vpop.f32.mrf.mxu0
    %v3446 = vadd.f32 0.0, %v3445
    %v3447 = vpop.f32.mrf.mxu0
    %v3448 = vadd.f32 0.0, %v3447
    %3449 = vmatmul.bf16.gmra.mxu0 %v3434
    %v3450 = vpop.f32.mrf.mxu0
    %v3451 = vadd.f32 0.0, %v3450
    %v3452 = vpop.f32.mrf.mxu0
    %v3453 = vadd.f32 0.0, %v3452
    %3454 = vdwg.mxu0
    %3455 = vmatpush.bf16.msra.mxu0 0
    %3456 = vmatpush.bf16.msra.mxu0 0
    %3457 = vmatpush.bf16.msra.mxu0 0
    %3458 = vmatpush.bf16.msra.mxu0 0
    %3459 = vmatpush.bf16.msra.mxu0 %v3386
    %3460 = vmatpush.bf16.msra.mxu0 %v3377
    %3461 = vmatpush.bf16.msra.mxu0 %v3368
    %3462 = vmatpush.bf16.msra.mxu0 %v3359
    %3463 = vmatmul.bf16.gmra.mxu0 %v3431
    %v3464 = vpop.f32.mrf.mxu0
    %v3465 = vadd.f32 0.0, %v3464
    %v3466 = vpop.f32.mrf.mxu0
    %v3467 = vadd.f32 0.0, %v3466
    %3468 = vmatmul.bf16.gmra.mxu0 %v3434
    %v3469 = vpop.f32.mrf.mxu0
    %v3470 = vadd.f32 0.0, %v3469
    %v3471 = vpop.f32.mrf.mxu0
    %v3472 = vadd.f32 0.0, %v3471
    %3473 = vdwg.mxu0
    %3474 = vmatpush.bf16.msra.mxu0 0
    %3475 = vmatpush.bf16.msra.mxu0 0
    %3476 = vmatpush.bf16.msra.mxu0 0
    %3477 = vmatpush.bf16.msra.mxu0 0
    %3478 = vmatpush.bf16.msra.mxu0 %v3387
    %3479 = vmatpush.bf16.msra.mxu0 %v3378
    %3480 = vmatpush.bf16.msra.mxu0 %v3369
    %3481 = vmatpush.bf16.msra.mxu0 %v3360
    %3482 = vmatmul.bf16.gmra.mxu0 %v3431
    %v3483 = vpop.f32.mrf.mxu0
    %v3484 = vadd.f32 0.0, %v3483
    %v3485 = vpop.f32.mrf.mxu0
    %v3486 = vadd.f32 0.0, %v3485
    %3487 = vmatmul.bf16.gmra.mxu0 %v3434
    %v3488 = vpop.f32.mrf.mxu0
    %v3489 = vadd.f32 0.0, %v3488
    %v3490 = vpop.f32.mrf.mxu0
    %v3491 = vadd.f32 0.0, %v3490
    %3492 = vdwg.mxu0
    %3493 = vmatpush.bf16.msra.mxu0 0
    %3494 = vmatpush.bf16.msra.mxu0 0
    %3495 = vmatpush.bf16.msra.mxu0 0
    %3496 = vmatpush.bf16.msra.mxu0 0
    %3497 = vmatpush.bf16.msra.mxu0 %v3388
    %3498 = vmatpush.bf16.msra.mxu0 %v3379
    %3499 = vmatpush.bf16.msra.mxu0 %v3370
    %3500 = vmatpush.bf16.msra.mxu0 %v3361
    %3501 = vmatmul.bf16.gmra.mxu0 %v3431
    %v3502 = vpop.f32.mrf.mxu0
    %v3503 = vadd.f32 0.0, %v3502
    %v3504 = vpop.f32.mrf.mxu0
    %v3505 = vadd.f32 0.0, %v3504
    %3506 = vmatmul.bf16.gmra.mxu0 %v3434
    %v3507 = vpop.f32.mrf.mxu0
    %v3508 = vadd.f32 0.0, %v3507
    %v3509 = vpop.f32.mrf.mxu0
    %v3510 = vadd.f32 0.0, %v3509
    %3511 = vdwg.mxu0
    %3512 = vmatpush.bf16.msra.mxu0 0
    %3513 = vmatpush.bf16.msra.mxu0 0
    %3514 = vmatpush.bf16.msra.mxu0 0
    %3515 = vmatpush.bf16.msra.mxu0 0
    %3516 = vmatpush.bf16.msra.mxu0 %v3389
    %3517 = vmatpush.bf16.msra.mxu0 %v3380
    %3518 = vmatpush.bf16.msra.mxu0 %v3371
    %3519 = vmatpush.bf16.msra.mxu0 %v3362
    %3520 = vmatmul.bf16.gmra.mxu0 %v3431
    %v3521 = vpop.f32.mrf.mxu0
    %v3522 = vadd.f32 0.0, %v3521
    %v3523 = vpop.f32.mrf.mxu0
    %v3524 = vadd.f32 0.0, %v3523
    %3525 = vmatmul.bf16.gmra.mxu0 %v3434
    %v3526 = vpop.f32.mrf.mxu0
    %v3527 = vadd.f32 0.0, %v3526
    %v3528 = vpop.f32.mrf.mxu0
    %v3529 = vadd.f32 0.0, %v3528
    %3530 = vdwg.mxu0
    %3531 = vmatpush.bf16.msra.mxu0 0
    %3532 = vmatpush.bf16.msra.mxu0 0
    %3533 = vmatpush.bf16.msra.mxu0 0
    %3534 = vmatpush.bf16.msra.mxu0 0
    %3535 = vmatpush.bf16.msra.mxu0 %v3390
    %3536 = vmatpush.bf16.msra.mxu0 %v3381
    %3537 = vmatpush.bf16.msra.mxu0 %v3372
    %3538 = vmatpush.bf16.msra.mxu0 %v3363
    %3539 = vmatmul.bf16.gmra.mxu0 %v3431
    %v3540 = vpop.f32.mrf.mxu0
    %v3541 = vadd.f32 0.0, %v3540
    %v3542 = vpop.f32.mrf.mxu0
    %v3543 = vadd.f32 0.0, %v3542
    %3544 = vmatmul.bf16.gmra.mxu0 %v3434
    %v3545 = vpop.f32.mrf.mxu0
    %v3546 = vadd.f32 0.0, %v3545
    %v3547 = vpop.f32.mrf.mxu0
    %v3548 = vadd.f32 0.0, %v3547
    %3549 = vdwg.mxu0
    %3550 = vmatpush.bf16.msra.mxu0 0
    %3551 = vmatpush.bf16.msra.mxu0 0
    %3552 = vmatpush.bf16.msra.mxu0 0
    %3553 = vmatpush.bf16.msra.mxu0 0
    %3554 = vmatpush.bf16.msra.mxu0 %v3391
    %3555 = vmatpush.bf16.msra.mxu0 %v3382
    %3556 = vmatpush.bf16.msra.mxu0 %v3373
    %3557 = vmatpush.bf16.msra.mxu0 %v3364
    %3558 = vmatmul.bf16.gmra.mxu0 %v3431
    %v3559 = vpop.f32.mrf.mxu0
    %v3560 = vadd.f32 0.0, %v3559
    %v3561 = vpop.f32.mrf.mxu0
    %v3562 = vadd.f32 0.0, %v3561
    %3563 = vmatmul.bf16.gmra.mxu0 %v3434
    %v3564 = vpop.f32.mrf.mxu0
    %v3565 = vadd.f32 0.0, %v3564
    %v3566 = vpop.f32.mrf.mxu0
    %v3567 = vadd.f32 0.0, %v3566
    %3568 = vdwg.mxu0
    %3569 = vmatpush.bf16.msra.mxu0 0
    %3570 = vmatpush.bf16.msra.mxu0 0
    %3571 = vmatpush.bf16.msra.mxu0 0
    %3572 = vmatpush.bf16.msra.mxu0 0
    %3573 = vmatpush.bf16.msra.mxu0 %v3392
    %3574 = vmatpush.bf16.msra.mxu0 %v3383
    %3575 = vmatpush.bf16.msra.mxu0 %v3374
    %3576 = vmatpush.bf16.msra.mxu0 %v3365
    %3577 = vmatmul.bf16.gmra.mxu0 %v3431
    %v3578 = vpop.f32.mrf.mxu0
    %v3579 = vadd.f32 0.0, %v3578
    %v3580 = vpop.f32.mrf.mxu0
    %v3581 = vadd.f32 0.0, %v3580
    %3582 = vmatmul.bf16.gmra.mxu0 %v3434
    %v3583 = vpop.f32.mrf.mxu0
    %v3584 = vadd.f32 0.0, %v3583
    %v3585 = vpop.f32.mrf.mxu0
    %v3586 = vadd.f32 0.0, %v3585
    %3587 = vdwg.mxu0
    %3588 = vmatpush.bf16.msra.mxu0 0
    %3589 = vmatpush.bf16.msra.mxu0 0
    %3590 = vmatpush.bf16.msra.mxu0 0
    %3591 = vmatpush.bf16.msra.mxu0 0
    %3592 = vmatpush.bf16.msra.mxu0 %v3393
    %3593 = vmatpush.bf16.msra.mxu0 %v3384
    %3594 = vmatpush.bf16.msra.mxu0 %v3375
    %3595 = vmatpush.bf16.msra.mxu0 %v3366
    %3596 = vmatmul.bf16.gmra.mxu0 %v3431
    %v3597 = vpop.f32.mrf.mxu0
    %v3598 = vadd.f32 0.0, %v3597
    %v3599 = vpop.f32.mrf.mxu0
    %v3600 = vadd.f32 0.0, %v3599
    %3601 = vmatmul.bf16.gmra.mxu0 %v3434
    %v3602 = vpop.f32.mrf.mxu0
    %v3603 = vadd.f32 0.0, %v3602
    %v3604 = vpop.f32.mrf.mxu0
    %v3605 = vadd.f32 0.0, %v3604
    %3606 = vdwg.mxu0
    %v3615 = vunpack.c.l.b16 %v3237
    %v3616 = vunpack.c.l.b16 %v3238
    %v3617 = vunpack.c.l.b16 %v3239
    %v3618 = vunpack.c.l.b16 %v3240
    %v3619 = vunpack.c.l.b16 %v3241
    %v3620 = vunpack.c.l.b16 %v3242
    %v3621 = vunpack.c.l.b16 %v3243
    %v3622 = vunpack.c.l.b16 %v3244
    %v3623 = vpack.c.b16 %v3616, %v3615
    %v3624 = vpack.c.b16 %v3618, %v3617
    %v3625 = vpack.c.b16 %v3620, %v3619
    %v3626 = vpack.c.b16 %v3622, %v3621
    %3631 = vmatpush.bf16.msra.mxu0 0
    %3632 = vmatpush.bf16.msra.mxu0 0
    %3633 = vmatpush.bf16.msra.mxu0 0
    %3634 = vmatpush.bf16.msra.mxu0 0
    %3635 = vmatpush.bf16.msra.mxu0 %v3626
    %3636 = vmatpush.bf16.msra.mxu0 %v3625
    %3637 = vmatpush.bf16.msra.mxu0 %v3624
    %3638 = vmatpush.bf16.msra.mxu0 %v3623
    %3639 = vmatmul.bf16.gmra.mxu0 %v724
    %v3640 = vpop.f32.mrf.mxu0
    %v3641 = vadd.f32 0.0, %v3640
    %v3642 = vpop.f32.mrf.mxu0
    %v3643 = vadd.f32 0.0, %v3642
    %3644 = vmatmul.bf16.gmra.mxu0 %v727
    %v3645 = vpop.f32.mrf.mxu0
    %v3646 = vadd.f32 0.0, %v3645
    %v3647 = vpop.f32.mrf.mxu0
    %v3648 = vadd.f32 0.0, %v3647
    %3649 = vmatmul.bf16.gmra.mxu0 %v730
    %v3650 = vpop.f32.mrf.mxu0
    %v3651 = vadd.f32 0.0, %v3650
    %v3652 = vpop.f32.mrf.mxu0
    %v3653 = vadd.f32 0.0, %v3652
    %3654 = vmatmul.bf16.gmra.mxu0 %v733
    %v3655 = vpop.f32.mrf.mxu0
    %v3656 = vadd.f32 0.0, %v3655
    %v3657 = vpop.f32.mrf.mxu0
    %v3658 = vadd.f32 0.0, %v3657
    %3659 = vmatmul.bf16.gmra.mxu0 %v736
    %v3660 = vpop.f32.mrf.mxu0
    %v3661 = vadd.f32 0.0, %v3660
    %v3662 = vpop.f32.mrf.mxu0
    %v3663 = vadd.f32 0.0, %v3662
    %3664 = vmatmul.bf16.gmra.mxu0 %v739
    %v3665 = vpop.f32.mrf.mxu0
    %v3666 = vadd.f32 0.0, %v3665
    %v3667 = vpop.f32.mrf.mxu0
    %v3668 = vadd.f32 0.0, %v3667
    %3669 = vmatmul.bf16.gmra.mxu0 %v742
    %v3670 = vpop.f32.mrf.mxu0
    %v3671 = vadd.f32 0.0, %v3670
    %v3672 = vpop.f32.mrf.mxu0
    %v3673 = vadd.f32 0.0, %v3672
    %3674 = vmatmul.bf16.gmra.mxu0 %v745
    %v3675 = vpop.f32.mrf.mxu0
    %v3676 = vadd.f32 0.0, %v3675
    %v3677 = vpop.f32.mrf.mxu0
    %v3678 = vadd.f32 0.0, %v3677
    %3679 = vdwg.mxu0
    %v3680 = vpack.c.bf16 %v3448, %v3446
    %v3681 = vpack.c.bf16 %v3467, %v3465
    %v3682 = vpack.c.bf16 %v3486, %v3484
    %v3683 = vpack.c.bf16 %v3505, %v3503
    %v3684 = vpack.c.bf16 %v3524, %v3522
    %v3685 = vpack.c.bf16 %v3543, %v3541
    %v3686 = vpack.c.bf16 %v3562, %v3560
    %v3687 = vpack.c.bf16 %v3581, %v3579
    %v3688 = vpack.c.bf16 %v3600, %v3598
    %v3689 = vpack.c.bf16 %v3453, %v3451
    %v3690 = vpack.c.bf16 %v3472, %v3470
    %v3691 = vpack.c.bf16 %v3491, %v3489
    %v3692 = vpack.c.bf16 %v3510, %v3508
    %v3693 = vpack.c.bf16 %v3529, %v3527
    %v3694 = vpack.c.bf16 %v3548, %v3546
    %v3695 = vpack.c.bf16 %v3567, %v3565
    %v3696 = vpack.c.bf16 %v3586, %v3584
    %v3697 = vpack.c.bf16 %v3605, %v3603
    %3698 = vmatpush.bf16.msra.mxu0 0
    %3699 = vmatpush.bf16.msra.mxu0 0
    %3700 = vmatpush.bf16.msra.mxu0 0
    %3701 = vmatpush.bf16.msra.mxu0 0
    %3702 = vmatpush.bf16.msra.mxu0 0
    %3703 = vmatpush.bf16.msra.mxu0 0
    %3704 = vmatpush.bf16.msra.mxu0 %v3689
    %3705 = vmatpush.bf16.msra.mxu0 %v3680
    %3706 = vmatmul.bf16.gmra.mxu0 %v856
    %v3707 = vpop.f32.mrf.mxu0
    %v3708 = vadd.f32 0.0, %v3707
    %v3709 = vpop.f32.mrf.mxu0
    %v3710 = vadd.f32 0.0, %v3709
    %3711 = vmatmul.bf16.gmra.mxu0 %v859
    %v3712 = vpop.f32.mrf.mxu0
    %v3713 = vadd.f32 0.0, %v3712
    %v3714 = vpop.f32.mrf.mxu0
    %v3715 = vadd.f32 0.0, %v3714
    %3716 = vmatmul.bf16.gmra.mxu0 %v862
    %v3717 = vpop.f32.mrf.mxu0
    %v3718 = vadd.f32 0.0, %v3717
    %v3719 = vpop.f32.mrf.mxu0
    %v3720 = vadd.f32 0.0, %v3719
    %3721 = vmatmul.bf16.gmra.mxu0 %v865
    %v3722 = vpop.f32.mrf.mxu0
    %v3723 = vadd.f32 0.0, %v3722
    %v3724 = vpop.f32.mrf.mxu0
    %v3725 = vadd.f32 0.0, %v3724
    %3726 = vmatmul.bf16.gmra.mxu0 %v868
    %v3727 = vpop.f32.mrf.mxu0
    %v3728 = vadd.f32 0.0, %v3727
    %v3729 = vpop.f32.mrf.mxu0
    %v3730 = vadd.f32 0.0, %v3729
    %3731 = vmatmul.bf16.gmra.mxu0 %v871
    %v3732 = vpop.f32.mrf.mxu0
    %v3733 = vadd.f32 0.0, %v3732
    %v3734 = vpop.f32.mrf.mxu0
    %v3735 = vadd.f32 0.0, %v3734
    %3736 = vmatmul.bf16.gmra.mxu0 %v874
    %v3737 = vpop.f32.mrf.mxu0
    %v3738 = vadd.f32 0.0, %v3737
    %v3739 = vpop.f32.mrf.mxu0
    %v3740 = vadd.f32 0.0, %v3739
    %3741 = vmatmul.bf16.gmra.mxu0 %v877
    %v3742 = vpop.f32.mrf.mxu0
    %v3743 = vadd.f32 0.0, %v3742
    %v3744 = vpop.f32.mrf.mxu0
    %v3745 = vadd.f32 0.0, %v3744
    %3746 = vdwg.mxu0
    %3747 = vmatpush.bf16.msra.mxu0 0
    %3748 = vmatpush.bf16.msra.mxu0 0
    %3749 = vmatpush.bf16.msra.mxu0 0
    %3750 = vmatpush.bf16.msra.mxu0 0
    %3751 = vmatpush.bf16.msra.mxu0 0
    %3752 = vmatpush.bf16.msra.mxu0 0
    %3753 = vmatpush.bf16.msra.mxu0 %v3690
    %3754 = vmatpush.bf16.msra.mxu0 %v3681
    %3755 = vmatmul.bf16.gmra.mxu0 %v856
    %v3756 = vpop.f32.mrf.mxu0
    %v3757 = vadd.f32 0.0, %v3756
    %v3758 = vpop.f32.mrf.mxu0
    %v3759 = vadd.f32 0.0, %v3758
    %3760 = vmatmul.bf16.gmra.mxu0 %v859
    %v3761 = vpop.f32.mrf.mxu0
    %v3762 = vadd.f32 0.0, %v3761
    %v3763 = vpop.f32.mrf.mxu0
    %v3764 = vadd.f32 0.0, %v3763
    %3765 = vmatmul.bf16.gmra.mxu0 %v862
    %v3766 = vpop.f32.mrf.mxu0
    %v3767 = vadd.f32 0.0, %v3766
    %v3768 = vpop.f32.mrf.mxu0
    %v3769 = vadd.f32 0.0, %v3768
    %3770 = vmatmul.bf16.gmra.mxu0 %v865
    %v3771 = vpop.f32.mrf.mxu0
    %v3772 = vadd.f32 0.0, %v3771
    %v3773 = vpop.f32.mrf.mxu0
    %v3774 = vadd.f32 0.0, %v3773
    %3775 = vmatmul.bf16.gmra.mxu0 %v868
    %v3776 = vpop.f32.mrf.mxu0
    %v3777 = vadd.f32 0.0, %v3776
    %v3778 = vpop.f32.mrf.mxu0
    %v3779 = vadd.f32 0.0, %v3778
    %3780 = vmatmul.bf16.gmra.mxu0 %v871
    %v3781 = vpop.f32.mrf.mxu0
    %v3782 = vadd.f32 0.0, %v3781
    %v3783 = vpop.f32.mrf.mxu0
    %v3784 = vadd.f32 0.0, %v3783
    %3785 = vmatmul.bf16.gmra.mxu0 %v874
    %v3786 = vpop.f32.mrf.mxu0
    %v3787 = vadd.f32 0.0, %v3786
    %v3788 = vpop.f32.mrf.mxu0
    %v3789 = vadd.f32 0.0, %v3788
    %3790 = vmatmul.bf16.gmra.mxu0 %v877
    %v3791 = vpop.f32.mrf.mxu0
    %v3792 = vadd.f32 0.0, %v3791
    %v3793 = vpop.f32.mrf.mxu0
    %v3794 = vadd.f32 0.0, %v3793
    %3795 = vdwg.mxu0
    %3796 = vmatpush.bf16.msra.mxu0 0
    %3797 = vmatpush.bf16.msra.mxu0 0
    %3798 = vmatpush.bf16.msra.mxu0 0
    %3799 = vmatpush.bf16.msra.mxu0 0
    %3800 = vmatpush.bf16.msra.mxu0 0
    %3801 = vmatpush.bf16.msra.mxu0 0
    %3802 = vmatpush.bf16.msra.mxu0 %v3691
    %3803 = vmatpush.bf16.msra.mxu0 %v3682
    %3804 = vmatmul.bf16.gmra.mxu0 %v856
    %v3805 = vpop.f32.mrf.mxu0
    %v3806 = vadd.f32 0.0, %v3805
    %v3807 = vpop.f32.mrf.mxu0
    %v3808 = vadd.f32 0.0, %v3807
    %3809 = vmatmul.bf16.gmra.mxu0 %v859
    %v3810 = vpop.f32.mrf.mxu0
    %v3811 = vadd.f32 0.0, %v3810
    %v3812 = vpop.f32.mrf.mxu0
    %v3813 = vadd.f32 0.0, %v3812
    %3814 = vmatmul.bf16.gmra.mxu0 %v862
    %v3815 = vpop.f32.mrf.mxu0
    %v3816 = vadd.f32 0.0, %v3815
    %v3817 = vpop.f32.mrf.mxu0
    %v3818 = vadd.f32 0.0, %v3817
    %3819 = vmatmul.bf16.gmra.mxu0 %v865
    %v3820 = vpop.f32.mrf.mxu0
    %v3821 = vadd.f32 0.0, %v3820
    %v3822 = vpop.f32.mrf.mxu0
    %v3823 = vadd.f32 0.0, %v3822
    %3824 = vmatmul.bf16.gmra.mxu0 %v868
    %v3825 = vpop.f32.mrf.mxu0
    %v3826 = vadd.f32 0.0, %v3825
    %v3827 = vpop.f32.mrf.mxu0
    %v3828 = vadd.f32 0.0, %v3827
    %3829 = vmatmul.bf16.gmra.mxu0 %v871
    %v3830 = vpop.f32.mrf.mxu0
    %v3831 = vadd.f32 0.0, %v3830
    %v3832 = vpop.f32.mrf.mxu0
    %v3833 = vadd.f32 0.0, %v3832
    %3834 = vmatmul.bf16.gmra.mxu0 %v874
    %v3835 = vpop.f32.mrf.mxu0
    %v3836 = vadd.f32 0.0, %v3835
    %v3837 = vpop.f32.mrf.mxu0
    %v3838 = vadd.f32 0.0, %v3837
    %3839 = vmatmul.bf16.gmra.mxu0 %v877
    %v3840 = vpop.f32.mrf.mxu0
    %v3841 = vadd.f32 0.0, %v3840
    %v3842 = vpop.f32.mrf.mxu0
    %v3843 = vadd.f32 0.0, %v3842
    %3844 = vdwg.mxu0
    %3845 = vmatpush.bf16.msra.mxu0 0
    %3846 = vmatpush.bf16.msra.mxu0 0
    %3847 = vmatpush.bf16.msra.mxu0 0
    %3848 = vmatpush.bf16.msra.mxu0 0
    %3849 = vmatpush.bf16.msra.mxu0 0
    %3850 = vmatpush.bf16.msra.mxu0 0
    %3851 = vmatpush.bf16.msra.mxu0 %v3692
    %3852 = vmatpush.bf16.msra.mxu0 %v3683
    %3853 = vmatmul.bf16.gmra.mxu0 %v856
    %v3854 = vpop.f32.mrf.mxu0
    %v3855 = vadd.f32 0.0, %v3854
    %v3856 = vpop.f32.mrf.mxu0
    %v3857 = vadd.f32 0.0, %v3856
    %3858 = vmatmul.bf16.gmra.mxu0 %v859
    %v3859 = vpop.f32.mrf.mxu0
    %v3860 = vadd.f32 0.0, %v3859
    %v3861 = vpop.f32.mrf.mxu0
    %v3862 = vadd.f32 0.0, %v3861
    %3863 = vmatmul.bf16.gmra.mxu0 %v862
    %v3864 = vpop.f32.mrf.mxu0
    %v3865 = vadd.f32 0.0, %v3864
    %v3866 = vpop.f32.mrf.mxu0
    %v3867 = vadd.f32 0.0, %v3866
    %3868 = vmatmul.bf16.gmra.mxu0 %v865
    %v3869 = vpop.f32.mrf.mxu0
    %v3870 = vadd.f32 0.0, %v3869
    %v3871 = vpop.f32.mrf.mxu0
    %v3872 = vadd.f32 0.0, %v3871
    %3873 = vmatmul.bf16.gmra.mxu0 %v868
    %v3874 = vpop.f32.mrf.mxu0
    %v3875 = vadd.f32 0.0, %v3874
    %v3876 = vpop.f32.mrf.mxu0
    %v3877 = vadd.f32 0.0, %v3876
    %3878 = vmatmul.bf16.gmra.mxu0 %v871
    %v3879 = vpop.f32.mrf.mxu0
    %v3880 = vadd.f32 0.0, %v3879
    %v3881 = vpop.f32.mrf.mxu0
    %v3882 = vadd.f32 0.0, %v3881
    %3883 = vmatmul.bf16.gmra.mxu0 %v874
    %v3884 = vpop.f32.mrf.mxu0
    %v3885 = vadd.f32 0.0, %v3884
    %v3886 = vpop.f32.mrf.mxu0
    %v3887 = vadd.f32 0.0, %v3886
    %3888 = vmatmul.bf16.gmra.mxu0 %v877
    %v3889 = vpop.f32.mrf.mxu0
    %v3890 = vadd.f32 0.0, %v3889
    %v3891 = vpop.f32.mrf.mxu0
    %v3892 = vadd.f32 0.0, %v3891
    %3893 = vdwg.mxu0
    %3894 = vmatpush.bf16.msra.mxu0 0
    %3895 = vmatpush.bf16.msra.mxu0 0
    %3896 = vmatpush.bf16.msra.mxu0 0
    %3897 = vmatpush.bf16.msra.mxu0 0
    %3898 = vmatpush.bf16.msra.mxu0 0
    %3899 = vmatpush.bf16.msra.mxu0 0
    %3900 = vmatpush.bf16.msra.mxu0 %v3693
    %3901 = vmatpush.bf16.msra.mxu0 %v3684
    %3902 = vmatmul.bf16.gmra.mxu0 %v856
    %v3903 = vpop.f32.mrf.mxu0
    %v3904 = vadd.f32 0.0, %v3903
    %v3905 = vpop.f32.mrf.mxu0
    %v3906 = vadd.f32 0.0, %v3905
    %3907 = vmatmul.bf16.gmra.mxu0 %v859
    %v3908 = vpop.f32.mrf.mxu0
    %v3909 = vadd.f32 0.0, %v3908
    %v3910 = vpop.f32.mrf.mxu0
    %v3911 = vadd.f32 0.0, %v3910
    %3912 = vmatmul.bf16.gmra.mxu0 %v862
    %v3913 = vpop.f32.mrf.mxu0
    %v3914 = vadd.f32 0.0, %v3913
    %v3915 = vpop.f32.mrf.mxu0
    %v3916 = vadd.f32 0.0, %v3915
    %3917 = vmatmul.bf16.gmra.mxu0 %v865
    %v3918 = vpop.f32.mrf.mxu0
    %v3919 = vadd.f32 0.0, %v3918
    %v3920 = vpop.f32.mrf.mxu0
    %v3921 = vadd.f32 0.0, %v3920
    %3922 = vmatmul.bf16.gmra.mxu0 %v868
    %v3923 = vpop.f32.mrf.mxu0
    %v3924 = vadd.f32 0.0, %v3923
    %v3925 = vpop.f32.mrf.mxu0
    %v3926 = vadd.f32 0.0, %v3925
    %3927 = vmatmul.bf16.gmra.mxu0 %v871
    %v3928 = vpop.f32.mrf.mxu0
    %v3929 = vadd.f32 0.0, %v3928
    %v3930 = vpop.f32.mrf.mxu0
    %v3931 = vadd.f32 0.0, %v3930
    %3932 = vmatmul.bf16.gmra.mxu0 %v874
    %v3933 = vpop.f32.mrf.mxu0
    %v3934 = vadd.f32 0.0, %v3933
    %v3935 = vpop.f32.mrf.mxu0
    %v3936 = vadd.f32 0.0, %v3935
    %3937 = vmatmul.bf16.gmra.mxu0 %v877
    %v3938 = vpop.f32.mrf.mxu0
    %v3939 = vadd.f32 0.0, %v3938
    %v3940 = vpop.f32.mrf.mxu0
    %v3941 = vadd.f32 0.0, %v3940
    %3942 = vdwg.mxu0
    %3943 = vmatpush.bf16.msra.mxu0 0
    %3944 = vmatpush.bf16.msra.mxu0 0
    %3945 = vmatpush.bf16.msra.mxu0 0
    %3946 = vmatpush.bf16.msra.mxu0 0
    %3947 = vmatpush.bf16.msra.mxu0 0
    %3948 = vmatpush.bf16.msra.mxu0 0
    %3949 = vmatpush.bf16.msra.mxu0 %v3694
    %3950 = vmatpush.bf16.msra.mxu0 %v3685
    %3951 = vmatmul.bf16.gmra.mxu0 %v856
    %v3952 = vpop.f32.mrf.mxu0
    %v3953 = vadd.f32 0.0, %v3952
    %v3954 = vpop.f32.mrf.mxu0
    %v3955 = vadd.f32 0.0, %v3954
    %3956 = vmatmul.bf16.gmra.mxu0 %v859
    %v3957 = vpop.f32.mrf.mxu0
    %v3958 = vadd.f32 0.0, %v3957
    %v3959 = vpop.f32.mrf.mxu0
    %v3960 = vadd.f32 0.0, %v3959
    %3961 = vmatmul.bf16.gmra.mxu0 %v862
    %v3962 = vpop.f32.mrf.mxu0
    %v3963 = vadd.f32 0.0, %v3962
    %v3964 = vpop.f32.mrf.mxu0
    %v3965 = vadd.f32 0.0, %v3964
    %3966 = vmatmul.bf16.gmra.mxu0 %v865
    %v3967 = vpop.f32.mrf.mxu0
    %v3968 = vadd.f32 0.0, %v3967
    %v3969 = vpop.f32.mrf.mxu0
    %v3970 = vadd.f32 0.0, %v3969
    %3971 = vmatmul.bf16.gmra.mxu0 %v868
    %v3972 = vpop.f32.mrf.mxu0
    %v3973 = vadd.f32 0.0, %v3972
    %v3974 = vpop.f32.mrf.mxu0
    %v3975 = vadd.f32 0.0, %v3974
    %3976 = vmatmul.bf16.gmra.mxu0 %v871
    %v3977 = vpop.f32.mrf.mxu0
    %v3978 = vadd.f32 0.0, %v3977
    %v3979 = vpop.f32.mrf.mxu0
    %v3980 = vadd.f32 0.0, %v3979
    %3981 = vmatmul.bf16.gmra.mxu0 %v874
    %v3982 = vpop.f32.mrf.mxu0
    %v3983 = vadd.f32 0.0, %v3982
    %v3984 = vpop.f32.mrf.mxu0
    %v3985 = vadd.f32 0.0, %v3984
    %3986 = vmatmul.bf16.gmra.mxu0 %v877
    %v3987 = vpop.f32.mrf.mxu0
    %v3988 = vadd.f32 0.0, %v3987
    %v3989 = vpop.f32.mrf.mxu0
    %v3990 = vadd.f32 0.0, %v3989
    %3991 = vdwg.mxu0
    %3992 = vmatpush.bf16.msra.mxu0 0
    %3993 = vmatpush.bf16.msra.mxu0 0
    %3994 = vmatpush.bf16.msra.mxu0 0
    %3995 = vmatpush.bf16.msra.mxu0 0
    %3996 = vmatpush.bf16.msra.mxu0 0
    %3997 = vmatpush.bf16.msra.mxu0 0
    %3998 = vmatpush.bf16.msra.mxu0 %v3695
    %3999 = vmatpush.bf16.msra.mxu0 %v3686
    %4000 = vmatmul.bf16.gmra.mxu0 %v856
    %v4001 = vpop.f32.mrf.mxu0
    %v4002 = vadd.f32 0.0, %v4001
    %v4003 = vpop.f32.mrf.mxu0
    %v4004 = vadd.f32 0.0, %v4003
    %4005 = vmatmul.bf16.gmra.mxu0 %v859
    %v4006 = vpop.f32.mrf.mxu0
    %v4007 = vadd.f32 0.0, %v4006
    %v4008 = vpop.f32.mrf.mxu0
    %v4009 = vadd.f32 0.0, %v4008
    %4010 = vmatmul.bf16.gmra.mxu0 %v862
    %v4011 = vpop.f32.mrf.mxu0
    %v4012 = vadd.f32 0.0, %v4011
    %v4013 = vpop.f32.mrf.mxu0
    %v4014 = vadd.f32 0.0, %v4013
    %4015 = vmatmul.bf16.gmra.mxu0 %v865
    %v4016 = vpop.f32.mrf.mxu0
    %v4017 = vadd.f32 0.0, %v4016
    %v4018 = vpop.f32.mrf.mxu0
    %v4019 = vadd.f32 0.0, %v4018
    %4020 = vmatmul.bf16.gmra.mxu0 %v868
    %v4021 = vpop.f32.mrf.mxu0
    %v4022 = vadd.f32 0.0, %v4021
    %v4023 = vpop.f32.mrf.mxu0
    %v4024 = vadd.f32 0.0, %v4023
    %4025 = vmatmul.bf16.gmra.mxu0 %v871
    %v4026 = vpop.f32.mrf.mxu0
    %v4027 = vadd.f32 0.0, %v4026
    %v4028 = vpop.f32.mrf.mxu0
    %v4029 = vadd.f32 0.0, %v4028
    %4030 = vmatmul.bf16.gmra.mxu0 %v874
    %v4031 = vpop.f32.mrf.mxu0
    %v4032 = vadd.f32 0.0, %v4031
    %v4033 = vpop.f32.mrf.mxu0
    %v4034 = vadd.f32 0.0, %v4033
    %4035 = vmatmul.bf16.gmra.mxu0 %v877
    %v4036 = vpop.f32.mrf.mxu0
    %v4037 = vadd.f32 0.0, %v4036
    %v4038 = vpop.f32.mrf.mxu0
    %v4039 = vadd.f32 0.0, %v4038
    %4040 = vdwg.mxu0
    %4041 = vmatpush.bf16.msra.mxu0 0
    %4042 = vmatpush.bf16.msra.mxu0 0
    %4043 = vmatpush.bf16.msra.mxu0 0
    %4044 = vmatpush.bf16.msra.mxu0 0
    %4045 = vmatpush.bf16.msra.mxu0 0
    %4046 = vmatpush.bf16.msra.mxu0 0
    %4047 = vmatpush.bf16.msra.mxu0 %v3696
    %4048 = vmatpush.bf16.msra.mxu0 %v3687
    %4049 = vmatmul.bf16.gmra.mxu0 %v856
    %v4050 = vpop.f32.mrf.mxu0
    %v4051 = vadd.f32 0.0, %v4050
    %v4052 = vpop.f32.mrf.mxu0
    %v4053 = vadd.f32 0.0, %v4052
    %4054 = vmatmul.bf16.gmra.mxu0 %v859
    %v4055 = vpop.f32.mrf.mxu0
    %v4056 = vadd.f32 0.0, %v4055
    %v4057 = vpop.f32.mrf.mxu0
    %v4058 = vadd.f32 0.0, %v4057
    %4059 = vmatmul.bf16.gmra.mxu0 %v862
    %v4060 = vpop.f32.mrf.mxu0
    %v4061 = vadd.f32 0.0, %v4060
    %v4062 = vpop.f32.mrf.mxu0
    %v4063 = vadd.f32 0.0, %v4062
    %4064 = vmatmul.bf16.gmra.mxu0 %v865
    %v4065 = vpop.f32.mrf.mxu0
    %v4066 = vadd.f32 0.0, %v4065
    %v4067 = vpop.f32.mrf.mxu0
    %v4068 = vadd.f32 0.0, %v4067
    %4069 = vmatmul.bf16.gmra.mxu0 %v868
    %v4070 = vpop.f32.mrf.mxu0
    %v4071 = vadd.f32 0.0, %v4070
    %v4072 = vpop.f32.mrf.mxu0
    %v4073 = vadd.f32 0.0, %v4072
    %4074 = vmatmul.bf16.gmra.mxu0 %v871
    %v4075 = vpop.f32.mrf.mxu0
    %v4076 = vadd.f32 0.0, %v4075
    %v4077 = vpop.f32.mrf.mxu0
    %v4078 = vadd.f32 0.0, %v4077
    %4079 = vmatmul.bf16.gmra.mxu0 %v874
    %v4080 = vpop.f32.mrf.mxu0
    %v4081 = vadd.f32 0.0, %v4080
    %v4082 = vpop.f32.mrf.mxu0
    %v4083 = vadd.f32 0.0, %v4082
    %4084 = vmatmul.bf16.gmra.mxu0 %v877
    %v4085 = vpop.f32.mrf.mxu0
    %v4086 = vadd.f32 0.0, %v4085
    %v4087 = vpop.f32.mrf.mxu0
    %v4088 = vadd.f32 0.0, %v4087
    %4089 = vdwg.mxu0
    %4090 = vmatpush.bf16.msra.mxu0 0
    %4091 = vmatpush.bf16.msra.mxu0 0
    %4092 = vmatpush.bf16.msra.mxu0 0
    %4093 = vmatpush.bf16.msra.mxu0 0
    %4094 = vmatpush.bf16.msra.mxu0 0
    %4095 = vmatpush.bf16.msra.mxu0 0
    %4096 = vmatpush.bf16.msra.mxu0 %v3697
    %4097 = vmatpush.bf16.msra.mxu0 %v3688
    %4098 = vmatmul.bf16.gmra.mxu0 %v856
    %v4099 = vpop.f32.mrf.mxu0
    %v4100 = vadd.f32 0.0, %v4099
    %v4101 = vpop.f32.mrf.mxu0
    %v4102 = vadd.f32 0.0, %v4101
    %4103 = vmatmul.bf16.gmra.mxu0 %v859
    %v4104 = vpop.f32.mrf.mxu0
    %v4105 = vadd.f32 0.0, %v4104
    %v4106 = vpop.f32.mrf.mxu0
    %v4107 = vadd.f32 0.0, %v4106
    %4108 = vmatmul.bf16.gmra.mxu0 %v862
    %v4109 = vpop.f32.mrf.mxu0
    %v4110 = vadd.f32 0.0, %v4109
    %v4111 = vpop.f32.mrf.mxu0
    %v4112 = vadd.f32 0.0, %v4111
    %4113 = vmatmul.bf16.gmra.mxu0 %v865
    %v4114 = vpop.f32.mrf.mxu0
    %v4115 = vadd.f32 0.0, %v4114
    %v4116 = vpop.f32.mrf.mxu0
    %v4117 = vadd.f32 0.0, %v4116
    %4118 = vmatmul.bf16.gmra.mxu0 %v868
    %v4119 = vpop.f32.mrf.mxu0
    %v4120 = vadd.f32 0.0, %v4119
    %v4121 = vpop.f32.mrf.mxu0
    %v4122 = vadd.f32 0.0, %v4121
    %4123 = vmatmul.bf16.gmra.mxu0 %v871
    %v4124 = vpop.f32.mrf.mxu0
    %v4125 = vadd.f32 0.0, %v4124
    %v4126 = vpop.f32.mrf.mxu0
    %v4127 = vadd.f32 0.0, %v4126
    %4128 = vmatmul.bf16.gmra.mxu0 %v874
    %v4129 = vpop.f32.mrf.mxu0
    %v4130 = vadd.f32 0.0, %v4129
    %v4131 = vpop.f32.mrf.mxu0
    %v4132 = vadd.f32 0.0, %v4131
    %4133 = vmatmul.bf16.gmra.mxu0 %v877
    %v4134 = vpop.f32.mrf.mxu0
    %v4135 = vadd.f32 0.0, %v4134
    %v4136 = vpop.f32.mrf.mxu0
    %v4137 = vadd.f32 0.0, %v4136
    %4138 = vdwg.mxu0
    %4141 = vrot.lane.b32.xlu0 %v3688, 112
    %v4142 = vpop.permute.xlu0 %4141
    %4143 = vrot.lane.b32.xlu0 %v3697, 112
    %v4144 = vpop.permute.xlu0 %4143
    %4147 = vmatpush.bf16.msra.mxu0 0
    %4148 = vmatpush.bf16.msra.mxu0 0
    %4149 = vmatpush.bf16.msra.mxu0 0
    %4150 = vmatpush.bf16.msra.mxu0 0
    %4151 = vmatpush.bf16.msra.mxu0 0
    %4152 = vmatpush.bf16.msra.mxu0 0
    %4153 = vmatpush.bf16.msra.mxu0 %v4144
    %4154 = vmatpush.bf16.msra.mxu0 %v4142
    %4155 = vmatmul.bf16.gmra.mxu0 %v1369
    %v4156 = vpop.f32.mrf.mxu0
    %v4157 = vadd.f32 0.0, %v4156
    %v4158 = vpop.f32.mrf.mxu0
    %v4159 = vadd.f32 0.0, %v4158
    %4160 = vmatmul.bf16.gmra.mxu0 %v1372
    %v4161 = vpop.f32.mrf.mxu0
    %v4162 = vadd.f32 0.0, %v4161
    %v4163 = vpop.f32.mrf.mxu0
    %v4164 = vadd.f32 0.0, %v4163
    %4165 = vmatmul.bf16.gmra.mxu0 %v1375
    %v4166 = vpop.f32.mrf.mxu0
    %v4167 = vadd.f32 0.0, %v4166
    %v4168 = vpop.f32.mrf.mxu0
    %v4169 = vadd.f32 0.0, %v4168
    %4170 = vmatmul.bf16.gmra.mxu0 %v1378
    %v4171 = vpop.f32.mrf.mxu0
    %v4172 = vadd.f32 0.0, %v4171
    %v4173 = vpop.f32.mrf.mxu0
    %v4174 = vadd.f32 0.0, %v4173
    %4175 = vmatmul.bf16.gmra.mxu0 %v1381
    %v4176 = vpop.f32.mrf.mxu0
    %v4177 = vadd.f32 0.0, %v4176
    %v4178 = vpop.f32.mrf.mxu0
    %v4179 = vadd.f32 0.0, %v4178
    %4180 = vmatmul.bf16.gmra.mxu0 %v1384
    %v4181 = vpop.f32.mrf.mxu0
    %v4182 = vadd.f32 0.0, %v4181
    %v4183 = vpop.f32.mrf.mxu0
    %v4184 = vadd.f32 0.0, %v4183
    %4185 = vmatmul.bf16.gmra.mxu0 %v1387
    %v4186 = vpop.f32.mrf.mxu0
    %v4187 = vadd.f32 0.0, %v4186
    %v4188 = vpop.f32.mrf.mxu0
    %v4189 = vadd.f32 0.0, %v4188
    %4190 = vmatmul.bf16.gmra.mxu0 %v1390
    %v4191 = vpop.f32.mrf.mxu0
    %v4192 = vadd.f32 0.0, %v4191
    %v4193 = vpop.f32.mrf.mxu0
    %v4194 = vadd.f32 0.0, %v4193
    %4195 = vdwg.mxu0
    %v4196 = vadd.f32 %v4100, %v4157
    %v4197 = vadd.f32 %v4102, %v4159
    %v4198 = vadd.f32 %v4105, %v4162
    %v4199 = vadd.f32 %v4107, %v4164
    %v4200 = vadd.f32 %v4110, %v4167
    %v4201 = vadd.f32 %v4112, %v4169
    %v4202 = vadd.f32 %v4115, %v4172
    %v4203 = vadd.f32 %v4117, %v4174
    %v4204 = vadd.f32 %v4120, %v4177
    %v4205 = vadd.f32 %v4122, %v4179
    %v4206 = vadd.f32 %v4125, %v4182
    %v4207 = vadd.f32 %v4127, %v4184
    %v4208 = vadd.f32 %v4130, %v4187
    %v4209 = vadd.f32 %v4132, %v4189
    %v4210 = vadd.f32 %v4135, %v4192
    %v4211 = vadd.f32 %v4137, %v4194
    %v4212 = vadd.f32 %v4196, %v3641
    %v4213 = vadd.f32 %v4197, %v3643
    %v4214 = vadd.f32 %v4198, %v3646
    %v4215 = vadd.f32 %v4199, %v3648
    %v4216 = vadd.f32 %v4200, %v3651
    %v4217 = vadd.f32 %v4201, %v3653
    %v4218 = vadd.f32 %v4202, %v3656
    %v4219 = vadd.f32 %v4203, %v3658
    %v4220 = vadd.f32 %v4204, %v3661
    %v4221 = vadd.f32 %v4205, %v3663
    %v4222 = vadd.f32 %v4206, %v3666
    %v4223 = vadd.f32 %v4207, %v3668
    %v4224 = vadd.f32 %v4208, %v3671
    %v4225 = vadd.f32 %v4209, %v3673
    %v4226 = vadd.f32 %v4210, %v3676
    %v4227 = vadd.f32 %v4211, %v3678
    %vm4228 = vcmp.ge.f32.partialorder %v4212, 0.0
    %vm4229 = vcmp.ge.f32.partialorder %v4213, 0.0
    %vm4230 = vcmp.ge.f32.partialorder %v4214, 0.0
    %vm4231 = vcmp.ge.f32.partialorder %v4215, 0.0
    %vm4232 = vcmp.ge.f32.partialorder %v4216, 0.0
    %vm4233 = vcmp.ge.f32.partialorder %v4217, 0.0
    %vm4234 = vcmp.ge.f32.partialorder %v4218, 0.0
    %vm4235 = vcmp.ge.f32.partialorder %v4219, 0.0
    %vm4236 = vcmp.ge.f32.partialorder %v4220, 0.0
    %vm4237 = vcmp.ge.f32.partialorder %v4221, 0.0
    %vm4238 = vcmp.ge.f32.partialorder %v4222, 0.0
    %vm4239 = vcmp.ge.f32.partialorder %v4223, 0.0
    %vm4240 = vcmp.ge.f32.partialorder %v4224, 0.0
    %vm4241 = vcmp.ge.f32.partialorder %v4225, 0.0
    %vm4242 = vcmp.ge.f32.partialorder %v4226, 0.0
    %vm4243 = vcmp.ge.f32.partialorder %v4227, 0.0
    %v4244 = vmul.f32 %v4212, 0.2
    %v4245 = vmul.f32 %v4213, 0.2
    %v4246 = vmul.f32 %v4214, 0.2
    %v4247 = vmul.f32 %v4215, 0.2
    %v4248 = vmul.f32 %v4216, 0.2
    %v4249 = vmul.f32 %v4217, 0.2
    %v4250 = vmul.f32 %v4218, 0.2
    %v4251 = vmul.f32 %v4219, 0.2
    %v4252 = vmul.f32 %v4220, 0.2
    %v4253 = vmul.f32 %v4221, 0.2
    %v4254 = vmul.f32 %v4222, 0.2
    %v4255 = vmul.f32 %v4223, 0.2
    %v4256 = vmul.f32 %v4224, 0.2
    %v4257 = vmul.f32 %v4225, 0.2
    %v4258 = vmul.f32 %v4226, 0.2
    %v4259 = vmul.f32 %v4227, 0.2
    %v4260 = vsel %vm4228, %v4212, %v4244
    %v4261 = vsel %vm4229, %v4213, %v4245
    %v4262 = vsel %vm4230, %v4214, %v4246
    %v4263 = vsel %vm4231, %v4215, %v4247
    %v4264 = vsel %vm4232, %v4216, %v4248
    %v4265 = vsel %vm4233, %v4217, %v4249
    %v4266 = vsel %vm4234, %v4218, %v4250
    %v4267 = vsel %vm4235, %v4219, %v4251
    %v4268 = vsel %vm4236, %v4220, %v4252
    %v4269 = vsel %vm4237, %v4221, %v4253
    %v4270 = vsel %vm4238, %v4222, %v4254
    %v4271 = vsel %vm4239, %v4223, %v4255
    %v4272 = vsel %vm4240, %v4224, %v4256
    %v4273 = vsel %vm4241, %v4225, %v4257
    %v4274 = vsel %vm4242, %v4226, %v4258
    %v4275 = vsel %vm4243, %v4227, %v4259
    %v4276 = vsel %vm1521, %v4260, -inf
    %v4277 = vsel %vm1521, %v4261, -inf
    %v4278 = vsel %vm1521, %v4262, -inf
    %v4279 = vsel %vm1521, %v4263, -inf
    %v4280 = vsel %vm1521, %v4264, -inf
    %v4281 = vmax.f32 %v4276, %v4280
    %v4282 = vsel %vm1521, %v4265, -inf
    %v4283 = vmax.f32 %v4277, %v4282
    %v4284 = vsel %vm1521, %v4266, -inf
    %v4285 = vmax.f32 %v4278, %v4284
    %v4286 = vsel %vm1521, %v4267, -inf
    %v4287 = vmax.f32 %v4279, %v4286
    %v4288 = vsel %vm1521, %v4268, -inf
    %v4289 = vmax.f32 %v4281, %v4288
    %v4290 = vsel %vm1521, %v4269, -inf
    %v4291 = vmax.f32 %v4283, %v4290
    %v4292 = vsel %vm1521, %v4270, -inf
    %v4293 = vmax.f32 %v4285, %v4292
    %v4294 = vsel %vm1521, %v4271, -inf
    %v4295 = vmax.f32 %v4287, %v4294
    %v4296 = vsel %vm1521, %v4272, -inf
    %v4297 = vmax.f32 %v4289, %v4296
    %v4298 = vsel %vm1521, %v4273, -inf
    %v4299 = vmax.f32 %v4291, %v4298
    %v4300 = vsel %vm1521, %v4274, -inf
    %v4301 = vmax.f32 %v4293, %v4300
    %v4302 = vsel %vm1521, %v4275, -inf
    %v4303 = vmax.f32 %v4295, %v4302
    %v4304 = vmax.f32 %v4297, %v4299
    %v4305 = vmax.f32 %v4301, %v4303
    %v4306 = vmax.f32 %v4304, %v4305
    %v4307 = vrot.slane %v4306, 4
    %v4308 = vmax.f32 %v4306, %v4307
    %v4309 = vrot.slane %v4308, 2
    %v4310 = vmax.f32 %v4308, %v4309
    %v4311 = vrot.slane %v4310, 1
    %v4312 = vmax.f32 %v4310, %v4311
    %v4313 = vsub.f32 %v4260, %v4312
    %v4314 = vsub.f32 %v4261, %v4312
    %v4315 = vsub.f32 %v4262, %v4312
    %v4316 = vsub.f32 %v4263, %v4312
    %v4317 = vsub.f32 %v4264, %v4312
    %v4318 = vsub.f32 %v4265, %v4312
    %v4319 = vsub.f32 %v4266, %v4312
    %v4320 = vsub.f32 %v4267, %v4312
    %v4321 = vsub.f32 %v4268, %v4312
    %v4322 = vsub.f32 %v4269, %v4312
    %v4323 = vsub.f32 %v4270, %v4312
    %v4324 = vsub.f32 %v4271, %v4312
    %v4325 = vsub.f32 %v4272, %v4312
    %v4326 = vsub.f32 %v4273, %v4312
    %v4327 = vsub.f32 %v4274, %v4312
    %v4328 = vsub.f32 %v4275, %v4312
    %v4329 = vmul.f32 %v4313, 1.442695
    %v4330 = vpow.pop %v4329
    %v4331 = vmul.f32 %v4314, 1.442695
    %v4332 = vpow.pop %v4331
    %v4333 = vmul.f32 %v4315, 1.442695
    %v4334 = vpow.pop %v4333
    %v4335 = vmul.f32 %v4316, 1.442695
    %v4336 = vpow.pop %v4335
    %v4337 = vmul.f32 %v4317, 1.442695
    %v4338 = vpow.pop %v4337
    %v4339 = vmul.f32 %v4318, 1.442695
    %v4340 = vpow.pop %v4339
    %v4341 = vmul.f32 %v4319, 1.442695
    %v4342 = vpow.pop %v4341
    %v4343 = vmul.f32 %v4320, 1.442695
    %v4344 = vpow.pop %v4343
    %v4345 = vmul.f32 %v4321, 1.442695
    %v4346 = vpow.pop %v4345
    %v4347 = vmul.f32 %v4322, 1.442695
    %v4348 = vpow.pop %v4347
    %v4349 = vmul.f32 %v4323, 1.442695
    %v4350 = vpow.pop %v4349
    %v4351 = vmul.f32 %v4324, 1.442695
    %v4352 = vpow.pop %v4351
    %v4353 = vmul.f32 %v4325, 1.442695
    %v4354 = vpow.pop %v4353
    %v4355 = vmul.f32 %v4326, 1.442695
    %v4356 = vpow.pop %v4355
    %v4357 = vmul.f32 %v4327, 1.442695
    %v4358 = vpow.pop %v4357
    %v4359 = vmul.f32 %v4328, 1.442695
    %v4360 = vpow.pop %v4359
    %v4361 = vpack.c.bf16 %v4332, %v4330
    %v4362 = vpack.c.bf16 %v4336, %v4334
    %v4363 = vpack.c.bf16 %v4340, %v4338
    %v4364 = vpack.c.bf16 %v4344, %v4342
    %v4365 = vpack.c.bf16 %v4348, %v4346
    %v4366 = vpack.c.bf16 %v4352, %v4350
    %v4367 = vpack.c.bf16 %v4356, %v4354
    %v4368 = vpack.c.bf16 %v4360, %v4358
    %4369 = vmatpush.bf16.msra.mxu0 %v4368
    %4370 = vmatpush.bf16.msra.mxu0 %v4367
    %4371 = vmatpush.bf16.msra.mxu0 %v4366
    %4372 = vmatpush.bf16.msra.mxu0 %v4365
    %4373 = vmatpush.bf16.msra.mxu0 %v4364
    %4374 = vmatpush.bf16.msra.mxu0 %v4363
    %4375 = vmatpush.bf16.msra.mxu0 %v4362
    %4376 = vmatpush.bf16.msra.mxu0 %v4361
    %4377 = vmatmul.bf16.gmra.mxu0 %v1623
    %v4378 = vpop.f32.mrf.mxu0
    %v4379 = vadd.f32 0.0, %v4378
    %v4380 = vpop.f32.mrf.mxu0
    %v4381 = vadd.f32 0.0, %v4380
    %4382 = vmatmul.bf16.gmra.mxu0 %v1624
    %v4383 = vpop.f32.mrf.mxu0
    %v4384 = vadd.f32 0.0, %v4383
    %v4385 = vpop.f32.mrf.mxu0
    %v4386 = vadd.f32 0.0, %v4385
    %4387 = vdwg.mxu0
    %v4388 = vpack.c.bf16 %v4381, %v4379
    %v4389 = vpack.c.bf16 %v4386, %v4384
    %4390 = vmatpush.bf16.msra.mxu0 0
    %4391 = vmatpush.bf16.msra.mxu0 0
    %4392 = vmatpush.bf16.msra.mxu0 0
    %4393 = vmatpush.bf16.msra.mxu0 0
    %4394 = vmatpush.bf16.msra.mxu0 0
    %4395 = vmatpush.bf16.msra.mxu0 0
    %4396 = vmatpush.bf16.msra.mxu0 %v4389
    %4397 = vmatpush.bf16.msra.mxu0 %v4388
    %4398 = vmatmul.bf16.gmra.mxu0 %v1369
    %v4399 = vpop.f32.mrf.mxu0
    %v4400 = vadd.f32 1e-16, %v4399
    %v4401 = vpop.f32.mrf.mxu0
    %v4402 = vadd.f32 1e-16, %v4401
    %4403 = vmatmul.bf16.gmra.mxu0 %v1372
    %v4404 = vpop.f32.mrf.mxu0
    %v4405 = vadd.f32 1e-16, %v4404
    %v4406 = vpop.f32.mrf.mxu0
    %v4407 = vadd.f32 1e-16, %v4406
    %4408 = vmatmul.bf16.gmra.mxu0 %v1375
    %v4409 = vpop.f32.mrf.mxu0
    %v4410 = vadd.f32 1e-16, %v4409
    %v4411 = vpop.f32.mrf.mxu0
    %v4412 = vadd.f32 1e-16, %v4411
    %4413 = vmatmul.bf16.gmra.mxu0 %v1378
    %v4414 = vpop.f32.mrf.mxu0
    %v4415 = vadd.f32 1e-16, %v4414
    %v4416 = vpop.f32.mrf.mxu0
    %v4417 = vadd.f32 1e-16, %v4416
    %4418 = vmatmul.bf16.gmra.mxu0 %v1381
    %v4419 = vpop.f32.mrf.mxu0
    %v4420 = vadd.f32 1e-16, %v4419
    %v4421 = vpop.f32.mrf.mxu0
    %v4422 = vadd.f32 1e-16, %v4421
    %4423 = vmatmul.bf16.gmra.mxu0 %v1384
    %v4424 = vpop.f32.mrf.mxu0
    %v4425 = vadd.f32 1e-16, %v4424
    %v4426 = vpop.f32.mrf.mxu0
    %v4427 = vadd.f32 1e-16, %v4426
    %4428 = vmatmul.bf16.gmra.mxu0 %v1387
    %v4429 = vpop.f32.mrf.mxu0
    %v4430 = vadd.f32 1e-16, %v4429
    %v4431 = vpop.f32.mrf.mxu0
    %v4432 = vadd.f32 1e-16, %v4431
    %4433 = vmatmul.bf16.gmra.mxu0 %v1390
    %v4434 = vpop.f32.mrf.mxu0
    %v4435 = vadd.f32 1e-16, %v4434
    %v4436 = vpop.f32.mrf.mxu0
    %v4437 = vadd.f32 1e-16, %v4436
    %4438 = vdwg.mxu0
    %v4439 = vrcp.pop %v4400
    %v4440 = vrcp.pop %v4402
    %v4441 = vrcp.pop %v4405
    %v4442 = vrcp.pop %v4407
    %v4443 = vrcp.pop %v4410
    %v4444 = vrcp.pop %v4412
    %v4445 = vrcp.pop %v4415
    %v4446 = vrcp.pop %v4417
    %v4447 = vrcp.pop %v4420
    %v4448 = vrcp.pop %v4422
    %v4449 = vrcp.pop %v4425
    %v4450 = vrcp.pop %v4427
    %v4451 = vrcp.pop %v4430
    %v4452 = vrcp.pop %v4432
    %v4453 = vrcp.pop %v4435
    %v4454 = vrcp.pop %v4437
    %v4455 = vmul.f32 %v4330, %v4439
    %v4456 = vmul.f32 %v4332, %v4440
    %v4457 = vmul.f32 %v4334, %v4441
    %v4458 = vmul.f32 %v4336, %v4442
    %v4459 = vmul.f32 %v4338, %v4443
    %v4460 = vmul.f32 %v4340, %v4444
    %v4461 = vmul.f32 %v4342, %v4445
    %v4462 = vmul.f32 %v4344, %v4446
    %v4463 = vmul.f32 %v4346, %v4447
    %v4464 = vmul.f32 %v4348, %v4448
    %v4465 = vmul.f32 %v4350, %v4449
    %v4466 = vmul.f32 %v4352, %v4450
    %v4467 = vmul.f32 %v4354, %v4451
    %v4468 = vmul.f32 %v4356, %v4452
    %v4469 = vmul.f32 %v4358, %v4453
    %v4470 = vmul.f32 %v4360, %v4454
    %v4471 = vpack.c.bf16 %v4456, %v4455
    %v4472 = vpack.c.bf16 %v4458, %v4457
    %v4473 = vpack.c.bf16 %v4460, %v4459
    %v4474 = vpack.c.bf16 %v4462, %v4461
    %v4475 = vpack.c.bf16 %v4464, %v4463
    %v4476 = vpack.c.bf16 %v4466, %v4465
    %v4477 = vpack.c.bf16 %v4468, %v4467
    %v4478 = vpack.c.bf16 %v4470, %v4469
    %v4480 = vsel %vm1521, %v4471, 0
    %v4483 = vsel %vm1521, %v4472, 0
    %v4486 = vsel %vm1521, %v4473, 0
    %v4489 = vsel %vm1521, %v4474, 0
    %v4492 = vsel %vm1521, %v4475, 0
    %v4495 = vsel %vm1521, %v4476, 0
    %v4498 = vsel %vm1521, %v4477, 0
    %v4501 = vsel %vm1521, %v4478, 0
    %4503 = vmatpush.bf16.msra.mxu0 0
    %4504 = vmatpush.bf16.msra.mxu0 0
    %4505 = vmatpush.bf16.msra.mxu0 0
    %4506 = vmatpush.bf16.msra.mxu0 0
    %4507 = vmatpush.bf16.msra.mxu0 0
    %4508 = vmatpush.bf16.msra.mxu0 0
    %4509 = vmatpush.bf16.msra.mxu0 0
    %4510 = vmatpush.bf16.msra.mxu0 %v1761
    %4511 = vmatmul.bf16.gmra.mxu0 %v4480
    %v4512 = vpop.f32.mrf.mxu0
    %v4513 = vadd.f32 0.0, %v4512
    %v4514 = vpop.f32.mrf.mxu0
    %v4515 = vadd.f32 0.0, %v4514
    %4516 = vmatmul.bf16.gmra.mxu0 %v4483
    %v4517 = vpop.f32.mrf.mxu0
    %v4518 = vadd.f32 0.0, %v4517
    %v4519 = vpop.f32.mrf.mxu0
    %v4520 = vadd.f32 0.0, %v4519
    %4521 = vmatmul.bf16.gmra.mxu0 %v4486
    %v4522 = vpop.f32.mrf.mxu0
    %v4523 = vadd.f32 0.0, %v4522
    %v4524 = vpop.f32.mrf.mxu0
    %v4525 = vadd.f32 0.0, %v4524
    %4526 = vmatmul.bf16.gmra.mxu0 %v4489
    %v4527 = vpop.f32.mrf.mxu0
    %v4528 = vadd.f32 0.0, %v4527
    %v4529 = vpop.f32.mrf.mxu0
    %v4530 = vadd.f32 0.0, %v4529
    %4531 = vmatmul.bf16.gmra.mxu0 %v4492
    %v4532 = vpop.f32.mrf.mxu0
    %v4533 = vadd.f32 0.0, %v4532
    %v4534 = vpop.f32.mrf.mxu0
    %v4535 = vadd.f32 0.0, %v4534
    %4536 = vmatmul.bf16.gmra.mxu0 %v4495
    %v4537 = vpop.f32.mrf.mxu0
    %v4538 = vadd.f32 0.0, %v4537
    %v4539 = vpop.f32.mrf.mxu0
    %v4540 = vadd.f32 0.0, %v4539
    %4541 = vmatmul.bf16.gmra.mxu0 %v4498
    %v4542 = vpop.f32.mrf.mxu0
    %v4543 = vadd.f32 0.0, %v4542
    %v4544 = vpop.f32.mrf.mxu0
    %v4545 = vadd.f32 0.0, %v4544
    %4546 = vmatmul.bf16.gmra.mxu0 %v4501
    %v4547 = vpop.f32.mrf.mxu0
    %v4548 = vadd.f32 0.0, %v4547
    %v4549 = vpop.f32.mrf.mxu0
    %v4550 = vadd.f32 0.0, %v4549
    %4551 = vdwg.mxu0
    %4552 = vmatpush.bf16.msra.mxu0 0
    %4553 = vmatpush.bf16.msra.mxu0 0
    %4554 = vmatpush.bf16.msra.mxu0 0
    %4555 = vmatpush.bf16.msra.mxu0 0
    %4556 = vmatpush.bf16.msra.mxu0 0
    %4557 = vmatpush.bf16.msra.mxu0 0
    %4558 = vmatpush.bf16.msra.mxu0 0
    %4559 = vmatpush.bf16.msra.mxu0 %v1762
    %4560 = vmatmul.bf16.gmra.mxu0 %v4480
    %v4561 = vpop.f32.mrf.mxu0
    %v4562 = vadd.f32 0.0, %v4561
    %v4563 = vpop.f32.mrf.mxu0
    %v4564 = vadd.f32 0.0, %v4563
    %4565 = vmatmul.bf16.gmra.mxu0 %v4483
    %v4566 = vpop.f32.mrf.mxu0
    %v4567 = vadd.f32 0.0, %v4566
    %v4568 = vpop.f32.mrf.mxu0
    %v4569 = vadd.f32 0.0, %v4568
    %4570 = vmatmul.bf16.gmra.mxu0 %v4486
    %v4571 = vpop.f32.mrf.mxu0
    %v4572 = vadd.f32 0.0, %v4571
    %v4573 = vpop.f32.mrf.mxu0
    %v4574 = vadd.f32 0.0, %v4573
    %4575 = vmatmul.bf16.gmra.mxu0 %v4489
    %v4576 = vpop.f32.mrf.mxu0
    %v4577 = vadd.f32 0.0, %v4576
    %v4578 = vpop.f32.mrf.mxu0
    %v4579 = vadd.f32 0.0, %v4578
    %4580 = vmatmul.bf16.gmra.mxu0 %v4492
    %v4581 = vpop.f32.mrf.mxu0
    %v4582 = vadd.f32 0.0, %v4581
    %v4583 = vpop.f32.mrf.mxu0
    %v4584 = vadd.f32 0.0, %v4583
    %4585 = vmatmul.bf16.gmra.mxu0 %v4495
    %v4586 = vpop.f32.mrf.mxu0
    %v4587 = vadd.f32 0.0, %v4586
    %v4588 = vpop.f32.mrf.mxu0
    %v4589 = vadd.f32 0.0, %v4588
    %4590 = vmatmul.bf16.gmra.mxu0 %v4498
    %v4591 = vpop.f32.mrf.mxu0
    %v4592 = vadd.f32 0.0, %v4591
    %v4593 = vpop.f32.mrf.mxu0
    %v4594 = vadd.f32 0.0, %v4593
    %4595 = vmatmul.bf16.gmra.mxu0 %v4501
    %v4596 = vpop.f32.mrf.mxu0
    %v4597 = vadd.f32 0.0, %v4596
    %v4598 = vpop.f32.mrf.mxu0
    %v4599 = vadd.f32 0.0, %v4598
    %4600 = vdwg.mxu0
    %4601 = vmatpush.bf16.msra.mxu0 0
    %4602 = vmatpush.bf16.msra.mxu0 0
    %4603 = vmatpush.bf16.msra.mxu0 0
    %4604 = vmatpush.bf16.msra.mxu0 0
    %4605 = vmatpush.bf16.msra.mxu0 0
    %4606 = vmatpush.bf16.msra.mxu0 0
    %4607 = vmatpush.bf16.msra.mxu0 0
    %4608 = vmatpush.bf16.msra.mxu0 %v1763
    %4609 = vmatmul.bf16.gmra.mxu0 %v4480
    %v4610 = vpop.f32.mrf.mxu0
    %v4611 = vadd.f32 0.0, %v4610
    %v4612 = vpop.f32.mrf.mxu0
    %v4613 = vadd.f32 0.0, %v4612
    %4614 = vmatmul.bf16.gmra.mxu0 %v4483
    %v4615 = vpop.f32.mrf.mxu0
    %v4616 = vadd.f32 0.0, %v4615
    %v4617 = vpop.f32.mrf.mxu0
    %v4618 = vadd.f32 0.0, %v4617
    %4619 = vmatmul.bf16.gmra.mxu0 %v4486
    %v4620 = vpop.f32.mrf.mxu0
    %v4621 = vadd.f32 0.0, %v4620
    %v4622 = vpop.f32.mrf.mxu0
    %v4623 = vadd.f32 0.0, %v4622
    %4624 = vmatmul.bf16.gmra.mxu0 %v4489
    %v4625 = vpop.f32.mrf.mxu0
    %v4626 = vadd.f32 0.0, %v4625
    %v4627 = vpop.f32.mrf.mxu0
    %v4628 = vadd.f32 0.0, %v4627
    %4629 = vmatmul.bf16.gmra.mxu0 %v4492
    %v4630 = vpop.f32.mrf.mxu0
    %v4631 = vadd.f32 0.0, %v4630
    %v4632 = vpop.f32.mrf.mxu0
    %v4633 = vadd.f32 0.0, %v4632
    %4634 = vmatmul.bf16.gmra.mxu0 %v4495
    %v4635 = vpop.f32.mrf.mxu0
    %v4636 = vadd.f32 0.0, %v4635
    %v4637 = vpop.f32.mrf.mxu0
    %v4638 = vadd.f32 0.0, %v4637
    %4639 = vmatmul.bf16.gmra.mxu0 %v4498
    %v4640 = vpop.f32.mrf.mxu0
    %v4641 = vadd.f32 0.0, %v4640
    %v4642 = vpop.f32.mrf.mxu0
    %v4643 = vadd.f32 0.0, %v4642
    %4644 = vmatmul.bf16.gmra.mxu0 %v4501
    %v4645 = vpop.f32.mrf.mxu0
    %v4646 = vadd.f32 0.0, %v4645
    %v4647 = vpop.f32.mrf.mxu0
    %v4648 = vadd.f32 0.0, %v4647
    %4649 = vdwg.mxu0
    %4650 = vmatpush.bf16.msra.mxu0 0
    %4651 = vmatpush.bf16.msra.mxu0 0
    %4652 = vmatpush.bf16.msra.mxu0 0
    %4653 = vmatpush.bf16.msra.mxu0 0
    %4654 = vmatpush.bf16.msra.mxu0 0
    %4655 = vmatpush.bf16.msra.mxu0 0
    %4656 = vmatpush.bf16.msra.mxu0 0
    %4657 = vmatpush.bf16.msra.mxu0 %v1764
    %4658 = vmatmul.bf16.gmra.mxu0 %v4480
    %v4659 = vpop.f32.mrf.mxu0
    %v4660 = vadd.f32 0.0, %v4659
    %v4661 = vpop.f32.mrf.mxu0
    %v4662 = vadd.f32 0.0, %v4661
    %4663 = vmatmul.bf16.gmra.mxu0 %v4483
    %v4664 = vpop.f32.mrf.mxu0
    %v4665 = vadd.f32 0.0, %v4664
    %v4666 = vpop.f32.mrf.mxu0
    %v4667 = vadd.f32 0.0, %v4666
    %4668 = vmatmul.bf16.gmra.mxu0 %v4486
    %v4669 = vpop.f32.mrf.mxu0
    %v4670 = vadd.f32 0.0, %v4669
    %v4671 = vpop.f32.mrf.mxu0
    %v4672 = vadd.f32 0.0, %v4671
    %4673 = vmatmul.bf16.gmra.mxu0 %v4489
    %v4674 = vpop.f32.mrf.mxu0
    %v4675 = vadd.f32 0.0, %v4674
    %v4676 = vpop.f32.mrf.mxu0
    %v4677 = vadd.f32 0.0, %v4676
    %4678 = vmatmul.bf16.gmra.mxu0 %v4492
    %v4679 = vpop.f32.mrf.mxu0
    %v4680 = vadd.f32 0.0, %v4679
    %v4681 = vpop.f32.mrf.mxu0
    %v4682 = vadd.f32 0.0, %v4681
    %4683 = vmatmul.bf16.gmra.mxu0 %v4495
    %v4684 = vpop.f32.mrf.mxu0
    %v4685 = vadd.f32 0.0, %v4684
    %v4686 = vpop.f32.mrf.mxu0
    %v4687 = vadd.f32 0.0, %v4686
    %4688 = vmatmul.bf16.gmra.mxu0 %v4498
    %v4689 = vpop.f32.mrf.mxu0
    %v4690 = vadd.f32 0.0, %v4689
    %v4691 = vpop.f32.mrf.mxu0
    %v4692 = vadd.f32 0.0, %v4691
    %4693 = vmatmul.bf16.gmra.mxu0 %v4501
    %v4694 = vpop.f32.mrf.mxu0
    %v4695 = vadd.f32 0.0, %v4694
    %v4696 = vpop.f32.mrf.mxu0
    %v4697 = vadd.f32 0.0, %v4696
    %4698 = vdwg.mxu0
    %4699 = vmatpush.bf16.msra.mxu0 0
    %4700 = vmatpush.bf16.msra.mxu0 0
    %4701 = vmatpush.bf16.msra.mxu0 0
    %4702 = vmatpush.bf16.msra.mxu0 0
    %4703 = vmatpush.bf16.msra.mxu0 0
    %4704 = vmatpush.bf16.msra.mxu0 0
    %4705 = vmatpush.bf16.msra.mxu0 0
    %4706 = vmatpush.bf16.msra.mxu0 %v1765
    %4707 = vmatmul.bf16.gmra.mxu0 %v4480
    %v4708 = vpop.f32.mrf.mxu0
    %v4709 = vadd.f32 0.0, %v4708
    %v4710 = vpop.f32.mrf.mxu0
    %v4711 = vadd.f32 0.0, %v4710
    %4712 = vmatmul.bf16.gmra.mxu0 %v4483
    %v4713 = vpop.f32.mrf.mxu0
    %v4714 = vadd.f32 0.0, %v4713
    %v4715 = vpop.f32.mrf.mxu0
    %v4716 = vadd.f32 0.0, %v4715
    %4717 = vmatmul.bf16.gmra.mxu0 %v4486
    %v4718 = vpop.f32.mrf.mxu0
    %v4719 = vadd.f32 0.0, %v4718
    %v4720 = vpop.f32.mrf.mxu0
    %v4721 = vadd.f32 0.0, %v4720
    %4722 = vmatmul.bf16.gmra.mxu0 %v4489
    %v4723 = vpop.f32.mrf.mxu0
    %v4724 = vadd.f32 0.0, %v4723
    %v4725 = vpop.f32.mrf.mxu0
    %v4726 = vadd.f32 0.0, %v4725
    %4727 = vmatmul.bf16.gmra.mxu0 %v4492
    %v4728 = vpop.f32.mrf.mxu0
    %v4729 = vadd.f32 0.0, %v4728
    %v4730 = vpop.f32.mrf.mxu0
    %v4731 = vadd.f32 0.0, %v4730
    %4732 = vmatmul.bf16.gmra.mxu0 %v4495
    %v4733 = vpop.f32.mrf.mxu0
    %v4734 = vadd.f32 0.0, %v4733
    %v4735 = vpop.f32.mrf.mxu0
    %v4736 = vadd.f32 0.0, %v4735
    %4737 = vmatmul.bf16.gmra.mxu0 %v4498
    %v4738 = vpop.f32.mrf.mxu0
    %v4739 = vadd.f32 0.0, %v4738
    %v4740 = vpop.f32.mrf.mxu0
    %v4741 = vadd.f32 0.0, %v4740
    %4742 = vmatmul.bf16.gmra.mxu0 %v4501
    %v4743 = vpop.f32.mrf.mxu0
    %v4744 = vadd.f32 0.0, %v4743
    %v4745 = vpop.f32.mrf.mxu0
    %v4746 = vadd.f32 0.0, %v4745
    %4747 = vdwg.mxu0
    %4748 = vmatpush.bf16.msra.mxu0 0
    %4749 = vmatpush.bf16.msra.mxu0 0
    %4750 = vmatpush.bf16.msra.mxu0 0
    %4751 = vmatpush.bf16.msra.mxu0 0
    %4752 = vmatpush.bf16.msra.mxu0 0
    %4753 = vmatpush.bf16.msra.mxu0 0
    %4754 = vmatpush.bf16.msra.mxu0 0
    %4755 = vmatpush.bf16.msra.mxu0 %v1766
    %4756 = vmatmul.bf16.gmra.mxu0 %v4480
    %v4757 = vpop.f32.mrf.mxu0
    %v4758 = vadd.f32 0.0, %v4757
    %v4759 = vpop.f32.mrf.mxu0
    %v4760 = vadd.f32 0.0, %v4759
    %4761 = vmatmul.bf16.gmra.mxu0 %v4483
    %v4762 = vpop.f32.mrf.mxu0
    %v4763 = vadd.f32 0.0, %v4762
    %v4764 = vpop.f32.mrf.mxu0
    %v4765 = vadd.f32 0.0, %v4764
    %4766 = vmatmul.bf16.gmra.mxu0 %v4486
    %v4767 = vpop.f32.mrf.mxu0
    %v4768 = vadd.f32 0.0, %v4767
    %v4769 = vpop.f32.mrf.mxu0
    %v4770 = vadd.f32 0.0, %v4769
    %4771 = vmatmul.bf16.gmra.mxu0 %v4489
    %v4772 = vpop.f32.mrf.mxu0
    %v4773 = vadd.f32 0.0, %v4772
    %v4774 = vpop.f32.mrf.mxu0
    %v4775 = vadd.f32 0.0, %v4774
    %4776 = vmatmul.bf16.gmra.mxu0 %v4492
    %v4777 = vpop.f32.mrf.mxu0
    %v4778 = vadd.f32 0.0, %v4777
    %v4779 = vpop.f32.mrf.mxu0
    %v4780 = vadd.f32 0.0, %v4779
    %4781 = vmatmul.bf16.gmra.mxu0 %v4495
    %v4782 = vpop.f32.mrf.mxu0
    %v4783 = vadd.f32 0.0, %v4782
    %v4784 = vpop.f32.mrf.mxu0
    %v4785 = vadd.f32 0.0, %v4784
    %4786 = vmatmul.bf16.gmra.mxu0 %v4498
    %v4787 = vpop.f32.mrf.mxu0
    %v4788 = vadd.f32 0.0, %v4787
    %v4789 = vpop.f32.mrf.mxu0
    %v4790 = vadd.f32 0.0, %v4789
    %4791 = vmatmul.bf16.gmra.mxu0 %v4501
    %v4792 = vpop.f32.mrf.mxu0
    %v4793 = vadd.f32 0.0, %v4792
    %v4794 = vpop.f32.mrf.mxu0
    %v4795 = vadd.f32 0.0, %v4794
    %4796 = vdwg.mxu0
    %4797 = vmatpush.bf16.msra.mxu0 0
    %4798 = vmatpush.bf16.msra.mxu0 0
    %4799 = vmatpush.bf16.msra.mxu0 0
    %4800 = vmatpush.bf16.msra.mxu0 0
    %4801 = vmatpush.bf16.msra.mxu0 0
    %4802 = vmatpush.bf16.msra.mxu0 0
    %4803 = vmatpush.bf16.msra.mxu0 0
    %4804 = vmatpush.bf16.msra.mxu0 %v1767
    %4805 = vmatmul.bf16.gmra.mxu0 %v4480
    %v4806 = vpop.f32.mrf.mxu0
    %v4807 = vadd.f32 0.0, %v4806
    %v4808 = vpop.f32.mrf.mxu0
    %v4809 = vadd.f32 0.0, %v4808
    %4810 = vmatmul.bf16.gmra.mxu0 %v4483
    %v4811 = vpop.f32.mrf.mxu0
    %v4812 = vadd.f32 0.0, %v4811
    %v4813 = vpop.f32.mrf.mxu0
    %v4814 = vadd.f32 0.0, %v4813
    %4815 = vmatmul.bf16.gmra.mxu0 %v4486
    %v4816 = vpop.f32.mrf.mxu0
    %v4817 = vadd.f32 0.0, %v4816
    %v4818 = vpop.f32.mrf.mxu0
    %v4819 = vadd.f32 0.0, %v4818
    %4820 = vmatmul.bf16.gmra.mxu0 %v4489
    %v4821 = vpop.f32.mrf.mxu0
    %v4822 = vadd.f32 0.0, %v4821
    %v4823 = vpop.f32.mrf.mxu0
    %v4824 = vadd.f32 0.0, %v4823
    %4825 = vmatmul.bf16.gmra.mxu0 %v4492
    %v4826 = vpop.f32.mrf.mxu0
    %v4827 = vadd.f32 0.0, %v4826
    %v4828 = vpop.f32.mrf.mxu0
    %v4829 = vadd.f32 0.0, %v4828
    %4830 = vmatmul.bf16.gmra.mxu0 %v4495
    %v4831 = vpop.f32.mrf.mxu0
    %v4832 = vadd.f32 0.0, %v4831
    %v4833 = vpop.f32.mrf.mxu0
    %v4834 = vadd.f32 0.0, %v4833
    %4835 = vmatmul.bf16.gmra.mxu0 %v4498
    %v4836 = vpop.f32.mrf.mxu0
    %v4837 = vadd.f32 0.0, %v4836
    %v4838 = vpop.f32.mrf.mxu0
    %v4839 = vadd.f32 0.0, %v4838
    %4840 = vmatmul.bf16.gmra.mxu0 %v4501
    %v4841 = vpop.f32.mrf.mxu0
    %v4842 = vadd.f32 0.0, %v4841
    %v4843 = vpop.f32.mrf.mxu0
    %v4844 = vadd.f32 0.0, %v4843
    %4845 = vdwg.mxu0
    %4846 = vmatpush.bf16.msra.mxu0 0
    %4847 = vmatpush.bf16.msra.mxu0 0
    %4848 = vmatpush.bf16.msra.mxu0 0
    %4849 = vmatpush.bf16.msra.mxu0 0
    %4850 = vmatpush.bf16.msra.mxu0 0
    %4851 = vmatpush.bf16.msra.mxu0 0
    %4852 = vmatpush.bf16.msra.mxu0 0
    %4853 = vmatpush.bf16.msra.mxu0 %v1768
    %4854 = vmatmul.bf16.gmra.mxu0 %v4480
    %v4855 = vpop.f32.mrf.mxu0
    %v4856 = vadd.f32 0.0, %v4855
    %v4857 = vpop.f32.mrf.mxu0
    %v4858 = vadd.f32 0.0, %v4857
    %4859 = vmatmul.bf16.gmra.mxu0 %v4483
    %v4860 = vpop.f32.mrf.mxu0
    %v4861 = vadd.f32 0.0, %v4860
    %v4862 = vpop.f32.mrf.mxu0
    %v4863 = vadd.f32 0.0, %v4862
    %4864 = vmatmul.bf16.gmra.mxu0 %v4486
    %v4865 = vpop.f32.mrf.mxu0
    %v4866 = vadd.f32 0.0, %v4865
    %v4867 = vpop.f32.mrf.mxu0
    %v4868 = vadd.f32 0.0, %v4867
    %4869 = vmatmul.bf16.gmra.mxu0 %v4489
    %v4870 = vpop.f32.mrf.mxu0
    %v4871 = vadd.f32 0.0, %v4870
    %v4872 = vpop.f32.mrf.mxu0
    %v4873 = vadd.f32 0.0, %v4872
    %4874 = vmatmul.bf16.gmra.mxu0 %v4492
    %v4875 = vpop.f32.mrf.mxu0
    %v4876 = vadd.f32 0.0, %v4875
    %v4877 = vpop.f32.mrf.mxu0
    %v4878 = vadd.f32 0.0, %v4877
    %4879 = vmatmul.bf16.gmra.mxu0 %v4495
    %v4880 = vpop.f32.mrf.mxu0
    %v4881 = vadd.f32 0.0, %v4880
    %v4882 = vpop.f32.mrf.mxu0
    %v4883 = vadd.f32 0.0, %v4882
    %4884 = vmatmul.bf16.gmra.mxu0 %v4498
    %v4885 = vpop.f32.mrf.mxu0
    %v4886 = vadd.f32 0.0, %v4885
    %v4887 = vpop.f32.mrf.mxu0
    %v4888 = vadd.f32 0.0, %v4887
    %4889 = vmatmul.bf16.gmra.mxu0 %v4501
    %v4890 = vpop.f32.mrf.mxu0
    %v4891 = vadd.f32 0.0, %v4890
    %v4892 = vpop.f32.mrf.mxu0
    %v4893 = vadd.f32 0.0, %v4892
    %4894 = vdwg.mxu0
    %v4895 = vmul.f32 %v3708, %v4513
    %v4896 = vmul.f32 %v3757, %v4562
    %v4897 = vmul.f32 %v3806, %v4611
    %v4898 = vmul.f32 %v3855, %v4660
    %v4899 = vmul.f32 %v3904, %v4709
    %v4900 = vmul.f32 %v3953, %v4758
    %v4901 = vmul.f32 %v4002, %v4807
    %v4902 = vmul.f32 %v4051, %v4856
    %v4903 = vmul.f32 %v3710, %v4515
    %v4904 = vmul.f32 %v3759, %v4564
    %v4905 = vmul.f32 %v3808, %v4613
    %v4906 = vmul.f32 %v3857, %v4662
    %v4907 = vmul.f32 %v3906, %v4711
    %v4908 = vmul.f32 %v3955, %v4760
    %v4909 = vmul.f32 %v4004, %v4809
    %v4910 = vmul.f32 %v4053, %v4858
    %v4911 = vmul.f32 %v3713, %v4518
    %v4912 = vmul.f32 %v3762, %v4567
    %v4913 = vmul.f32 %v3811, %v4616
    %v4914 = vmul.f32 %v3860, %v4665
    %v4915 = vmul.f32 %v3909, %v4714
    %v4916 = vmul.f32 %v3958, %v4763
    %v4917 = vmul.f32 %v4007, %v4812
    %v4918 = vmul.f32 %v4056, %v4861
    %v4919 = vmul.f32 %v3715, %v4520
    %v4920 = vmul.f32 %v3764, %v4569
    %v4921 = vmul.f32 %v3813, %v4618
    %v4922 = vmul.f32 %v3862, %v4667
    %v4923 = vmul.f32 %v3911, %v4716
    %v4924 = vmul.f32 %v3960, %v4765
    %v4925 = vmul.f32 %v4009, %v4814
    %v4926 = vmul.f32 %v4058, %v4863
    %v4927 = vmul.f32 %v3718, %v4523
    %v4928 = vmul.f32 %v3767, %v4572
    %v4929 = vmul.f32 %v3816, %v4621
    %v4930 = vmul.f32 %v3865, %v4670
    %v4931 = vmul.f32 %v3914, %v4719
    %v4932 = vmul.f32 %v3963, %v4768
    %v4933 = vmul.f32 %v4012, %v4817
    %v4934 = vmul.f32 %v4061, %v4866
    %v4935 = vmul.f32 %v3720, %v4525
    %v4936 = vmul.f32 %v3769, %v4574
    %v4937 = vmul.f32 %v3818, %v4623
    %v4938 = vmul.f32 %v3867, %v4672
    %v4939 = vmul.f32 %v3916, %v4721
    %v4940 = vmul.f32 %v3965, %v4770
    %v4941 = vmul.f32 %v4014, %v4819
    %v4942 = vmul.f32 %v4063, %v4868
    %v4943 = vmul.f32 %v3723, %v4528
    %v4944 = vmul.f32 %v3772, %v4577
    %v4945 = vmul.f32 %v3821, %v4626
    %v4946 = vmul.f32 %v3870, %v4675
    %v4947 = vmul.f32 %v3919, %v4724
    %v4948 = vmul.f32 %v3968, %v4773
    %v4949 = vmul.f32 %v4017, %v4822
    %v4950 = vmul.f32 %v4066, %v4871
    %v4951 = vmul.f32 %v3725, %v4530
    %v4952 = vmul.f32 %v3774, %v4579
    %v4953 = vmul.f32 %v3823, %v4628
    %v4954 = vmul.f32 %v3872, %v4677
    %v4955 = vmul.f32 %v3921, %v4726
    %v4956 = vmul.f32 %v3970, %v4775
    %v4957 = vmul.f32 %v4019, %v4824
    %v4958 = vmul.f32 %v4068, %v4873
    %v4959 = vmul.f32 %v3728, %v4533
    %v4960 = vmul.f32 %v3777, %v4582
    %v4961 = vmul.f32 %v3826, %v4631
    %v4962 = vmul.f32 %v3875, %v4680
    %v4963 = vmul.f32 %v3924, %v4729
    %v4964 = vmul.f32 %v3973, %v4778
    %v4965 = vmul.f32 %v4022, %v4827
    %v4966 = vmul.f32 %v4071, %v4876
    %v4967 = vmul.f32 %v3730, %v4535
    %v4968 = vmul.f32 %v3779, %v4584
    %v4969 = vmul.f32 %v3828, %v4633
    %v4970 = vmul.f32 %v3877, %v4682
    %v4971 = vmul.f32 %v3926, %v4731
    %v4972 = vmul.f32 %v3975, %v4780
    %v4973 = vmul.f32 %v4024, %v4829
    %v4974 = vmul.f32 %v4073, %v4878
    %v4975 = vmul.f32 %v3733, %v4538
    %v4976 = vmul.f32 %v3782, %v4587
    %v4977 = vmul.f32 %v3831, %v4636
    %v4978 = vmul.f32 %v3880, %v4685
    %v4979 = vmul.f32 %v3929, %v4734
    %v4980 = vmul.f32 %v3978, %v4783
    %v4981 = vmul.f32 %v4027, %v4832
    %v4982 = vmul.f32 %v4076, %v4881
    %v4983 = vmul.f32 %v3735, %v4540
    %v4984 = vmul.f32 %v3784, %v4589
    %v4985 = vmul.f32 %v3833, %v4638
    %v4986 = vmul.f32 %v3882, %v4687
    %v4987 = vmul.f32 %v3931, %v4736
    %v4988 = vmul.f32 %v3980, %v4785
    %v4989 = vmul.f32 %v4029, %v4834
    %v4990 = vmul.f32 %v4078, %v4883
    %v4991 = vmul.f32 %v3738, %v4543
    %v4992 = vmul.f32 %v3787, %v4592
    %v4993 = vmul.f32 %v3836, %v4641
    %v4994 = vmul.f32 %v3885, %v4690
    %v4995 = vmul.f32 %v3934, %v4739
    %v4996 = vmul.f32 %v3983, %v4788
    %v4997 = vmul.f32 %v4032, %v4837
    %v4998 = vmul.f32 %v4081, %v4886
    %v4999 = vmul.f32 %v3740, %v4545
    %v5000 = vmul.f32 %v3789, %v4594
    %v5001 = vmul.f32 %v3838, %v4643
    %v5002 = vmul.f32 %v3887, %v4692
    %v5003 = vmul.f32 %v3936, %v4741
    %v5004 = vmul.f32 %v3985, %v4790
    %v5005 = vmul.f32 %v4034, %v4839
    %v5006 = vmul.f32 %v4083, %v4888
    %v5007 = vmul.f32 %v3743, %v4548
    %v5008 = vmul.f32 %v3792, %v4597
    %v5009 = vmul.f32 %v3841, %v4646
    %v5010 = vmul.f32 %v3890, %v4695
    %v5011 = vmul.f32 %v3939, %v4744
    %v5012 = vmul.f32 %v3988, %v4793
    %v5013 = vmul.f32 %v4037, %v4842
    %v5014 = vmul.f32 %v4086, %v4891
    %v5015 = vmul.f32 %v3745, %v4550
    %v5016 = vmul.f32 %v3794, %v4599
    %v5017 = vmul.f32 %v3843, %v4648
    %v5018 = vmul.f32 %v3892, %v4697
    %v5019 = vmul.f32 %v3941, %v4746
    %v5020 = vmul.f32 %v3990, %v4795
    %v5021 = vmul.f32 %v4039, %v4844
    %v5022 = vmul.f32 %v4088, %v4893
    %v5023 = vpack.c.bf16 %v4903, %v4895
    %v5024 = vpack.c.bf16 %v4904, %v4896
    %v5025 = vpack.c.bf16 %v4905, %v4897
    %v5026 = vpack.c.bf16 %v4906, %v4898
    %v5027 = vpack.c.bf16 %v4907, %v4899
    %v5028 = vpack.c.bf16 %v4908, %v4900
    %v5029 = vpack.c.bf16 %v4909, %v4901
    %v5030 = vpack.c.bf16 %v4910, %v4902
    %v5031 = vpack.c.bf16 %v4919, %v4911
    %v5032 = vpack.c.bf16 %v4920, %v4912
    %v5033 = vpack.c.bf16 %v4921, %v4913
    %v5034 = vpack.c.bf16 %v4922, %v4914
    %v5035 = vpack.c.bf16 %v4923, %v4915
    %v5036 = vpack.c.bf16 %v4924, %v4916
    %v5037 = vpack.c.bf16 %v4925, %v4917
    %v5038 = vpack.c.bf16 %v4926, %v4918
    %v5039 = vpack.c.bf16 %v4935, %v4927
    %v5040 = vpack.c.bf16 %v4936, %v4928
    %v5041 = vpack.c.bf16 %v4937, %v4929
    %v5042 = vpack.c.bf16 %v4938, %v4930
    %v5043 = vpack.c.bf16 %v4939, %v4931
    %v5044 = vpack.c.bf16 %v4940, %v4932
    %v5045 = vpack.c.bf16 %v4941, %v4933
    %v5046 = vpack.c.bf16 %v4942, %v4934
    %v5047 = vpack.c.bf16 %v4951, %v4943
    %v5048 = vpack.c.bf16 %v4952, %v4944
    %v5049 = vpack.c.bf16 %v4953, %v4945
    %v5050 = vpack.c.bf16 %v4954, %v4946
    %v5051 = vpack.c.bf16 %v4955, %v4947
    %v5052 = vpack.c.bf16 %v4956, %v4948
    %v5053 = vpack.c.bf16 %v4957, %v4949
    %v5054 = vpack.c.bf16 %v4958, %v4950
    %v5055 = vpack.c.bf16 %v4967, %v4959
    %v5056 = vpack.c.bf16 %v4968, %v4960
    %v5057 = vpack.c.bf16 %v4969, %v4961
    %v5058 = vpack.c.bf16 %v4970, %v4962
    %v5059 = vpack.c.bf16 %v4971, %v4963
    %v5060 = vpack.c.bf16 %v4972, %v4964
    %v5061 = vpack.c.bf16 %v4973, %v4965
    %v5062 = vpack.c.bf16 %v4974, %v4966
    %v5063 = vpack.c.bf16 %v4983, %v4975
    %v5064 = vpack.c.bf16 %v4984, %v4976
    %v5065 = vpack.c.bf16 %v4985, %v4977
    %v5066 = vpack.c.bf16 %v4986, %v4978
    %v5067 = vpack.c.bf16 %v4987, %v4979
    %v5068 = vpack.c.bf16 %v4988, %v4980
    %v5069 = vpack.c.bf16 %v4989, %v4981
    %v5070 = vpack.c.bf16 %v4990, %v4982
    %v5071 = vpack.c.bf16 %v4999, %v4991
    %v5072 = vpack.c.bf16 %v5000, %v4992
    %v5073 = vpack.c.bf16 %v5001, %v4993
    %v5074 = vpack.c.bf16 %v5002, %v4994
    %v5075 = vpack.c.bf16 %v5003, %v4995
    %v5076 = vpack.c.bf16 %v5004, %v4996
    %v5077 = vpack.c.bf16 %v5005, %v4997
    %v5078 = vpack.c.bf16 %v5006, %v4998
    %v5079 = vpack.c.bf16 %v5015, %v5007
    %v5080 = vpack.c.bf16 %v5016, %v5008
    %v5081 = vpack.c.bf16 %v5017, %v5009
    %v5082 = vpack.c.bf16 %v5018, %v5010
    %v5083 = vpack.c.bf16 %v5019, %v5011
    %v5084 = vpack.c.bf16 %v5020, %v5012
    %v5085 = vpack.c.bf16 %v5021, %v5013
    %v5086 = vpack.c.bf16 %v5022, %v5014
    %5087 = vmatpush.bf16.msra.mxu0 %v2648
    %5088 = vmatpush.bf16.msra.mxu0 %v2647
    %5089 = vmatpush.bf16.msra.mxu0 %v2646
    %5090 = vmatpush.bf16.msra.mxu0 %v2645
    %5091 = vmatpush.bf16.msra.mxu0 %v2644
    %5092 = vmatpush.bf16.msra.mxu0 %v2643
    %5093 = vmatpush.bf16.msra.mxu0 %v2642
    %5094 = vmatpush.bf16.msra.mxu0 %v2641
    %5095 = vmatmul.bf16.gmra.mxu0 %v5023
    %v5096 = vpop.f32.mrf.mxu0
    %v5097 = vadd.f32 0.0, %v5096
    %v5098 = vpop.f32.mrf.mxu0
    %v5099 = vadd.f32 0.0, %v5098
    %5100 = vmatmul.bf16.gmra.mxu0 %v5031
    %v5101 = vpop.f32.mrf.mxu0
    %v5102 = vadd.f32 0.0, %v5101
    %v5103 = vpop.f32.mrf.mxu0
    %v5104 = vadd.f32 0.0, %v5103
    %5105 = vmatmul.bf16.gmra.mxu0 %v5039
    %v5106 = vpop.f32.mrf.mxu0
    %v5107 = vadd.f32 0.0, %v5106
    %v5108 = vpop.f32.mrf.mxu0
    %v5109 = vadd.f32 0.0, %v5108
    %5110 = vmatmul.bf16.gmra.mxu0 %v5047
    %v5111 = vpop.f32.mrf.mxu0
    %v5112 = vadd.f32 0.0, %v5111
    %v5113 = vpop.f32.mrf.mxu0
    %v5114 = vadd.f32 0.0, %v5113
    %5115 = vmatmul.bf16.gmra.mxu0 %v5055
    %v5116 = vpop.f32.mrf.mxu0
    %v5117 = vadd.f32 0.0, %v5116
    %v5118 = vpop.f32.mrf.mxu0
    %v5119 = vadd.f32 0.0, %v5118
    %5120 = vmatmul.bf16.gmra.mxu0 %v5063
    %v5121 = vpop.f32.mrf.mxu0
    %v5122 = vadd.f32 0.0, %v5121
    %v5123 = vpop.f32.mrf.mxu0
    %v5124 = vadd.f32 0.0, %v5123
    %5125 = vmatmul.bf16.gmra.mxu0 %v5071
    %v5126 = vpop.f32.mrf.mxu0
    %v5127 = vadd.f32 0.0, %v5126
    %v5128 = vpop.f32.mrf.mxu0
    %v5129 = vadd.f32 0.0, %v5128
    %5130 = vmatmul.bf16.gmra.mxu0 %v5079
    %v5131 = vpop.f32.mrf.mxu0
    %v5132 = vadd.f32 0.0, %v5131
    %v5133 = vpop.f32.mrf.mxu0
    %v5134 = vadd.f32 0.0, %v5133
    %5135 = vdwg.mxu0
    %5136 = vmatpush.bf16.msra.mxu0 %v2656
    %5137 = vmatpush.bf16.msra.mxu0 %v2655
    %5138 = vmatpush.bf16.msra.mxu0 %v2654
    %5139 = vmatpush.bf16.msra.mxu0 %v2653
    %5140 = vmatpush.bf16.msra.mxu0 %v2652
    %5141 = vmatpush.bf16.msra.mxu0 %v2651
    %5142 = vmatpush.bf16.msra.mxu0 %v2650
    %5143 = vmatpush.bf16.msra.mxu0 %v2649
    %5144 = vmatmul.bf16.gmra.mxu0 %v5024
    %v5145 = vpop.f32.mrf.mxu0
    %v5146 = vadd.f32 %v5097, %v5145
    %v5147 = vpop.f32.mrf.mxu0
    %v5148 = vadd.f32 %v5099, %v5147
    %5149 = vmatmul.bf16.gmra.mxu0 %v5032
    %v5150 = vpop.f32.mrf.mxu0
    %v5151 = vadd.f32 %v5102, %v5150
    %v5152 = vpop.f32.mrf.mxu0
    %v5153 = vadd.f32 %v5104, %v5152
    %5154 = vmatmul.bf16.gmra.mxu0 %v5040
    %v5155 = vpop.f32.mrf.mxu0
    %v5156 = vadd.f32 %v5107, %v5155
    %v5157 = vpop.f32.mrf.mxu0
    %v5158 = vadd.f32 %v5109, %v5157
    %5159 = vmatmul.bf16.gmra.mxu0 %v5048
    %v5160 = vpop.f32.mrf.mxu0
    %v5161 = vadd.f32 %v5112, %v5160
    %v5162 = vpop.f32.mrf.mxu0
    %v5163 = vadd.f32 %v5114, %v5162
    %5164 = vmatmul.bf16.gmra.mxu0 %v5056
    %v5165 = vpop.f32.mrf.mxu0
    %v5166 = vadd.f32 %v5117, %v5165
    %v5167 = vpop.f32.mrf.mxu0
    %v5168 = vadd.f32 %v5119, %v5167
    %5169 = vmatmul.bf16.gmra.mxu0 %v5064
    %v5170 = vpop.f32.mrf.mxu0
    %v5171 = vadd.f32 %v5122, %v5170
    %v5172 = vpop.f32.mrf.mxu0
    %v5173 = vadd.f32 %v5124, %v5172
    %5174 = vmatmul.bf16.gmra.mxu0 %v5072
    %v5175 = vpop.f32.mrf.mxu0
    %v5176 = vadd.f32 %v5127, %v5175
    %v5177 = vpop.f32.mrf.mxu0
    %v5178 = vadd.f32 %v5129, %v5177
    %5179 = vmatmul.bf16.gmra.mxu0 %v5080
    %v5180 = vpop.f32.mrf.mxu0
    %v5181 = vadd.f32 %v5132, %v5180
    %v5182 = vpop.f32.mrf.mxu0
    %v5183 = vadd.f32 %v5134, %v5182
    %5184 = vdwg.mxu0
    %5185 = vmatpush.bf16.msra.mxu0 %v2664
    %5186 = vmatpush.bf16.msra.mxu0 %v2663
    %5187 = vmatpush.bf16.msra.mxu0 %v2662
    %5188 = vmatpush.bf16.msra.mxu0 %v2661
    %5189 = vmatpush.bf16.msra.mxu0 %v2660
    %5190 = vmatpush.bf16.msra.mxu0 %v2659
    %5191 = vmatpush.bf16.msra.mxu0 %v2658
    %5192 = vmatpush.bf16.msra.mxu0 %v2657
    %5193 = vmatmul.bf16.gmra.mxu0 %v5025
    %v5194 = vpop.f32.mrf.mxu0
    %v5195 = vadd.f32 %v5146, %v5194
    %v5196 = vpop.f32.mrf.mxu0
    %v5197 = vadd.f32 %v5148, %v5196
    %5198 = vmatmul.bf16.gmra.mxu0 %v5033
    %v5199 = vpop.f32.mrf.mxu0
    %v5200 = vadd.f32 %v5151, %v5199
    %v5201 = vpop.f32.mrf.mxu0
    %v5202 = vadd.f32 %v5153, %v5201
    %5203 = vmatmul.bf16.gmra.mxu0 %v5041
    %v5204 = vpop.f32.mrf.mxu0
    %v5205 = vadd.f32 %v5156, %v5204
    %v5206 = vpop.f32.mrf.mxu0
    %v5207 = vadd.f32 %v5158, %v5206
    %5208 = vmatmul.bf16.gmra.mxu0 %v5049
    %v5209 = vpop.f32.mrf.mxu0
    %v5210 = vadd.f32 %v5161, %v5209
    %v5211 = vpop.f32.mrf.mxu0
    %v5212 = vadd.f32 %v5163, %v5211
    %5213 = vmatmul.bf16.gmra.mxu0 %v5057
    %v5214 = vpop.f32.mrf.mxu0
    %v5215 = vadd.f32 %v5166, %v5214
    %v5216 = vpop.f32.mrf.mxu0
    %v5217 = vadd.f32 %v5168, %v5216
    %5218 = vmatmul.bf16.gmra.mxu0 %v5065
    %v5219 = vpop.f32.mrf.mxu0
    %v5220 = vadd.f32 %v5171, %v5219
    %v5221 = vpop.f32.mrf.mxu0
    %v5222 = vadd.f32 %v5173, %v5221
    %5223 = vmatmul.bf16.gmra.mxu0 %v5073
    %v5224 = vpop.f32.mrf.mxu0
    %v5225 = vadd.f32 %v5176, %v5224
    %v5226 = vpop.f32.mrf.mxu0
    %v5227 = vadd.f32 %v5178, %v5226
    %5228 = vmatmul.bf16.gmra.mxu0 %v5081
    %v5229 = vpop.f32.mrf.mxu0
    %v5230 = vadd.f32 %v5181, %v5229
    %v5231 = vpop.f32.mrf.mxu0
    %v5232 = vadd.f32 %v5183, %v5231
    %5233 = vdwg.mxu0
    %5234 = vmatpush.bf16.msra.mxu0 %v2672
    %5235 = vmatpush.bf16.msra.mxu0 %v2671
    %5236 = vmatpush.bf16.msra.mxu0 %v2670
    %5237 = vmatpush.bf16.msra.mxu0 %v2669
    %5238 = vmatpush.bf16.msra.mxu0 %v2668
    %5239 = vmatpush.bf16.msra.mxu0 %v2667
    %5240 = vmatpush.bf16.msra.mxu0 %v2666
    %5241 = vmatpush.bf16.msra.mxu0 %v2665
    %5242 = vmatmul.bf16.gmra.mxu0 %v5026
    %v5243 = vpop.f32.mrf.mxu0
    %v5244 = vadd.f32 %v5195, %v5243
    %v5245 = vpop.f32.mrf.mxu0
    %v5246 = vadd.f32 %v5197, %v5245
    %5247 = vmatmul.bf16.gmra.mxu0 %v5034
    %v5248 = vpop.f32.mrf.mxu0
    %v5249 = vadd.f32 %v5200, %v5248
    %v5250 = vpop.f32.mrf.mxu0
    %v5251 = vadd.f32 %v5202, %v5250
    %5252 = vmatmul.bf16.gmra.mxu0 %v5042
    %v5253 = vpop.f32.mrf.mxu0
    %v5254 = vadd.f32 %v5205, %v5253
    %v5255 = vpop.f32.mrf.mxu0
    %v5256 = vadd.f32 %v5207, %v5255
    %5257 = vmatmul.bf16.gmra.mxu0 %v5050
    %v5258 = vpop.f32.mrf.mxu0
    %v5259 = vadd.f32 %v5210, %v5258
    %v5260 = vpop.f32.mrf.mxu0
    %v5261 = vadd.f32 %v5212, %v5260
    %5262 = vmatmul.bf16.gmra.mxu0 %v5058
    %v5263 = vpop.f32.mrf.mxu0
    %v5264 = vadd.f32 %v5215, %v5263
    %v5265 = vpop.f32.mrf.mxu0
    %v5266 = vadd.f32 %v5217, %v5265
    %5267 = vmatmul.bf16.gmra.mxu0 %v5066
    %v5268 = vpop.f32.mrf.mxu0
    %v5269 = vadd.f32 %v5220, %v5268
    %v5270 = vpop.f32.mrf.mxu0
    %v5271 = vadd.f32 %v5222, %v5270
    %5272 = vmatmul.bf16.gmra.mxu0 %v5074
    %v5273 = vpop.f32.mrf.mxu0
    %v5274 = vadd.f32 %v5225, %v5273
    %v5275 = vpop.f32.mrf.mxu0
    %v5276 = vadd.f32 %v5227, %v5275
    %5277 = vmatmul.bf16.gmra.mxu0 %v5082
    %v5278 = vpop.f32.mrf.mxu0
    %v5279 = vadd.f32 %v5230, %v5278
    %v5280 = vpop.f32.mrf.mxu0
    %v5281 = vadd.f32 %v5232, %v5280
    %5282 = vdwg.mxu0
    %5283 = vmatpush.bf16.msra.mxu0 %v2680
    %5284 = vmatpush.bf16.msra.mxu0 %v2679
    %5285 = vmatpush.bf16.msra.mxu0 %v2678
    %5286 = vmatpush.bf16.msra.mxu0 %v2677
    %5287 = vmatpush.bf16.msra.mxu0 %v2676
    %5288 = vmatpush.bf16.msra.mxu0 %v2675
    %5289 = vmatpush.bf16.msra.mxu0 %v2674
    %5290 = vmatpush.bf16.msra.mxu0 %v2673
    %5291 = vmatmul.bf16.gmra.mxu0 %v5027
    %v5292 = vpop.f32.mrf.mxu0
    %v5293 = vadd.f32 %v5244, %v5292
    %v5294 = vpop.f32.mrf.mxu0
    %v5295 = vadd.f32 %v5246, %v5294
    %5296 = vmatmul.bf16.gmra.mxu0 %v5035
    %v5297 = vpop.f32.mrf.mxu0
    %v5298 = vadd.f32 %v5249, %v5297
    %v5299 = vpop.f32.mrf.mxu0
    %v5300 = vadd.f32 %v5251, %v5299
    %5301 = vmatmul.bf16.gmra.mxu0 %v5043
    %v5302 = vpop.f32.mrf.mxu0
    %v5303 = vadd.f32 %v5254, %v5302
    %v5304 = vpop.f32.mrf.mxu0
    %v5305 = vadd.f32 %v5256, %v5304
    %5306 = vmatmul.bf16.gmra.mxu0 %v5051
    %v5307 = vpop.f32.mrf.mxu0
    %v5308 = vadd.f32 %v5259, %v5307
    %v5309 = vpop.f32.mrf.mxu0
    %v5310 = vadd.f32 %v5261, %v5309
    %5311 = vmatmul.bf16.gmra.mxu0 %v5059
    %v5312 = vpop.f32.mrf.mxu0
    %v5313 = vadd.f32 %v5264, %v5312
    %v5314 = vpop.f32.mrf.mxu0
    %v5315 = vadd.f32 %v5266, %v5314
    %5316 = vmatmul.bf16.gmra.mxu0 %v5067
    %v5317 = vpop.f32.mrf.mxu0
    %v5318 = vadd.f32 %v5269, %v5317
    %v5319 = vpop.f32.mrf.mxu0
    %v5320 = vadd.f32 %v5271, %v5319
    %5321 = vmatmul.bf16.gmra.mxu0 %v5075
    %v5322 = vpop.f32.mrf.mxu0
    %v5323 = vadd.f32 %v5274, %v5322
    %v5324 = vpop.f32.mrf.mxu0
    %v5325 = vadd.f32 %v5276, %v5324
    %5326 = vmatmul.bf16.gmra.mxu0 %v5083
    %v5327 = vpop.f32.mrf.mxu0
    %v5328 = vadd.f32 %v5279, %v5327
    %v5329 = vpop.f32.mrf.mxu0
    %v5330 = vadd.f32 %v5281, %v5329
    %5331 = vdwg.mxu0
    %5332 = vmatpush.bf16.msra.mxu0 %v2688
    %5333 = vmatpush.bf16.msra.mxu0 %v2687
    %5334 = vmatpush.bf16.msra.mxu0 %v2686
    %5335 = vmatpush.bf16.msra.mxu0 %v2685
    %5336 = vmatpush.bf16.msra.mxu0 %v2684
    %5337 = vmatpush.bf16.msra.mxu0 %v2683
    %5338 = vmatpush.bf16.msra.mxu0 %v2682
    %5339 = vmatpush.bf16.msra.mxu0 %v2681
    %5340 = vmatmul.bf16.gmra.mxu0 %v5028
    %v5341 = vpop.f32.mrf.mxu0
    %v5342 = vadd.f32 %v5293, %v5341
    %v5343 = vpop.f32.mrf.mxu0
    %v5344 = vadd.f32 %v5295, %v5343
    %5345 = vmatmul.bf16.gmra.mxu0 %v5036
    %v5346 = vpop.f32.mrf.mxu0
    %v5347 = vadd.f32 %v5298, %v5346
    %v5348 = vpop.f32.mrf.mxu0
    %v5349 = vadd.f32 %v5300, %v5348
    %5350 = vmatmul.bf16.gmra.mxu0 %v5044
    %v5351 = vpop.f32.mrf.mxu0
    %v5352 = vadd.f32 %v5303, %v5351
    %v5353 = vpop.f32.mrf.mxu0
    %v5354 = vadd.f32 %v5305, %v5353
    %5355 = vmatmul.bf16.gmra.mxu0 %v5052
    %v5356 = vpop.f32.mrf.mxu0
    %v5357 = vadd.f32 %v5308, %v5356
    %v5358 = vpop.f32.mrf.mxu0
    %v5359 = vadd.f32 %v5310, %v5358
    %5360 = vmatmul.bf16.gmra.mxu0 %v5060
    %v5361 = vpop.f32.mrf.mxu0
    %v5362 = vadd.f32 %v5313, %v5361
    %v5363 = vpop.f32.mrf.mxu0
    %v5364 = vadd.f32 %v5315, %v5363
    %5365 = vmatmul.bf16.gmra.mxu0 %v5068
    %v5366 = vpop.f32.mrf.mxu0
    %v5367 = vadd.f32 %v5318, %v5366
    %v5368 = vpop.f32.mrf.mxu0
    %v5369 = vadd.f32 %v5320, %v5368
    %5370 = vmatmul.bf16.gmra.mxu0 %v5076
    %v5371 = vpop.f32.mrf.mxu0
    %v5372 = vadd.f32 %v5323, %v5371
    %v5373 = vpop.f32.mrf.mxu0
    %v5374 = vadd.f32 %v5325, %v5373
    %5375 = vmatmul.bf16.gmra.mxu0 %v5084
    %v5376 = vpop.f32.mrf.mxu0
    %v5377 = vadd.f32 %v5328, %v5376
    %v5378 = vpop.f32.mrf.mxu0
    %v5379 = vadd.f32 %v5330, %v5378
    %5380 = vdwg.mxu0
    %5381 = vmatpush.bf16.msra.mxu0 %v2696
    %5382 = vmatpush.bf16.msra.mxu0 %v2695
    %5383 = vmatpush.bf16.msra.mxu0 %v2694
    %5384 = vmatpush.bf16.msra.mxu0 %v2693
    %5385 = vmatpush.bf16.msra.mxu0 %v2692
    %5386 = vmatpush.bf16.msra.mxu0 %v2691
    %5387 = vmatpush.bf16.msra.mxu0 %v2690
    %5388 = vmatpush.bf16.msra.mxu0 %v2689
    %5389 = vmatmul.bf16.gmra.mxu0 %v5029
    %v5390 = vpop.f32.mrf.mxu0
    %v5391 = vadd.f32 %v5342, %v5390
    %v5392 = vpop.f32.mrf.mxu0
    %v5393 = vadd.f32 %v5344, %v5392
    %5394 = vmatmul.bf16.gmra.mxu0 %v5037
    %v5395 = vpop.f32.mrf.mxu0
    %v5396 = vadd.f32 %v5347, %v5395
    %v5397 = vpop.f32.mrf.mxu0
    %v5398 = vadd.f32 %v5349, %v5397
    %5399 = vmatmul.bf16.gmra.mxu0 %v5045
    %v5400 = vpop.f32.mrf.mxu0
    %v5401 = vadd.f32 %v5352, %v5400
    %v5402 = vpop.f32.mrf.mxu0
    %v5403 = vadd.f32 %v5354, %v5402
    %5404 = vmatmul.bf16.gmra.mxu0 %v5053
    %v5405 = vpop.f32.mrf.mxu0
    %v5406 = vadd.f32 %v5357, %v5405
    %v5407 = vpop.f32.mrf.mxu0
    %v5408 = vadd.f32 %v5359, %v5407
    %5409 = vmatmul.bf16.gmra.mxu0 %v5061
    %v5410 = vpop.f32.mrf.mxu0
    %v5411 = vadd.f32 %v5362, %v5410
    %v5412 = vpop.f32.mrf.mxu0
    %v5413 = vadd.f32 %v5364, %v5412
    %5414 = vmatmul.bf16.gmra.mxu0 %v5069
    %v5415 = vpop.f32.mrf.mxu0
    %v5416 = vadd.f32 %v5367, %v5415
    %v5417 = vpop.f32.mrf.mxu0
    %v5418 = vadd.f32 %v5369, %v5417
    %5419 = vmatmul.bf16.gmra.mxu0 %v5077
    %v5420 = vpop.f32.mrf.mxu0
    %v5421 = vadd.f32 %v5372, %v5420
    %v5422 = vpop.f32.mrf.mxu0
    %v5423 = vadd.f32 %v5374, %v5422
    %5424 = vmatmul.bf16.gmra.mxu0 %v5085
    %v5425 = vpop.f32.mrf.mxu0
    %v5426 = vadd.f32 %v5377, %v5425
    %v5427 = vpop.f32.mrf.mxu0
    %v5428 = vadd.f32 %v5379, %v5427
    %5429 = vdwg.mxu0
    %5430 = vmatpush.bf16.msra.mxu0 %v2704
    %5431 = vmatpush.bf16.msra.mxu0 %v2703
    %5432 = vmatpush.bf16.msra.mxu0 %v2702
    %5433 = vmatpush.bf16.msra.mxu0 %v2701
    %5434 = vmatpush.bf16.msra.mxu0 %v2700
    %5435 = vmatpush.bf16.msra.mxu0 %v2699
    %5436 = vmatpush.bf16.msra.mxu0 %v2698
    %5437 = vmatpush.bf16.msra.mxu0 %v2697
    %5438 = vmatmul.bf16.gmra.mxu0 %v5030
    %v5439 = vpop.f32.mrf.mxu0
    %v5440 = vadd.f32 %v5391, %v5439
    %v5441 = vpop.f32.mrf.mxu0
    %v5442 = vadd.f32 %v5393, %v5441
    %5443 = vmatmul.bf16.gmra.mxu0 %v5038
    %v5444 = vpop.f32.mrf.mxu0
    %v5445 = vadd.f32 %v5396, %v5444
    %v5446 = vpop.f32.mrf.mxu0
    %v5447 = vadd.f32 %v5398, %v5446
    %5448 = vmatmul.bf16.gmra.mxu0 %v5046
    %v5449 = vpop.f32.mrf.mxu0
    %v5450 = vadd.f32 %v5401, %v5449
    %v5451 = vpop.f32.mrf.mxu0
    %v5452 = vadd.f32 %v5403, %v5451
    %5453 = vmatmul.bf16.gmra.mxu0 %v5054
    %v5454 = vpop.f32.mrf.mxu0
    %v5455 = vadd.f32 %v5406, %v5454
    %v5456 = vpop.f32.mrf.mxu0
    %v5457 = vadd.f32 %v5408, %v5456
    %5458 = vmatmul.bf16.gmra.mxu0 %v5062
    %v5459 = vpop.f32.mrf.mxu0
    %v5460 = vadd.f32 %v5411, %v5459
    %v5461 = vpop.f32.mrf.mxu0
    %v5462 = vadd.f32 %v5413, %v5461
    %5463 = vmatmul.bf16.gmra.mxu0 %v5070
    %v5464 = vpop.f32.mrf.mxu0
    %v5465 = vadd.f32 %v5416, %v5464
    %v5466 = vpop.f32.mrf.mxu0
    %v5467 = vadd.f32 %v5418, %v5466
    %5468 = vmatmul.bf16.gmra.mxu0 %v5078
    %v5469 = vpop.f32.mrf.mxu0
    %v5470 = vadd.f32 %v5421, %v5469
    %v5471 = vpop.f32.mrf.mxu0
    %v5472 = vadd.f32 %v5423, %v5471
    %5473 = vmatmul.bf16.gmra.mxu0 %v5086
    %v5474 = vpop.f32.mrf.mxu0
    %v5475 = vadd.f32 %v5426, %v5474
    %v5476 = vpop.f32.mrf.mxu0
    %v5477 = vadd.f32 %v5428, %v5476
    %5478 = vdwg.mxu0
    %v5479 = vpack.c.bf16 %v5442, %v5440
    %v5480 = vpack.c.bf16 %v5447, %v5445
    %v5481 = vpack.c.bf16 %v5452, %v5450
    %v5482 = vpack.c.bf16 %v5457, %v5455
    %v5483 = vpack.c.bf16 %v5462, %v5460
    %v5484 = vpack.c.bf16 %v5467, %v5465
    %v5485 = vpack.c.bf16 %v5472, %v5470
    %v5486 = vpack.c.bf16 %v5477, %v5475
    %v5488 = vperm.slane %v3245, 0
    %5490 = vmatpush.bf16.msra.mxu0 %v5486
    %5491 = vmatpush.bf16.msra.mxu0 %v5485
    %5492 = vmatpush.bf16.msra.mxu0 %v5484
    %5493 = vmatpush.bf16.msra.mxu0 %v5483
    %5494 = vmatpush.bf16.msra.mxu0 %v5482
    %5495 = vmatpush.bf16.msra.mxu0 %v5481
    %5496 = vmatpush.bf16.msra.mxu0 %v5480
    %5497 = vmatpush.bf16.msra.mxu0 %v5479
    %5498 = vmatmul.bf16.gmra.mxu0 %v1623
    %v5499 = vpop.f32.mrf.mxu0
    %v5500 = vadd.f32 %v5488, %v5499
    %v5501 = vpop.f32.mrf.mxu0
    %v5502 = vadd.f32 %v5488, %v5501
    %5503 = vmatmul.bf16.gmra.mxu0 %v1624
    %v5504 = vpop.f32.mrf.mxu0
    %v5505 = vadd.f32 %v5488, %v5504
    %v5506 = vpop.f32.mrf.mxu0
    %v5507 = vadd.f32 %v5488, %v5506
    %5508 = vdwg.mxu0
    %v5509 = vmax.f32 %v5500, 0.0
    %v5510 = vmax.f32 %v5502, 0.0
    %v5511 = vmax.f32 %v5505, 0.0
    %v5512 = vmax.f32 %v5507, 0.0
    %5513 = vst.msk [vmem:[#allocation2] sm:$0xff] %vm481, %v5509
    %5514 = vst.msk [vmem:[#allocation2 + $0x8] sm:$0xff] %vm481, %v5510
    %5515 = vst.msk [vmem:[#allocation2 + $0x10] sm:$0xff] %vm481, %v5511
    %5516 = vst.msk [vmem:[#allocation2 + $0x18] sm:$0xff] %vm481, %v5512
    // Predicated region
    $region54: #{tpu_custom_call.1} parent=1 // pred_check
      _
    $region55: #{tpu_custom_call.1} parent=1 // pred_check_branch
      %5518 = sbr.rel (0) target = $region57
    $region56: #{tpu_custom_call.1} parent=1 // pred_region
      %5520 = vsyncadd [#allocation3], 0
      %s5521 = sshll.u32 [#allocation2], 4
      %s5522 = int_to_ptr.vmem [resolvable:$true] %s5521
      %s5523 = sshll.u32 %s13, 4
      %s5524 = int_to_ptr.hbm [resolvable:$true] %s5523
      %5529 = dma.vmem_to_hbm [thread:$0]  %s5522, 512, %s5524, [#allocation3], 128, 128, 8
    $region57: #{tpu_custom_call.1} parent=1 // pred_fallthru
      _
    // Predicated region
    $region58: #{tpu_custom_call.1} parent=1 // pred_check
      _
    $region59: #{tpu_custom_call.1} parent=1 // pred_check_branch
      %5531 = sbr.rel (0) target = $region61
    $region60: #{tpu_custom_call.1} parent=1 // pred_region
      %5533 = dma.done [#allocation3], 512
    $region61: #{tpu_custom_call.1} parent=1 // pred_fallthru
      _
    %5534 = vsyncpa [#allocation3], 1

</llo_original>
